<compile_context>
chip_gen: v7x
topology: tpu7x:2x2x1
jax: 0.10.0
libtpu: 0.0.40
codegen_flags: <defaults>
</compile_context>

<pallas_src>
import functools

import jax
import jax.numpy as jnp
from jax import lax
from jax.experimental import pallas as pl
from jax.experimental.pallas import tpu as pltpu

BN_EPS = 1e-5


def _fast_mish(x):
    """x * tanh(softplus(x)) using one EUP exp + one approximate EUP reciprocal.

    tanh(log1p(e^x)) == (z^2 + 2z) / (z^2 + 2z + 2) with z = e^x.  For large x the
    ratio saturates to 1 (and e^x would overflow), so pass x straight through there.
    """
    z = jnp.exp(jnp.minimum(x, 20.0))
    n = z * (z + 2.0)
    t = n * pl.reciprocal(n + 2.0, approx=True)
    return x * jnp.where(x >= 20.0, 1.0, t)


def _smallblock_kernel(x_ref, w1_ref, b1_ref, w3_ref, b3_ref, o_ref):
    """One batch tile per grid step.

    x_ref  : (NB, H, W, CP)  input tile (NHWC, channels padded to CP)
    w1_ref : (CP, CP)        1x1 conv weight (Cin, Cout), BN1 scale folded in
    b1_ref : (1, CP)         BN1 shift (f32)
    w3_ref : (9, CP, CP)     3x3 conv weight, tap-major, BN2 scale folded in
    b3_ref : (1, CP)         BN2 shift (f32)
    o_ref  : (NB, H, W, CP)  output tile (aliased with the input in HBM)
    """
    NB, H, W, CP = x_ref.shape
    M = NB * H * W

    x2d = x_ref[...].reshape(M, CP)

    # ---- Conv1x1 (BN scale folded into weights) + shift + Mish -> (M, CP) ----
    t = jnp.dot(x2d, w1_ref[...], preferred_element_type=jnp.float32)
    t = _fast_mish(t + b1_ref[...])
    t_c = t.astype(w3_ref.dtype)  # MXU input dtype (bf16 on newer gens)

    # ---- per-row (y, x) coordinates via direct iota (no vector div/rem) ----
    yy = lax.broadcasted_iota(jnp.int32, (NB, H, W, 1), 1).reshape(M, 1)
    xx = lax.broadcasted_iota(jnp.int32, (NB, H, W, 1), 2).reshape(M, 1)
    vy_m = yy >= 1          # source row exists for dy = -1
    vy_p = yy <= H - 2      # source row exists for dy = +1
    vx_m = xx >= 1          # source col exists for dx = -1
    vx_p = xx <= W - 2      # source col exists for dx = +1

    # ---- Conv3x3: 9 per-tap matmuls accumulated in f32 (no im2col buffer) ----
    # Each tap is a roll of `t_c` along the flattened row axis (XLU slot) plus an
    # edge mask (VPU).  Rolls never leak between batch images: any row whose source
    # falls outside its own image is, by construction, an edge row/col and is masked.
    # (Invariant: |dy*W + dx| <= W+1 and the block covers whole images, M == NB*H*W.)
    acc = jnp.zeros((M, CP), jnp.float32)
    k = 0
    for dy, vy in ((-1, vy_m), (0, None), (1, vy_p)):
        for dx, vx in ((-1, vx_m), (0, None), (1, vx_p)):
            off = dy * W + dx
            tap = t_c if off == 0 else pltpu.roll(t_c, shift=(-off) % M, axis=0)
            if vy is None:
                valid = vx
            elif vx is None:
                valid = vy
            else:
                valid = jnp.logical_and(vy, vx)
            if valid is not None:
                tap = jnp.where(valid, tap, 0.0).astype(t_c.dtype)
            acc = acc + jnp.dot(tap, w3_ref[k],
                                preferred_element_type=jnp.float32)
            k += 1

    # ---- shift + Mish + residual ----
    y = _fast_mish(acc + b3_ref[...]) + x2d.astype(jnp.float32)
    o_ref[...] = y.reshape(NB, H, W, CP).astype(o_ref.dtype)


def _round_up(v, m):
    return (v + m - 1) // m * m


def _hw_config():
    """Generation-aware VMEM / tiling policy."""
    vmem_bytes = None
    try:
        info = pltpu.get_tpu_info()
        vmem_bytes = getattr(info, "vmem_capacity_bytes", None)
    except Exception:
        vmem_bytes = None
    if vmem_bytes is None:
        vmem_bytes = 64 * 1024 * 1024  # conservative default (v7x per-TC)
    if vmem_bytes >= 100 * 1024 * 1024:
        # v5e / v6e: 128 MiB VMEM, 1 TensorCore per chip.
        return dict(live_budget=64 * 1024 * 1024,
                    vmem_limit=96 * 1024 * 1024,
                    min_steps=2)
    # v7x: 64 MiB VMEM per TC, 2 TCs -> want >= 2 grid steps per core.
    return dict(live_budget=24 * 1024 * 1024,
                vmem_limit=40 * 1024 * 1024,
                min_steps=4)


def _pick_batch_tile(n, per_image_live_bytes, live_budget, min_steps):
    """Largest divisor of n whose per-step live VMEM fits `live_budget`, shrunk (when
    the batch allows) until there are at least `min_steps` grid iterations so every
    TensorCore gets software-pipelined work."""
    divisors = [d for d in range(1, n + 1) if n % d == 0]
    fitting = [d for d in divisors if d * per_image_live_bytes <= live_budget] or [1]
    nb = max(fitting)
    while n // nb < min_steps:
        smaller = [d for d in fitting if d < nb]
        if not smaller:
            break
        nb = max(smaller)
    return nb
    # TODO(synk): H-tiling with a 1-row halo for feature maps where a single image
    # exceeds the live budget (early CSPDarknet stages on v7x); not needed here.


def _fold_bn(gamma, beta, mean, var):
    scale = gamma / jnp.sqrt(var + BN_EPS)
    shift = beta - mean * scale
    return scale, shift


@functools.partial(jax.jit, static_argnames=("compute_dtype",))
def smallblock_pallas_nhwc(x_nhwc, params, compute_dtype=jnp.float32):
    """SmallBlock forward on an NHWC input.  Returns NHWC, same dtype as the input."""
    N, H, W, C = x_nhwc.shape
    CP = _round_up(C, 128)  # lane-dense channels

    s1, sh1 = _fold_bn(params["g1"], params["b1"], params["m1"], params["v1"])
    s3, sh3 = _fold_bn(params["g2"], params["b2"], params["m2"], params["v2"])

    # conv1: (Cout, Cin, 1, 1) -> (Cin, Cout), BN1 scale folded into output channels.
    w1 = params["w1"][:, :, 0, 0].T * s1[None, :]
    w1p = jnp.zeros((CP, CP), jnp.float32).at[:C, :C].set(w1).astype(compute_dtype)
    b1p = jnp.zeros((1, CP), jnp.float32).at[0, :C].set(sh1)

    # conv3: (Cout, Cin, 3, 3) -> tap-major (9, Cin_pad, Cout_pad), BN2 scale folded.
    w3 = jnp.transpose(params["w3"], (2, 3, 1, 0)) * s3[None, None, None, :]
    w3p = jnp.zeros((3, 3, CP, CP), jnp.float32).at[:, :, :C, :C].set(w3)
    w3p = w3p.reshape(9, CP, CP).astype(compute_dtype)
    b3p = jnp.zeros((1, CP), jnp.float32).at[0, :C].set(sh3)

    # activations: pad channels to CP once here (an NHWC model would keep the padded
    # layout end-to-end instead of padding/slicing per block).
    xp = jnp.zeros((N, H, W, CP), compute_dtype).at[..., :C].set(
        x_nhwc.astype(compute_dtype))

    hw = _hw_config()
    io_itemsize = jnp.dtype(compute_dtype).itemsize
    # live bytes per image per grid step: double-buffered input + output blocks
    # (2x each) plus ~5 f32 (H*W, CP) intermediates (t, acc, tap, y, residual).
    per_image_live = H * W * CP * (4 * io_itemsize + 5 * 4)
    NB = _pick_batch_tile(N, per_image_live, hw["live_budget"], hw["min_steps"])

    flops = 2 * N * H * W * 10 * CP * CP          # 1x1 + 3x3 MACs
    transcendentals = 4 * N * H * W * CP          # 2x Mish: exp + approx reciprocal
    bytes_accessed = (2 * xp.size * io_itemsize
                      + (w1p.size + w3p.size) * io_itemsize
                      + (b1p.size + b3p.size) * 4)

    out = pl.pallas_call(
        _smallblock_kernel,
        out_shape=jax.ShapeDtypeStruct((N, H, W, CP), compute_dtype),
        grid=(N // NB,),
        in_specs=[
            pl.BlockSpec((NB, H, W, CP), lambda n: (n, 0, 0, 0)),
            # grid-invariant operands (constant index_map -> fetched once, reused)
            pl.BlockSpec((CP, CP), lambda n: (0, 0)),
            pl.BlockSpec((1, CP), lambda n: (0, 0)),
            pl.BlockSpec((9, CP, CP), lambda n: (0, 0, 0)),
            pl.BlockSpec((1, CP), lambda n: (0, 0)),
        ],
        out_specs=pl.BlockSpec((NB, H, W, CP), lambda n: (n, 0, 0, 0)),
        input_output_aliases={0: 0},
        cost_estimate=pl.CostEstimate(flops=flops,
                                      transcendentals=transcendentals,
                                      bytes_accessed=bytes_accessed),
        compiler_params=pltpu.CompilerParams(
            dimension_semantics=("parallel",),
            vmem_limit_bytes=hw["vmem_limit"],
        ),
    )(xp, w1p, b1p, w3p, b3p)

    return out[..., :C].astype(x_nhwc.dtype)


def smallblock_pallas_nchw(x_nchw, params, compute_dtype=jnp.float32):
    # Thin adapter for the PyTorch NCHW interface; the kernel itself is NHWC.
    # (In an NHWC model these two transposes disappear.)
    x = jnp.transpose(x_nchw, (0, 2, 3, 1))
    out = smallblock_pallas_nhwc(x, params, compute_dtype=compute_dtype)
    return jnp.transpose(out, (0, 3, 1, 2))


# ----------------------- pure-JAX reference (PyTorch semantics) ---------------------
def smallblock_ref(x, params):
    def cbm(y, w, g, b, m, v, pad):
        y = lax.conv_general_dilated(
            y, w, window_strides=(1, 1), padding=[(pad, pad), (pad, pad)],
            dimension_numbers=("NCHW", "OIHW", "NCHW"))
        y = (y - m[None, :, None, None]) / jnp.sqrt(v + BN_EPS)[None, :, None, None]
        y = y * g[None, :, None, None] + b[None, :, None, None]
        return y * jnp.tanh(jax.nn.softplus(y))

    t = cbm(x, params["w1"], params["g1"], params["b1"], params["m1"], params["v1"], 0)
    t = cbm(t, params["w3"], params["g2"], params["b2"], params["m2"], params["v2"], 1)
    return x + t


def make_params(key, C):
    ks = jax.random.split(key, 10)
    return {
        "w1": jax.random.normal(ks[0], (C, C, 1, 1), jnp.float32) * 0.3,
        "g1": 1.0 + 0.1 * jax.random.normal(ks[1], (C,), jnp.float32),
        "b1": 0.1 * jax.random.normal(ks[2], (C,), jnp.float32),
        "m1": 0.1 * jax.random.normal(ks[3], (C,), jnp.float32),
        "v1": 0.5 + jnp.abs(jax.random.normal(ks[4], (C,), jnp.float32)),
        "w3": jax.random.normal(ks[5], (C, C, 3, 3), jnp.float32) * 0.1,
        "g2": 1.0 + 0.1 * jax.random.normal(ks[6], (C,), jnp.float32),
        "b2": 0.1 * jax.random.normal(ks[7], (C,), jnp.float32),
        "m2": 0.1 * jax.random.normal(ks[8], (C,), jnp.float32),
        "v2": 0.5 + jnp.abs(jax.random.normal(ks[9], (C,), jnp.float32)),
    }


if __name__ == "__main__":
    key = jax.random.PRNGKey(0)
    kx, kp = jax.random.split(key)

    N, C, H, W = 2, 4, 16, 16
    x = jax.random.normal(kx, (N, C, H, W), jnp.float32)
    params = make_params(kp, C)

    ref = smallblock_ref(x, params)

    # f32 path (tolerance leaves room for the approximate EUP reciprocal in fast-Mish)
    out = jax.block_until_ready(smallblock_pallas_nchw(x, params))
    assert out.shape == ref.shape == (N, C, H, W)
    err = float(jnp.max(jnp.abs(out - ref)))
    assert jnp.allclose(out, ref, atol=1e-2, rtol=1e-2), err

    # bf16 MXU inputs (f32 accumulation + f32 elementwise inside) — the recommended
    # default on v6e/v7x for production use.
    out_bf = jax.block_until_ready(
        smallblock_pallas_nchw(x, params, compute_dtype=jnp.bfloat16))
    err_bf = float(jnp.max(jnp.abs(out_bf - ref)))
    assert jnp.allclose(out_bf, ref, atol=5e-2, rtol=5e-2), err_bf

    print("KERNEL_OK")
</pallas_src>

<mosaic_0001>
module attributes {stable_mosaic.version = 11 : i64} {
  func.func @_smallblock_kernel(%arg0: i32, %arg1: memref<1x16x16x128xf32, #tpu.memory_space<vmem>>, %arg2: memref<128x128xf32, #tpu.memory_space<vmem>>, %arg3: memref<1x128xf32, #tpu.memory_space<vmem>>, %arg4: memref<9x128x128xf32, #tpu.memory_space<vmem>>, %arg5: memref<1x128xf32, #tpu.memory_space<vmem>>, %arg6: memref<1x16x16x128xf32, #tpu.memory_space<vmem>>) attributes {dimension_semantics = [#tpu.dimension_semantics<parallel>], iteration_bounds = array<i64: 2>, scalar_prefetch = 0 : i64, scratch_operands = 0 : i64, tpu.core_type = #tpu.core_type<tc>, window_params = [{transform_indices = @transform_0, window_bounds = array<i64: 1, 16, 16, 128>}, {pipeline_mode = #tpu.pipeline_mode<synchronous>, transform_indices = @transform_1, window_bounds = array<i64: 128, 128>}, {pipeline_mode = #tpu.pipeline_mode<synchronous>, transform_indices = @transform_2, window_bounds = array<i64: 1, 128>}, {pipeline_mode = #tpu.pipeline_mode<synchronous>, transform_indices = @transform_3, window_bounds = array<i64: 9, 128, 128>}, {pipeline_mode = #tpu.pipeline_mode<synchronous>, transform_indices = @transform_4, window_bounds = array<i64: 1, 128>}, {transform_indices = @transform_5, window_bounds = array<i64: 1, 16, 16, 128>}]} {
    %c0 = arith.constant 0 : index
    %c0_0 = arith.constant 0 : index
    %c0_1 = arith.constant 0 : index
    %c0_2 = arith.constant 0 : index
    %0 = vector.load %arg1[%c0, %c0_0, %c0_1, %c0_2] : memref<1x16x16x128xf32, #tpu.memory_space<vmem>>, vector<1x16x16x128xf32>
    %1 = vector.shape_cast %0 : vector<1x16x16x128xf32> to vector<256x128xf32>
    %c0_3 = arith.constant 0 : index
    %c0_4 = arith.constant 0 : index
    %2 = vector.load %arg2[%c0_3, %c0_4] : memref<128x128xf32, #tpu.memory_space<vmem>>, vector<128x128xf32>
    %cst = arith.constant dense<0.000000e+00> : vector<256x128xf32>
    %3 = tpu.matmul %1, %2, %cst {dimension_numbers = #tpu.dot_dimension_numbers<[1], [0], [0], [1], [0, 0, 1, 1], [], []>} : vector<256x128xf32>, vector<128x128xf32>, vector<256x128xf32> -> vector<256x128xf32>
    %c0_5 = arith.constant 0 : index
    %c0_6 = arith.constant 0 : index
    %4 = vector.load %arg3[%c0_5, %c0_6] : memref<1x128xf32, #tpu.memory_space<vmem>>, vector<1x128xf32>
    %5 = vector.broadcast %4 : vector<1x128xf32> to vector<256x128xf32>
    %6 = arith.addf %3, %5 : vector<256x128xf32>
    %cst_7 = arith.constant 2.000000e+01 : f32
    %7 = vector.broadcast %cst_7 : f32 to vector<256x128xf32>
    %8 = arith.minimumf %6, %7 : vector<256x128xf32>
    %9 = math.exp %8 : vector<256x128xf32>
    %cst_8 = arith.constant 2.000000e+00 : f32
    %10 = vector.broadcast %cst_8 : f32 to vector<256x128xf32>
    %11 = arith.addf %9, %10 : vector<256x128xf32>
    %12 = arith.mulf %9, %11 : vector<256x128xf32>
    %cst_9 = arith.constant 2.000000e+00 : f32
    %13 = vector.broadcast %cst_9 : f32 to vector<256x128xf32>
    %14 = arith.addf %12, %13 : vector<256x128xf32>
    %15 = tpu.reciprocal %14 {approx = true} : vector<256x128xf32> -> vector<256x128xf32>
    %16 = arith.mulf %12, %15 : vector<256x128xf32>
    %cst_10 = arith.constant 2.000000e+01 : f32
    %17 = vector.broadcast %cst_10 : f32 to vector<256x128xf32>
    %18 = arith.cmpf oge, %6, %17 : vector<256x128xf32>
    %cst_11 = arith.constant 1.000000e+00 : f32
    %19 = vector.broadcast %cst_11 : f32 to vector<256x128xf32>
    %20 = arith.select %18, %19, %16 : vector<256x128xi1>, vector<256x128xf32>
    %21 = arith.mulf %6, %20 : vector<256x128xf32>
    %22 = tpu.iota {dimensions = array<i32: 1>} : vector<1x16x16x1xi32>
    %23 = vector.shape_cast %22 : vector<1x16x16x1xi32> to vector<256x1xi32>
    %24 = tpu.iota {dimensions = array<i32: 2>} : vector<1x16x16x1xi32>
    %25 = vector.shape_cast %24 : vector<1x16x16x1xi32> to vector<256x1xi32>
    %c1_i32 = arith.constant 1 : i32
    %26 = vector.broadcast %c1_i32 : i32 to vector<256x1xi32>
    %27 = arith.cmpi sge, %23, %26 : vector<256x1xi32>
    %c14_i32 = arith.constant 14 : i32
    %28 = vector.broadcast %c14_i32 : i32 to vector<256x1xi32>
    %29 = arith.cmpi sle, %23, %28 : vector<256x1xi32>
    %c1_i32_12 = arith.constant 1 : i32
    %30 = vector.broadcast %c1_i32_12 : i32 to vector<256x1xi32>
    %31 = arith.cmpi sge, %25, %30 : vector<256x1xi32>
    %c14_i32_13 = arith.constant 14 : i32
    %32 = vector.broadcast %c14_i32_13 : i32 to vector<256x1xi32>
    %33 = arith.cmpi sle, %25, %32 : vector<256x1xi32>
    %cst_14 = arith.constant 0.000000e+00 : f32
    %34 = vector.broadcast %cst_14 : f32 to vector<256x128xf32>
    %c17_i32 = arith.constant 17 : i32
    %35 = tpu.dynamic_rotate %21 by %c17_i32 dim 0 : vector<256x128xf32>, i32 -> vector<256x128xf32>
    %36 = arith.andi %27, %31 : vector<256x1xi1>
    %cst_15 = arith.constant 0.000000e+00 : f32
    %37 = vector.shape_cast %36 : vector<256x1xi1> to vector<256x1xi1>
    %38 = vector.broadcast %37 : vector<256x1xi1> to vector<256x128xi1>
    %39 = vector.broadcast %cst_15 : f32 to vector<256x128xf32>
    %40 = arith.select %38, %35, %39 : vector<256x128xi1>, vector<256x128xf32>
    %c0_16 = arith.constant 0 : index
    %c0_17 = arith.constant 0 : index
    %c0_18 = arith.constant 0 : index
    %41 = vector.load %arg4[%c0_16, %c0_17, %c0_18] : memref<9x128x128xf32, #tpu.memory_space<vmem>>, vector<1x128x128xf32>
    %42 = vector.shape_cast %41 : vector<1x128x128xf32> to vector<128x128xf32>
    %cst_19 = arith.constant dense<0.000000e+00> : vector<256x128xf32>
    %43 = tpu.matmul %40, %42, %cst_19 {dimension_numbers = #tpu.dot_dimension_numbers<[1], [0], [0], [1], [0, 0, 1, 1], [], []>} : vector<256x128xf32>, vector<128x128xf32>, vector<256x128xf32> -> vector<256x128xf32>
    %44 = arith.addf %34, %43 : vector<256x128xf32>
    %c16_i32 = arith.constant 16 : i32
    %45 = tpu.dynamic_rotate %21 by %c16_i32 dim 0 : vector<256x128xf32>, i32 -> vector<256x128xf32>
    %cst_20 = arith.constant 0.000000e+00 : f32
    %46 = vector.shape_cast %27 : vector<256x1xi1> to vector<256x1xi1>
    %47 = vector.broadcast %46 : vector<256x1xi1> to vector<256x128xi1>
    %48 = vector.broadcast %cst_20 : f32 to vector<256x128xf32>
    %49 = arith.select %47, %45, %48 : vector<256x128xi1>, vector<256x128xf32>
    %c1 = arith.constant 1 : index
    %c0_21 = arith.constant 0 : index
    %c0_22 = arith.constant 0 : index
    %50 = vector.load %arg4[%c1, %c0_21, %c0_22] : memref<9x128x128xf32, #tpu.memory_space<vmem>>, vector<1x128x128xf32>
    %51 = vector.shape_cast %50 : vector<1x128x128xf32> to vector<128x128xf32>
    %cst_23 = arith.constant dense<0.000000e+00> : vector<256x128xf32>
    %52 = tpu.matmul %49, %51, %cst_23 {dimension_numbers = #tpu.dot_dimension_numbers<[1], [0], [0], [1], [0, 0, 1, 1], [], []>} : vector<256x128xf32>, vector<128x128xf32>, vector<256x128xf32> -> vector<256x128xf32>
    %53 = arith.addf %44, %52 : vector<256x128xf32>
    %c15_i32 = arith.constant 15 : i32
    %54 = tpu.dynamic_rotate %21 by %c15_i32 dim 0 : vector<256x128xf32>, i32 -> vector<256x128xf32>
    %55 = arith.andi %27, %33 : vector<256x1xi1>
    %cst_24 = arith.constant 0.000000e+00 : f32
    %56 = vector.shape_cast %55 : vector<256x1xi1> to vector<256x1xi1>
    %57 = vector.broadcast %56 : vector<256x1xi1> to vector<256x128xi1>
    %58 = vector.broadcast %cst_24 : f32 to vector<256x128xf32>
    %59 = arith.select %57, %54, %58 : vector<256x128xi1>, vector<256x128xf32>
    %c2 = arith.constant 2 : index
    %c0_25 = arith.constant 0 : index
    %c0_26 = arith.constant 0 : index
    %60 = vector.load %arg4[%c2, %c0_25, %c0_26] : memref<9x128x128xf32, #tpu.memory_space<vmem>>, vector<1x128x128xf32>
    %61 = vector.shape_cast %60 : vector<1x128x128xf32> to vector<128x128xf32>
    %cst_27 = arith.constant dense<0.000000e+00> : vector<256x128xf32>
    %62 = tpu.matmul %59, %61, %cst_27 {dimension_numbers = #tpu.dot_dimension_numbers<[1], [0], [0], [1], [0, 0, 1, 1], [], []>} : vector<256x128xf32>, vector<128x128xf32>, vector<256x128xf32> -> vector<256x128xf32>
    %63 = arith.addf %53, %62 : vector<256x128xf32>
    %c1_i32_28 = arith.constant 1 : i32
    %64 = tpu.dynamic_rotate %21 by %c1_i32_28 dim 0 : vector<256x128xf32>, i32 -> vector<256x128xf32>
    %cst_29 = arith.constant 0.000000e+00 : f32
    %65 = vector.shape_cast %31 : vector<256x1xi1> to vector<256x1xi1>
    %66 = vector.broadcast %65 : vector<256x1xi1> to vector<256x128xi1>
    %67 = vector.broadcast %cst_29 : f32 to vector<256x128xf32>
    %68 = arith.select %66, %64, %67 : vector<256x128xi1>, vector<256x128xf32>
    %c3 = arith.constant 3 : index
    %c0_30 = arith.constant 0 : index
    %c0_31 = arith.constant 0 : index
    %69 = vector.load %arg4[%c3, %c0_30, %c0_31] : memref<9x128x128xf32, #tpu.memory_space<vmem>>, vector<1x128x128xf32>
    %70 = vector.shape_cast %69 : vector<1x128x128xf32> to vector<128x128xf32>
    %cst_32 = arith.constant dense<0.000000e+00> : vector<256x128xf32>
    %71 = tpu.matmul %68, %70, %cst_32 {dimension_numbers = #tpu.dot_dimension_numbers<[1], [0], [0], [1], [0, 0, 1, 1], [], []>} : vector<256x128xf32>, vector<128x128xf32>, vector<256x128xf32> -> vector<256x128xf32>
    %72 = arith.addf %63, %71 : vector<256x128xf32>
    %c4 = arith.constant 4 : index
    %c0_33 = arith.constant 0 : index
    %c0_34 = arith.constant 0 : index
    %73 = vector.load %arg4[%c4, %c0_33, %c0_34] : memref<9x128x128xf32, #tpu.memory_space<vmem>>, vector<1x128x128xf32>
    %74 = vector.shape_cast %73 : vector<1x128x128xf32> to vector<128x128xf32>
    %cst_35 = arith.constant dense<0.000000e+00> : vector<256x128xf32>
    %75 = tpu.matmul %21, %74, %cst_35 {dimension_numbers = #tpu.dot_dimension_numbers<[1], [0], [0], [1], [0, 0, 1, 1], [], []>} : vector<256x128xf32>, vector<128x128xf32>, vector<256x128xf32> -> vector<256x128xf32>
    %76 = arith.addf %72, %75 : vector<256x128xf32>
    %c255_i32 = arith.constant 255 : i32
    %77 = tpu.dynamic_rotate %21 by %c255_i32 dim 0 : vector<256x128xf32>, i32 -> vector<256x128xf32>
    %cst_36 = arith.constant 0.000000e+00 : f32
    %78 = vector.shape_cast %33 : vector<256x1xi1> to vector<256x1xi1>
    %79 = vector.broadcast %78 : vector<256x1xi1> to vector<256x128xi1>
    %80 = vector.broadcast %cst_36 : f32 to vector<256x128xf32>
    %81 = arith.select %79, %77, %80 : vector<256x128xi1>, vector<256x128xf32>
    %c5 = arith.constant 5 : index
    %c0_37 = arith.constant 0 : index
    %c0_38 = arith.constant 0 : index
    %82 = vector.load %arg4[%c5, %c0_37, %c0_38] : memref<9x128x128xf32, #tpu.memory_space<vmem>>, vector<1x128x128xf32>
    %83 = vector.shape_cast %82 : vector<1x128x128xf32> to vector<128x128xf32>
    %cst_39 = arith.constant dense<0.000000e+00> : vector<256x128xf32>
    %84 = tpu.matmul %81, %83, %cst_39 {dimension_numbers = #tpu.dot_dimension_numbers<[1], [0], [0], [1], [0, 0, 1, 1], [], []>} : vector<256x128xf32>, vector<128x128xf32>, vector<256x128xf32> -> vector<256x128xf32>
    %85 = arith.addf %76, %84 : vector<256x128xf32>
    %c241_i32 = arith.constant 241 : i32
    %86 = tpu.dynamic_rotate %21 by %c241_i32 dim 0 : vector<256x128xf32>, i32 -> vector<256x128xf32>
    %87 = arith.andi %29, %31 : vector<256x1xi1>
    %cst_40 = arith.constant 0.000000e+00 : f32
    %88 = vector.shape_cast %87 : vector<256x1xi1> to vector<256x1xi1>
    %89 = vector.broadcast %88 : vector<256x1xi1> to vector<256x128xi1>
    %90 = vector.broadcast %cst_40 : f32 to vector<256x128xf32>
    %91 = arith.select %89, %86, %90 : vector<256x128xi1>, vector<256x128xf32>
    %c6 = arith.constant 6 : index
    %c0_41 = arith.constant 0 : index
    %c0_42 = arith.constant 0 : index
    %92 = vector.load %arg4[%c6, %c0_41, %c0_42] : memref<9x128x128xf32, #tpu.memory_space<vmem>>, vector<1x128x128xf32>
    %93 = vector.shape_cast %92 : vector<1x128x128xf32> to vector<128x128xf32>
    %cst_43 = arith.constant dense<0.000000e+00> : vector<256x128xf32>
    %94 = tpu.matmul %91, %93, %cst_43 {dimension_numbers = #tpu.dot_dimension_numbers<[1], [0], [0], [1], [0, 0, 1, 1], [], []>} : vector<256x128xf32>, vector<128x128xf32>, vector<256x128xf32> -> vector<256x128xf32>
    %95 = arith.addf %85, %94 : vector<256x128xf32>
    %c240_i32 = arith.constant 240 : i32
    %96 = tpu.dynamic_rotate %21 by %c240_i32 dim 0 : vector<256x128xf32>, i32 -> vector<256x128xf32>
    %cst_44 = arith.constant 0.000000e+00 : f32
    %97 = vector.shape_cast %29 : vector<256x1xi1> to vector<256x1xi1>
    %98 = vector.broadcast %97 : vector<256x1xi1> to vector<256x128xi1>
    %99 = vector.broadcast %cst_44 : f32 to vector<256x128xf32>
    %100 = arith.select %98, %96, %99 : vector<256x128xi1>, vector<256x128xf32>
    %c7 = arith.constant 7 : index
    %c0_45 = arith.constant 0 : index
    %c0_46 = arith.constant 0 : index
    %101 = vector.load %arg4[%c7, %c0_45, %c0_46] : memref<9x128x128xf32, #tpu.memory_space<vmem>>, vector<1x128x128xf32>
    %102 = vector.shape_cast %101 : vector<1x128x128xf32> to vector<128x128xf32>
    %cst_47 = arith.constant dense<0.000000e+00> : vector<256x128xf32>
    %103 = tpu.matmul %100, %102, %cst_47 {dimension_numbers = #tpu.dot_dimension_numbers<[1], [0], [0], [1], [0, 0, 1, 1], [], []>} : vector<256x128xf32>, vector<128x128xf32>, vector<256x128xf32> -> vector<256x128xf32>
    %104 = arith.addf %95, %103 : vector<256x128xf32>
    %c239_i32 = arith.constant 239 : i32
    %105 = tpu.dynamic_rotate %21 by %c239_i32 dim 0 : vector<256x128xf32>, i32 -> vector<256x128xf32>
    %106 = arith.andi %29, %33 : vector<256x1xi1>
    %cst_48 = arith.constant 0.000000e+00 : f32
    %107 = vector.shape_cast %106 : vector<256x1xi1> to vector<256x1xi1>
    %108 = vector.broadcast %107 : vector<256x1xi1> to vector<256x128xi1>
    %109 = vector.broadcast %cst_48 : f32 to vector<256x128xf32>
    %110 = arith.select %108, %105, %109 : vector<256x128xi1>, vector<256x128xf32>
    %c8 = arith.constant 8 : index
    %c0_49 = arith.constant 0 : index
    %c0_50 = arith.constant 0 : index
    %111 = vector.load %arg4[%c8, %c0_49, %c0_50] : memref<9x128x128xf32, #tpu.memory_space<vmem>>, vector<1x128x128xf32>
    %112 = vector.shape_cast %111 : vector<1x128x128xf32> to vector<128x128xf32>
    %cst_51 = arith.constant dense<0.000000e+00> : vector<256x128xf32>
    %113 = tpu.matmul %110, %112, %cst_51 {dimension_numbers = #tpu.dot_dimension_numbers<[1], [0], [0], [1], [0, 0, 1, 1], [], []>} : vector<256x128xf32>, vector<128x128xf32>, vector<256x128xf32> -> vector<256x128xf32>
    %114 = arith.addf %104, %113 : vector<256x128xf32>
    %c0_52 = arith.constant 0 : index
    %c0_53 = arith.constant 0 : index
    %115 = vector.load %arg5[%c0_52, %c0_53] : memref<1x128xf32, #tpu.memory_space<vmem>>, vector<1x128xf32>
    %116 = vector.broadcast %115 : vector<1x128xf32> to vector<256x128xf32>
    %117 = arith.addf %114, %116 : vector<256x128xf32>
    %cst_54 = arith.constant 2.000000e+01 : f32
    %118 = vector.broadcast %cst_54 : f32 to vector<256x128xf32>
    %119 = arith.minimumf %117, %118 : vector<256x128xf32>
    %120 = math.exp %119 : vector<256x128xf32>
    %cst_55 = arith.constant 2.000000e+00 : f32
    %121 = vector.broadcast %cst_55 : f32 to vector<256x128xf32>
    %122 = arith.addf %120, %121 : vector<256x128xf32>
    %123 = arith.mulf %120, %122 : vector<256x128xf32>
    %cst_56 = arith.constant 2.000000e+00 : f32
    %124 = vector.broadcast %cst_56 : f32 to vector<256x128xf32>
    %125 = arith.addf %123, %124 : vector<256x128xf32>
    %126 = tpu.reciprocal %125 {approx = true} : vector<256x128xf32> -> vector<256x128xf32>
    %127 = arith.mulf %123, %126 : vector<256x128xf32>
    %cst_57 = arith.constant 2.000000e+01 : f32
    %128 = vector.broadcast %cst_57 : f32 to vector<256x128xf32>
    %129 = arith.cmpf oge, %117, %128 : vector<256x128xf32>
    %cst_58 = arith.constant 1.000000e+00 : f32
    %130 = vector.broadcast %cst_58 : f32 to vector<256x128xf32>
    %131 = arith.select %129, %130, %127 : vector<256x128xi1>, vector<256x128xf32>
    %132 = arith.mulf %117, %131 : vector<256x128xf32>
    %133 = arith.addf %132, %1 : vector<256x128xf32>
    %134 = vector.shape_cast %133 : vector<256x128xf32> to vector<1x16x16x128xf32>
    %c0_59 = arith.constant 0 : index
    %c0_60 = arith.constant 0 : index
    %c0_61 = arith.constant 0 : index
    %c0_62 = arith.constant 0 : index
    %135 = vector.load %arg6[%c0_59, %c0_60, %c0_61, %c0_62] : memref<1x16x16x128xf32, #tpu.memory_space<vmem>>, vector<1x16x16x128xf32>
    tpu.vector_store %arg6[%c0_59, %c0_60, %c0_61, %c0_62], %134 {strides = array<i32>} : memref<1x16x16x128xf32, #tpu.memory_space<vmem>>, vector<1x16x16x128xf32>,
    return
  }
  func.func @transform_0(%arg0: i32) -> (i32, i32, i32, i32) {
    %c0_i32 = arith.constant 0 : i32
    %c0_i32_0 = arith.constant 0 : i32
    %c0_i32_1 = arith.constant 0 : i32
    %c0_i32_2 = arith.constant 0 : i32
    return %arg0, %c0_i32, %c0_i32_0, %c0_i32_1 : i32, i32, i32, i32
  }
  func.func @transform_1(%arg0: i32) -> (i32, i32) {
    %c0_i32 = arith.constant 0 : i32
    %c0_i32_0 = arith.constant 0 : i32
    %c0_i32_1 = arith.constant 0 : i32
    return %c0_i32, %c0_i32_0 : i32, i32
  }
  func.func @transform_2(%arg0: i32) -> (i32, i32) {
    %c0_i32 = arith.constant 0 : i32
    %c0_i32_0 = arith.constant 0 : i32
    %c0_i32_1 = arith.constant 0 : i32
    return %c0_i32, %c0_i32_0 : i32, i32
  }
  func.func @transform_3(%arg0: i32) -> (i32, i32, i32) {
    %c0_i32 = arith.constant 0 : i32
    %c0_i32_0 = arith.constant 0 : i32
    %c0_i32_1 = arith.constant 0 : i32
    %c0_i32_2 = arith.constant 0 : i32
    return %c0_i32, %c0_i32_0, %c0_i32_1 : i32, i32, i32
  }
  func.func @transform_4(%arg0: i32) -> (i32, i32) {
    %c0_i32 = arith.constant 0 : i32
    %c0_i32_0 = arith.constant 0 : i32
    %c0_i32_1 = arith.constant 0 : i32
    return %c0_i32, %c0_i32_0 : i32, i32
  }
  func.func @transform_5(%arg0: i32) -> (i32, i32, i32, i32) {
    %c0_i32 = arith.constant 0 : i32
    %c0_i32_0 = arith.constant 0 : i32
    %c0_i32_1 = arith.constant 0 : i32
    %c0_i32_2 = arith.constant 0 : i32
    return %arg0, %c0_i32, %c0_i32_0, %c0_i32_1 : i32, i32, i32, i32
  }
}

</mosaic_0001>

<llo_original>
// kernel: smallblock_pallas_nhwc.1
$region0: #{smallblock_pallas_nhwc.1}
  #allocation0 [shape = 'u32[]', space=smem, size = 0x4, offset = 0x4, fixed_abs, tag = 'smem constant byte address 0x4 - core index']
  #allocation1 [shape = 'u32[144,128]{1,0:T(1,128)}', space=vmem, size = 0x12000, scoped, tag = 'internal scratch']
  %s0 = inlined_call_operand.vmem [shape: f32[2,16,16,128], index: 0, kind: input, shape index: {}, may-alias: {0,5}]
  %s1 = inlined_call_operand.vmem [shape: f32[128,128], index: 1, kind: input, shape index: {}]
  %s2 = inlined_call_operand.vmem [shape: f32[1,128], index: 2, kind: input, shape index: {}]
  %s3 = inlined_call_operand.vmem [shape: f32[9,128,128], index: 3, kind: input, shape index: {}]
  %s4 = inlined_call_operand.vmem [shape: f32[1,128], index: 4, kind: input, shape index: {}]
  %s5 = inlined_call_operand.vmem [shape: f32[2,16,16,128], index: 5, kind: output, shape index: {}, may-alias: {0,5}]
  %s6 = sld [smem:[#allocation0]]
  $region53: #{smallblock_pallas_nhwc.1} parent=0
    _
  %s8 = ssub.s32 1, %s6
  %s9 = scalar_select 0, %s8, %s6
  loop: start=0, step=1, limit=4
  $region2: #{smallblock_pallas_nhwc.1} parent=0 // loop_pre_header
    _
  $region3: #{smallblock_pallas_nhwc.1} parent=0 // loop_header
    %s11 = sphi 0, %s15
    %p12 = scmp.ge.s32.totalorder %s11, 4
    %s21 = sphi 0, %s23
    %s24 = sphi 0, %s21
    %s25 = sphi 0, %s24
    %s41 = sphi 0, %s25
    %s45 = sphi 0, %s45
    %s47 = sphi 0, %s45
    %s48 = sphi 0, %s47
    %s62 = sphi 0, %s48
    %s66 = sphi 0, %s66
    %s68 = sphi 0, %s66
    %s69 = sphi 0, %s68
    %s83 = sphi 0, %s69
    %s87 = sphi 0, %s87
    %s89 = sphi 0, %s87
    %s90 = sphi 0, %s89
    %s104 = sphi 0, %s90
    %s108 = sphi 0, %s108
    %s110 = sphi 0, %s108
    %s111 = sphi 0, %s110
    %s125 = sphi 0, %s111
    %s131 = sphi 0, %s133
    %s134 = sphi 0, %s131
    %s135 = sphi 0, %s134
    %s151 = sphi 0, %s135
  $region4: #{smallblock_pallas_nhwc.1} parent=0 // loop_header_branch
    %14 = sbr.rel (%p12) target = $region8
  $region5: #{smallblock_pallas_nhwc.1} parent=0 // loop_body
    %s16 = ssub.s32 %s11, 1
    %s17 = ssub.s32 %s11, 2
    %s18 = sadd.s32 %s11, 1
    %s19 = ssub.s32 %s11, %s18
    %p20 = scmp.eq.s32.totalorder %s19, 0
    %s22 = sadd.s32 %s21, 1
    %s23 = scalar_select %p20, %s21, %s22
    %p26 = pneg %p20
    %p27 = scmp.eq.s32.totalorder %s11, 1
    %p28 = por %p26, %p27
    %p29 = scmp.ne.s32.totalorder %s21, %s24
    %p30 = scmp.eq.s32.totalorder %s11, 0
    %p31 = por %p29, %p30
    %p32 = scmp.ne.s32.totalorder %s21, %s24
    %p33 = scmp.eq.s32.totalorder %s16, 1
    %p34 = por %p32, %p33
    %p35 = scmp.ne.s32.totalorder %s24, %s25
    %p36 = scmp.eq.s32.totalorder %s16, 0
    %p37 = por %p35, %p36
    %p38 = scmp.ne.s32.totalorder %s24, %s25
    %p39 = scmp.eq.s32.totalorder %s17, 1
    %p40 = por %p38, %p39
    %p42 = scmp.ne.s32.totalorder %s25, %s41
    %p43 = scmp.eq.s32.totalorder %s17, 0
    %p44 = por %p42, %p43
    %s46 = sadd.s32 %s45, 1
    %p49 = scmp.eq.s32.totalorder %s11, 1
    %p50 = scmp.ne.s32.totalorder %s45, %s47
    %p51 = scmp.eq.s32.totalorder %s11, 0
    %p52 = por %p50, %p51
    %p53 = scmp.ne.s32.totalorder %s45, %s47
    %p54 = scmp.eq.s32.totalorder %s16, 1
    %p55 = por %p53, %p54
    %p56 = scmp.ne.s32.totalorder %s47, %s48
    %p57 = scmp.eq.s32.totalorder %s16, 0
    %p58 = por %p56, %p57
    %p59 = scmp.ne.s32.totalorder %s47, %s48
    %p60 = scmp.eq.s32.totalorder %s17, 1
    %p61 = por %p59, %p60
    %p63 = scmp.ne.s32.totalorder %s48, %s62
    %p64 = scmp.eq.s32.totalorder %s17, 0
    %p65 = por %p63, %p64
    %s67 = sadd.s32 %s66, 1
    %p70 = scmp.eq.s32.totalorder %s11, 1
    %p71 = scmp.ne.s32.totalorder %s66, %s68
    %p72 = scmp.eq.s32.totalorder %s11, 0
    %p73 = por %p71, %p72
    %p74 = scmp.ne.s32.totalorder %s66, %s68
    %p75 = scmp.eq.s32.totalorder %s16, 1
    %p76 = por %p74, %p75
    %p77 = scmp.ne.s32.totalorder %s68, %s69
    %p78 = scmp.eq.s32.totalorder %s16, 0
    %p79 = por %p77, %p78
    %p80 = scmp.ne.s32.totalorder %s68, %s69
    %p81 = scmp.eq.s32.totalorder %s17, 1
    %p82 = por %p80, %p81
    %p84 = scmp.ne.s32.totalorder %s69, %s83
    %p85 = scmp.eq.s32.totalorder %s17, 0
    %p86 = por %p84, %p85
    %s88 = sadd.s32 %s87, 1
    %p91 = scmp.eq.s32.totalorder %s11, 1
    %p92 = scmp.ne.s32.totalorder %s87, %s89
    %p93 = scmp.eq.s32.totalorder %s11, 0
    %p94 = por %p92, %p93
    %p95 = scmp.ne.s32.totalorder %s87, %s89
    %p96 = scmp.eq.s32.totalorder %s16, 1
    %p97 = por %p95, %p96
    %p98 = scmp.ne.s32.totalorder %s89, %s90
    %p99 = scmp.eq.s32.totalorder %s16, 0
    %p100 = por %p98, %p99
    %p101 = scmp.ne.s32.totalorder %s89, %s90
    %p102 = scmp.eq.s32.totalorder %s17, 1
    %p103 = por %p101, %p102
    %p105 = scmp.ne.s32.totalorder %s90, %s104
    %p106 = scmp.eq.s32.totalorder %s17, 0
    %p107 = por %p105, %p106
    %s109 = sadd.s32 %s108, 1
    %p112 = scmp.eq.s32.totalorder %s11, 1
    %p113 = scmp.ne.s32.totalorder %s108, %s110
    %p114 = scmp.eq.s32.totalorder %s11, 0
    %p115 = por %p113, %p114
    %p116 = scmp.ne.s32.totalorder %s108, %s110
    %p117 = scmp.eq.s32.totalorder %s16, 1
    %p118 = por %p116, %p117
    %p119 = scmp.ne.s32.totalorder %s110, %s111
    %p120 = scmp.eq.s32.totalorder %s16, 0
    %p121 = por %p119, %p120
    %p122 = scmp.ne.s32.totalorder %s110, %s111
    %p123 = scmp.eq.s32.totalorder %s17, 1
    %p124 = por %p122, %p123
    %p126 = scmp.ne.s32.totalorder %s111, %s125
    %p127 = scmp.eq.s32.totalorder %s17, 0
    %p128 = por %p126, %p127
    %s129 = ssub.s32 %s11, %s18
    %p130 = scmp.eq.s32.totalorder %s129, 0
    %s132 = sadd.s32 %s131, 1
    %s133 = scalar_select %p130, %s131, %s132
    %p136 = pneg %p130
    %p137 = scmp.eq.s32.totalorder %s11, 1
    %p138 = por %p136, %p137
    %p139 = scmp.ne.s32.totalorder %s131, %s134
    %p140 = scmp.eq.s32.totalorder %s11, 0
    %p141 = por %p139, %p140
    %p142 = scmp.ne.s32.totalorder %s131, %s134
    %p143 = scmp.eq.s32.totalorder %s16, 1
    %p144 = por %p142, %p143
    %p145 = scmp.ne.s32.totalorder %s134, %s135
    %p146 = scmp.eq.s32.totalorder %s16, 0
    %p147 = por %p145, %p146
    %p148 = scmp.ne.s32.totalorder %s134, %s135
    %p149 = scmp.eq.s32.totalorder %s17, 1
    %p150 = por %p148, %p149
    %p152 = scmp.ne.s32.totalorder %s135, %s151
    %p153 = scmp.eq.s32.totalorder %s17, 0
    %p154 = por %p152, %p153
    %p155 = scmp.le.s32.totalorder 1, %s11
    %p156 = scmp.lt.s32.totalorder %s11, 3
    %p157 = pnand %p155, %p156
    %p158 = pneg %p157
    // Predicated region
    $region9: #{smallblock_pallas_nhwc.1} parent=5 // pred_check
      _
    $region10: #{smallblock_pallas_nhwc.1} parent=5 // pred_check_branch
      %160 = sbr.rel (%p157) target = $region12
    $region11: #{smallblock_pallas_nhwc.1} parent=5 // pred_region
      %s161 = ssub.s32 %s11, 1
      // Predicated region
      $region13: #{smallblock_pallas_nhwc.1} parent=11 // pred_check
        %p162 = pneg %p58
      $region14: #{smallblock_pallas_nhwc.1} parent=11 // pred_check_branch
        %164 = sbr.rel (%p162) target = $region16
      $region15: #{smallblock_pallas_nhwc.1} parent=11 // pred_region
        _
      $region16: #{smallblock_pallas_nhwc.1} parent=11 // pred_fallthru
        _
      // Predicated region
      $region17: #{smallblock_pallas_nhwc.1} parent=11 // pred_check
        %p165 = pneg %p79
      $region18: #{smallblock_pallas_nhwc.1} parent=11 // pred_check_branch
        %167 = sbr.rel (%p165) target = $region20
      $region19: #{smallblock_pallas_nhwc.1} parent=11 // pred_region
        _
      $region20: #{smallblock_pallas_nhwc.1} parent=11 // pred_fallthru
        _
      // Predicated region
      $region21: #{smallblock_pallas_nhwc.1} parent=11 // pred_check
        %p168 = pneg %p100
      $region22: #{smallblock_pallas_nhwc.1} parent=11 // pred_check_branch
        %170 = sbr.rel (%p168) target = $region24
      $region23: #{smallblock_pallas_nhwc.1} parent=11 // pred_region
        _
      $region24: #{smallblock_pallas_nhwc.1} parent=11 // pred_fallthru
        _
      // Predicated region
      $region25: #{smallblock_pallas_nhwc.1} parent=11 // pred_check
        %p171 = pneg %p121
      $region26: #{smallblock_pallas_nhwc.1} parent=11 // pred_check_branch
        %173 = sbr.rel (%p171) target = $region28
      $region27: #{smallblock_pallas_nhwc.1} parent=11 // pred_region
        _
      $region28: #{smallblock_pallas_nhwc.1} parent=11 // pred_fallthru
        _
    $region12: #{smallblock_pallas_nhwc.1} parent=5 // pred_fallthru
      _
    %p174 = scmp.lt.s32.totalorder %s11, 2
    // Predicated region
    $region29: #{smallblock_pallas_nhwc.1} parent=5 // pred_check
      %p175 = pneg %p174
    $region30: #{smallblock_pallas_nhwc.1} parent=5 // pred_check_branch
      %177 = sbr.rel (%p175) target = $region32
    $region31: #{smallblock_pallas_nhwc.1} parent=5 // pred_region
      // Predicated region
      $region33: #{smallblock_pallas_nhwc.1} parent=31 // pred_check
        %p178 = pneg %p31
      $region34: #{smallblock_pallas_nhwc.1} parent=31 // pred_check_branch
        %180 = sbr.rel (%p178) target = $region36
      $region35: #{smallblock_pallas_nhwc.1} parent=31 // pred_region
        %p181 = scmp.lt.s32.totalorder %s11, 1
        %s182 = scalar_select %p181, %s11, 1
        %s183 = smul.addr %s182, 32
        %s184 = smul.addr %s183, 8
        %s185 = scalar_lea.vmem %s0, %s184
      $region36: #{smallblock_pallas_nhwc.1} parent=31 // pred_fallthru
        _
    $region32: #{smallblock_pallas_nhwc.1} parent=5 // pred_fallthru
      _
    %p186 = scmp.le.s32.totalorder 1, %s11
    %p187 = scmp.lt.s32.totalorder %s11, 3
    %p188 = pnand %p186, %p187
    %p189 = pneg %p188
    // Predicated region
    $region37: #{smallblock_pallas_nhwc.1} parent=5 // pred_check
      _
    $region38: #{smallblock_pallas_nhwc.1} parent=5 // pred_check_branch
      %191 = sbr.rel (%p188) target = $region40
    $region39: #{smallblock_pallas_nhwc.1} parent=5 // pred_region
      %s192 = ssub.s32 %s11, 1
      %p193 = scmp.lt.s32.totalorder %s16, 1
      %s194 = scalar_select %p193, %s16, 1
      %s195 = smul.addr %s194, 32
      %s196 = smul.addr %s195, 8
      %s197 = scalar_lea.vmem %s0, %s196
      %p198 = pneg %p37
      %p199 = pneg %p34
      %p200 = pneg %p58
      %p201 = pneg %p55
      %p202 = pneg %p79
      %p203 = pneg %p76
      %p204 = pneg %p100
      %p205 = pneg %p97
      %p206 = pneg %p121
      %p207 = pneg %p118
      %p208 = pneg %p147
      %p209 = pneg %p144
      %p210 = scmp.lt.s32.totalorder %s16, 1
      %s211 = scalar_select %p210, %s16, 1
      %s212 = smul.addr %s211, 32
      %s213 = smul.addr %s212, 8
      %s214 = scalar_lea.vmem %s5, %s213
      %p215 = scmp.lt.s32.totalorder %s16, 1
      %s216 = scalar_select %p215, %s16, 1
      %s217 = smul.addr %s216, 32
      %s218 = smul.addr %s217, 8
      %s219 = scalar_lea.vmem %s0, %s218
      %p220 = scmp.lt.s32.totalorder %s16, 1
      %s221 = scalar_select %p220, %s16, 1
      %s222 = smul.addr %s221, 32
      %s223 = smul.addr %s222, 8
      %s224 = scalar_lea.vmem %s5, %s223
      %v225 = vld [vmem:[%s219] sm:$0xff]
      %v226 = vld [vmem:[%s219 + $0x8] sm:$0xff]
      %v227 = vld [vmem:[%s219 + $0x10] sm:$0xff]
      %v228 = vld [vmem:[%s219 + $0x18] sm:$0xff]
      %v229 = vld [vmem:[%s219 + $0x20] sm:$0xff]
      %v230 = vld [vmem:[%s219 + $0x28] sm:$0xff]
      %v231 = vld [vmem:[%s219 + $0x30] sm:$0xff]
      %v232 = vld [vmem:[%s219 + $0x38] sm:$0xff]
      %v233 = vld [vmem:[%s219 + $0x40] sm:$0xff]
      %v234 = vld [vmem:[%s219 + $0x48] sm:$0xff]
      %v235 = vld [vmem:[%s219 + $0x50] sm:$0xff]
      %v236 = vld [vmem:[%s219 + $0x58] sm:$0xff]
      %v237 = vld [vmem:[%s219 + $0x60] sm:$0xff]
      %v238 = vld [vmem:[%s219 + $0x68] sm:$0xff]
      %v239 = vld [vmem:[%s219 + $0x70] sm:$0xff]
      %v240 = vld [vmem:[%s219 + $0x78] sm:$0xff]
      %v241 = vld [vmem:[%s219 + $0x80] sm:$0xff]
      %v242 = vld [vmem:[%s219 + $0x88] sm:$0xff]
      %v243 = vld [vmem:[%s219 + $0x90] sm:$0xff]
      %v244 = vld [vmem:[%s219 + $0x98] sm:$0xff]
      %v245 = vld [vmem:[%s219 + $0xa0] sm:$0xff]
      %v246 = vld [vmem:[%s219 + $0xa8] sm:$0xff]
      %v247 = vld [vmem:[%s219 + $0xb0] sm:$0xff]
      %v248 = vld [vmem:[%s219 + $0xb8] sm:$0xff]
      %v249 = vld [vmem:[%s219 + $0xc0] sm:$0xff]
      %v250 = vld [vmem:[%s219 + $0xc8] sm:$0xff]
      %v251 = vld [vmem:[%s219 + $0xd0] sm:$0xff]
      %v252 = vld [vmem:[%s219 + $0xd8] sm:$0xff]
      %v253 = vld [vmem:[%s219 + $0xe0] sm:$0xff]
      %v254 = vld [vmem:[%s219 + $0xe8] sm:$0xff]
      %v255 = vld [vmem:[%s219 + $0xf0] sm:$0xff]
      %v256 = vld [vmem:[%s219 + $0xf8] sm:$0xff]
      %v257 = vld [vmem:[%s1] sm:$0xff]
      %v258 = vld [vmem:[%s1 + $0x8] sm:$0xff]
      %v259 = vld [vmem:[%s1 + $0x10] sm:$0xff]
      %v260 = vld [vmem:[%s1 + $0x18] sm:$0xff]
      %v261 = vld [vmem:[%s1 + $0x20] sm:$0xff]
      %v262 = vld [vmem:[%s1 + $0x28] sm:$0xff]
      %v263 = vld [vmem:[%s1 + $0x30] sm:$0xff]
      %v264 = vld [vmem:[%s1 + $0x38] sm:$0xff]
      %v265 = vld [vmem:[%s1 + $0x40] sm:$0xff]
      %v266 = vld [vmem:[%s1 + $0x48] sm:$0xff]
      %v267 = vld [vmem:[%s1 + $0x50] sm:$0xff]
      %v268 = vld [vmem:[%s1 + $0x58] sm:$0xff]
      %v269 = vld [vmem:[%s1 + $0x60] sm:$0xff]
      %v270 = vld [vmem:[%s1 + $0x68] sm:$0xff]
      %v271 = vld [vmem:[%s1 + $0x70] sm:$0xff]
      %v272 = vld [vmem:[%s1 + $0x78] sm:$0xff]
      %v273 = vld [vmem:[%s2] sm:$0x1]
      %v275 = vlaneseq
      %v276 = vshrl.u32 %v275, 7
      %v277 = vsub.s32 0, %v276
      %v278 = vrot.slane %v273, %v277
      %280 = vmatprep.subr.mxu0 0.0
      %281 = vmatpush1.msra.mxu0 %v257
      %282 = vmatprep.subr.mxu0 0.0
      %283 = vmatpush1.msra.mxu0 %v258
      %284 = vmatprep.subr.mxu0 0.0
      %285 = vmatpush1.msra.mxu0 %v259
      %286 = vmatprep.subr.mxu0 0.0
      %287 = vmatpush1.msra.mxu0 %v260
      %288 = vmatprep.subr.mxu0 0.0
      %289 = vmatpush1.msra.mxu0 %v261
      %290 = vmatprep.subr.mxu0 0.0
      %291 = vmatpush1.msra.mxu0 %v262
      %292 = vmatprep.subr.mxu0 0.0
      %293 = vmatpush1.msra.mxu0 %v263
      %294 = vmatprep.subr.mxu0 0.0
      %295 = vmatpush1.msra.mxu0 %v264
      %296 = vmatprep.subr.mxu0 0.0
      %297 = vmatpush1.msra.mxu0 %v265
      %298 = vmatprep.subr.mxu0 0.0
      %299 = vmatpush1.msra.mxu0 %v266
      %300 = vmatprep.subr.mxu0 0.0
      %301 = vmatpush1.msra.mxu0 %v267
      %302 = vmatprep.subr.mxu0 0.0
      %303 = vmatpush1.msra.mxu0 %v268
      %304 = vmatprep.subr.mxu0 0.0
      %305 = vmatpush1.msra.mxu0 %v269
      %306 = vmatprep.subr.mxu0 0.0
      %307 = vmatpush1.msra.mxu0 %v270
      %308 = vmatprep.subr.mxu0 0.0
      %309 = vmatpush1.msra.mxu0 %v271
      %310 = vmatprep.subr.mxu0 0.0
      %311 = vmatpush1.msra.mxu0 %v272
      %312 = vmatprep.subr.mxu0 0.0
      %313 = vmatpush1.msra.mxu0 0.0
      %314 = vmatprep.subr.mxu0 0.0
      %315 = vmatpush1.msra.mxu0 0.0
      %316 = vmatprep.subr.mxu0 0.0
      %317 = vmatpush1.msra.mxu0 0.0
      %318 = vmatprep.subr.mxu0 0.0
      %319 = vmatpush1.msra.mxu0 0.0
      %320 = vmatprep.subr.mxu0 0.0
      %321 = vmatpush1.msra.mxu0 0.0
      %322 = vmatprep.subr.mxu0 0.0
      %323 = vmatpush1.msra.mxu0 0.0
      %324 = vmatprep.subr.mxu0 0.0
      %325 = vmatpush1.msra.mxu0 0.0
      %326 = vmatprep.subr.mxu0 0.0
      %327 = vmatpush1.msra.mxu0 0.0
      %328 = vmatprep.subr.mxu0 0.0
      %329 = vmatpush1.msra.mxu0 0.0
      %330 = vmatprep.subr.mxu0 0.0
      %331 = vmatpush1.msra.mxu0 0.0
      %332 = vmatprep.subr.mxu0 0.0
      %333 = vmatpush1.msra.mxu0 0.0
      %334 = vmatprep.subr.mxu0 0.0
      %335 = vmatpush1.msra.mxu0 0.0
      %336 = vmatprep.subr.mxu0 0.0
      %337 = vmatpush1.msra.mxu0 0.0
      %338 = vmatprep.subr.mxu0 0.0
      %339 = vmatpush1.msra.mxu0 0.0
      %340 = vmatprep.subr.mxu0 0.0
      %341 = vmatpush1.msra.mxu0 0.0
      %342 = vmatprep.subr.mxu0 0.0
      %343 = vmatpush1.msra.mxu0 0.0
      %344 = vmatprep.mubr.f32.mxu0 0.0
      %345 = vmatmul.mubr.f32.gmra.mrb[0].mxu0 %v225
      %v346 = vpop.f32.mrb[0].mxu0
      %v347 = vadd.f32 %v278, %v346
      %v348 = vpop.f32.mrb[0].mxu0
      %349 = vmatprep.mubr.f32.mxu0 0.0
      %350 = vmatmul.mubr.f32.gmra.mrb[0].mxu0 %v226
      %v351 = vpop.f32.mrb[0].mxu0
      %v352 = vadd.f32 %v278, %v351
      %v353 = vpop.f32.mrb[0].mxu0
      %354 = vmatprep.mubr.f32.mxu0 0.0
      %355 = vmatmul.mubr.f32.gmra.mrb[0].mxu0 %v227
      %v356 = vpop.f32.mrb[0].mxu0
      %v357 = vadd.f32 %v278, %v356
      %v358 = vpop.f32.mrb[0].mxu0
      %359 = vmatprep.mubr.f32.mxu0 0.0
      %360 = vmatmul.mubr.f32.gmra.mrb[0].mxu0 %v228
      %v361 = vpop.f32.mrb[0].mxu0
      %v362 = vadd.f32 %v278, %v361
      %v363 = vpop.f32.mrb[0].mxu0
      %364 = vmatprep.mubr.f32.mxu0 0.0
      %365 = vmatmul.mubr.f32.gmra.mrb[0].mxu0 %v229
      %v366 = vpop.f32.mrb[0].mxu0
      %v367 = vadd.f32 %v278, %v366
      %v368 = vpop.f32.mrb[0].mxu0
      %369 = vmatprep.mubr.f32.mxu0 0.0
      %370 = vmatmul.mubr.f32.gmra.mrb[0].mxu0 %v230
      %v371 = vpop.f32.mrb[0].mxu0
      %v372 = vadd.f32 %v278, %v371
      %v373 = vpop.f32.mrb[0].mxu0
      %374 = vmatprep.mubr.f32.mxu0 0.0
      %375 = vmatmul.mubr.f32.gmra.mrb[0].mxu0 %v231
      %v376 = vpop.f32.mrb[0].mxu0
      %v377 = vadd.f32 %v278, %v376
      %v378 = vpop.f32.mrb[0].mxu0
      %379 = vmatprep.mubr.f32.mxu0 0.0
      %380 = vmatmul.mubr.f32.gmra.mrb[0].mxu0 %v232
      %v381 = vpop.f32.mrb[0].mxu0
      %v382 = vadd.f32 %v278, %v381
      %v383 = vpop.f32.mrb[0].mxu0
      %384 = vmatprep.mubr.f32.mxu0 0.0
      %385 = vmatmul.mubr.f32.gmra.mrb[0].mxu0 %v233
      %v386 = vpop.f32.mrb[0].mxu0
      %v387 = vadd.f32 %v278, %v386
      %v388 = vpop.f32.mrb[0].mxu0
      %389 = vmatprep.mubr.f32.mxu0 0.0
      %390 = vmatmul.mubr.f32.gmra.mrb[0].mxu0 %v234
      %v391 = vpop.f32.mrb[0].mxu0
      %v392 = vadd.f32 %v278, %v391
      %v393 = vpop.f32.mrb[0].mxu0
      %394 = vmatprep.mubr.f32.mxu0 0.0
      %395 = vmatmul.mubr.f32.gmra.mrb[0].mxu0 %v235
      %v396 = vpop.f32.mrb[0].mxu0
      %v397 = vadd.f32 %v278, %v396
      %v398 = vpop.f32.mrb[0].mxu0
      %399 = vmatprep.mubr.f32.mxu0 0.0
      %400 = vmatmul.mubr.f32.gmra.mrb[0].mxu0 %v236
      %v401 = vpop.f32.mrb[0].mxu0
      %v402 = vadd.f32 %v278, %v401
      %v403 = vpop.f32.mrb[0].mxu0
      %404 = vmatprep.mubr.f32.mxu0 0.0
      %405 = vmatmul.mubr.f32.gmra.mrb[0].mxu0 %v237
      %v406 = vpop.f32.mrb[0].mxu0
      %v407 = vadd.f32 %v278, %v406
      %v408 = vpop.f32.mrb[0].mxu0
      %409 = vmatprep.mubr.f32.mxu0 0.0
      %410 = vmatmul.mubr.f32.gmra.mrb[0].mxu0 %v238
      %v411 = vpop.f32.mrb[0].mxu0
      %v412 = vadd.f32 %v278, %v411
      %v413 = vpop.f32.mrb[0].mxu0
      %414 = vmatprep.mubr.f32.mxu0 0.0
      %415 = vmatmul.mubr.f32.gmra.mrb[0].mxu0 %v239
      %v416 = vpop.f32.mrb[0].mxu0
      %v417 = vadd.f32 %v278, %v416
      %v418 = vpop.f32.mrb[0].mxu0
      %419 = vmatprep.mubr.f32.mxu0 0.0
      %420 = vmatmul.mubr.f32.gmra.mrb[0].mxu0 %v240
      %v421 = vpop.f32.mrb[0].mxu0
      %v422 = vadd.f32 %v278, %v421
      %v423 = vpop.f32.mrb[0].mxu0
      %424 = vmatprep.mubr.f32.mxu0 0.0
      %425 = vmatmul.mubr.f32.gmra.mrb[0].mxu0 %v241
      %v426 = vpop.f32.mrb[0].mxu0
      %v427 = vadd.f32 %v278, %v426
      %v428 = vpop.f32.mrb[0].mxu0
      %429 = vmatprep.mubr.f32.mxu0 0.0
      %430 = vmatmul.mubr.f32.gmra.mrb[0].mxu0 %v242
      %v431 = vpop.f32.mrb[0].mxu0
      %v432 = vadd.f32 %v278, %v431
      %v433 = vpop.f32.mrb[0].mxu0
      %434 = vmatprep.mubr.f32.mxu0 0.0
      %435 = vmatmul.mubr.f32.gmra.mrb[0].mxu0 %v243
      %v436 = vpop.f32.mrb[0].mxu0
      %v437 = vadd.f32 %v278, %v436
      %v438 = vpop.f32.mrb[0].mxu0
      %439 = vmatprep.mubr.f32.mxu0 0.0
      %440 = vmatmul.mubr.f32.gmra.mrb[0].mxu0 %v244
      %v441 = vpop.f32.mrb[0].mxu0
      %v442 = vadd.f32 %v278, %v441
      %v443 = vpop.f32.mrb[0].mxu0
      %444 = vmatprep.mubr.f32.mxu0 0.0
      %445 = vmatmul.mubr.f32.gmra.mrb[0].mxu0 %v245
      %v446 = vpop.f32.mrb[0].mxu0
      %v447 = vadd.f32 %v278, %v446
      %v448 = vpop.f32.mrb[0].mxu0
      %449 = vmatprep.mubr.f32.mxu0 0.0
      %450 = vmatmul.mubr.f32.gmra.mrb[0].mxu0 %v246
      %v451 = vpop.f32.mrb[0].mxu0
      %v452 = vadd.f32 %v278, %v451
      %v453 = vpop.f32.mrb[0].mxu0
      %454 = vmatprep.mubr.f32.mxu0 0.0
      %455 = vmatmul.mubr.f32.gmra.mrb[0].mxu0 %v247
      %v456 = vpop.f32.mrb[0].mxu0
      %v457 = vadd.f32 %v278, %v456
      %v458 = vpop.f32.mrb[0].mxu0
      %459 = vmatprep.mubr.f32.mxu0 0.0
      %460 = vmatmul.mubr.f32.gmra.mrb[0].mxu0 %v248
      %v461 = vpop.f32.mrb[0].mxu0
      %v462 = vadd.f32 %v278, %v461
      %v463 = vpop.f32.mrb[0].mxu0
      %464 = vmatprep.mubr.f32.mxu0 0.0
      %465 = vmatmul.mubr.f32.gmra.mrb[0].mxu0 %v249
      %v466 = vpop.f32.mrb[0].mxu0
      %v467 = vadd.f32 %v278, %v466
      %v468 = vpop.f32.mrb[0].mxu0
      %469 = vmatprep.mubr.f32.mxu0 0.0
      %470 = vmatmul.mubr.f32.gmra.mrb[0].mxu0 %v250
      %v471 = vpop.f32.mrb[0].mxu0
      %v472 = vadd.f32 %v278, %v471
      %v473 = vpop.f32.mrb[0].mxu0
      %474 = vmatprep.mubr.f32.mxu0 0.0
      %475 = vmatmul.mubr.f32.gmra.mrb[0].mxu0 %v251
      %v476 = vpop.f32.mrb[0].mxu0
      %v477 = vadd.f32 %v278, %v476
      %v478 = vpop.f32.mrb[0].mxu0
      %479 = vmatprep.mubr.f32.mxu0 0.0
      %480 = vmatmul.mubr.f32.gmra.mrb[0].mxu0 %v252
      %v481 = vpop.f32.mrb[0].mxu0
      %v482 = vadd.f32 %v278, %v481
      %v483 = vpop.f32.mrb[0].mxu0
      %484 = vmatprep.mubr.f32.mxu0 0.0
      %485 = vmatmul.mubr.f32.gmra.mrb[0].mxu0 %v253
      %v486 = vpop.f32.mrb[0].mxu0
      %v487 = vadd.f32 %v278, %v486
      %v488 = vpop.f32.mrb[0].mxu0
      %489 = vmatprep.mubr.f32.mxu0 0.0
      %490 = vmatmul.mubr.f32.gmra.mrb[0].mxu0 %v254
      %v491 = vpop.f32.mrb[0].mxu0
      %v492 = vadd.f32 %v278, %v491
      %v493 = vpop.f32.mrb[0].mxu0
      %494 = vmatprep.mubr.f32.mxu0 0.0
      %495 = vmatmul.mubr.f32.gmra.mrb[0].mxu0 %v255
      %v496 = vpop.f32.mrb[0].mxu0
      %v497 = vadd.f32 %v278, %v496
      %v498 = vpop.f32.mrb[0].mxu0
      %499 = vmatprep.mubr.f32.mxu0 0.0
      %500 = vmatmul.mubr.f32.gmra.mrb[0].mxu0 %v256
      %v501 = vpop.f32.mrb[0].mxu0
      %v502 = vadd.f32 %v278, %v501
      %v503 = vpop.f32.mrb[0].mxu0
      %504 = vdwg.mxu0
      %v505 = vmin.f32 %v347, 20.0
      %v506 = vmin.f32 %v352, 20.0
      %v507 = vmin.f32 %v357, 20.0
      %v508 = vmin.f32 %v362, 20.0
      %v509 = vmin.f32 %v367, 20.0
      %v510 = vmin.f32 %v372, 20.0
      %v511 = vmin.f32 %v377, 20.0
      %v512 = vmin.f32 %v382, 20.0
      %v513 = vmin.f32 %v387, 20.0
      %v514 = vmin.f32 %v392, 20.0
      %v515 = vmin.f32 %v397, 20.0
      %v516 = vmin.f32 %v402, 20.0
      %v517 = vmin.f32 %v407, 20.0
      %v518 = vmin.f32 %v412, 20.0
      %v519 = vmin.f32 %v417, 20.0
      %v520 = vmin.f32 %v422, 20.0
      %v521 = vmin.f32 %v427, 20.0
      %v522 = vmin.f32 %v432, 20.0
      %v523 = vmin.f32 %v437, 20.0
      %v524 = vmin.f32 %v442, 20.0
      %v525 = vmin.f32 %v447, 20.0
      %v526 = vmin.f32 %v452, 20.0
      %v527 = vmin.f32 %v457, 20.0
      %v528 = vmin.f32 %v462, 20.0
      %v529 = vmin.f32 %v467, 20.0
      %v530 = vmin.f32 %v472, 20.0
      %v531 = vmin.f32 %v477, 20.0
      %v532 = vmin.f32 %v482, 20.0
      %v533 = vmin.f32 %v487, 20.0
      %v534 = vmin.f32 %v492, 20.0
      %v535 = vmin.f32 %v497, 20.0
      %v536 = vmin.f32 %v502, 20.0
      %v537 = vmul.f32 %v505, 1.442695
      %v538 = vpow.pop %v537
      %v539 = vmul.f32 %v506, 1.442695
      %v540 = vpow.pop %v539
      %v541 = vmul.f32 %v507, 1.442695
      %v542 = vpow.pop %v541
      %v543 = vmul.f32 %v508, 1.442695
      %v544 = vpow.pop %v543
      %v545 = vmul.f32 %v509, 1.442695
      %v546 = vpow.pop %v545
      %v547 = vmul.f32 %v510, 1.442695
      %v548 = vpow.pop %v547
      %v549 = vmul.f32 %v511, 1.442695
      %v550 = vpow.pop %v549
      %v551 = vmul.f32 %v512, 1.442695
      %v552 = vpow.pop %v551
      %v553 = vmul.f32 %v513, 1.442695
      %v554 = vpow.pop %v553
      %v555 = vmul.f32 %v514, 1.442695
      %v556 = vpow.pop %v555
      %v557 = vmul.f32 %v515, 1.442695
      %v558 = vpow.pop %v557
      %v559 = vmul.f32 %v516, 1.442695
      %v560 = vpow.pop %v559
      %v561 = vmul.f32 %v517, 1.442695
      %v562 = vpow.pop %v561
      %v563 = vmul.f32 %v518, 1.442695
      %v564 = vpow.pop %v563
      %v565 = vmul.f32 %v519, 1.442695
      %v566 = vpow.pop %v565
      %v567 = vmul.f32 %v520, 1.442695
      %v568 = vpow.pop %v567
      %v569 = vmul.f32 %v521, 1.442695
      %v570 = vpow.pop %v569
      %v571 = vmul.f32 %v522, 1.442695
      %v572 = vpow.pop %v571
      %v573 = vmul.f32 %v523, 1.442695
      %v574 = vpow.pop %v573
      %v575 = vmul.f32 %v524, 1.442695
      %v576 = vpow.pop %v575
      %v577 = vmul.f32 %v525, 1.442695
      %v578 = vpow.pop %v577
      %v579 = vmul.f32 %v526, 1.442695
      %v580 = vpow.pop %v579
      %v581 = vmul.f32 %v527, 1.442695
      %v582 = vpow.pop %v581
      %v583 = vmul.f32 %v528, 1.442695
      %v584 = vpow.pop %v583
      %v585 = vmul.f32 %v529, 1.442695
      %v586 = vpow.pop %v585
      %v587 = vmul.f32 %v530, 1.442695
      %v588 = vpow.pop %v587
      %v589 = vmul.f32 %v531, 1.442695
      %v590 = vpow.pop %v589
      %v591 = vmul.f32 %v532, 1.442695
      %v592 = vpow.pop %v591
      %v593 = vmul.f32 %v533, 1.442695
      %v594 = vpow.pop %v593
      %v595 = vmul.f32 %v534, 1.442695
      %v596 = vpow.pop %v595
      %v597 = vmul.f32 %v535, 1.442695
      %v598 = vpow.pop %v597
      %v599 = vmul.f32 %v536, 1.442695
      %v600 = vpow.pop %v599
      %v601 = vadd.f32 %v538, 2.0
      %v602 = vadd.f32 %v540, 2.0
      %v603 = vadd.f32 %v542, 2.0
      %v604 = vadd.f32 %v544, 2.0
      %v605 = vadd.f32 %v546, 2.0
      %v606 = vadd.f32 %v548, 2.0
      %v607 = vadd.f32 %v550, 2.0
      %v608 = vadd.f32 %v552, 2.0
      %v609 = vadd.f32 %v554, 2.0
      %v610 = vadd.f32 %v556, 2.0
      %v611 = vadd.f32 %v558, 2.0
      %v612 = vadd.f32 %v560, 2.0
      %v613 = vadd.f32 %v562, 2.0
      %v614 = vadd.f32 %v564, 2.0
      %v615 = vadd.f32 %v566, 2.0
      %v616 = vadd.f32 %v568, 2.0
      %v617 = vadd.f32 %v570, 2.0
      %v618 = vadd.f32 %v572, 2.0
      %v619 = vadd.f32 %v574, 2.0
      %v620 = vadd.f32 %v576, 2.0
      %v621 = vadd.f32 %v578, 2.0
      %v622 = vadd.f32 %v580, 2.0
      %v623 = vadd.f32 %v582, 2.0
      %v624 = vadd.f32 %v584, 2.0
      %v625 = vadd.f32 %v586, 2.0
      %v626 = vadd.f32 %v588, 2.0
      %v627 = vadd.f32 %v590, 2.0
      %v628 = vadd.f32 %v592, 2.0
      %v629 = vadd.f32 %v594, 2.0
      %v630 = vadd.f32 %v596, 2.0
      %v631 = vadd.f32 %v598, 2.0
      %v632 = vadd.f32 %v600, 2.0
      %v633 = vmul.f32 %v538, %v601
      %v634 = vmul.f32 %v540, %v602
      %v635 = vmul.f32 %v542, %v603
      %v636 = vmul.f32 %v544, %v604
      %v637 = vmul.f32 %v546, %v605
      %v638 = vmul.f32 %v548, %v606
      %v639 = vmul.f32 %v550, %v607
      %v640 = vmul.f32 %v552, %v608
      %v641 = vmul.f32 %v554, %v609
      %v642 = vmul.f32 %v556, %v610
      %v643 = vmul.f32 %v558, %v611
      %v644 = vmul.f32 %v560, %v612
      %v645 = vmul.f32 %v562, %v613
      %v646 = vmul.f32 %v564, %v614
      %v647 = vmul.f32 %v566, %v615
      %v648 = vmul.f32 %v568, %v616
      %v649 = vmul.f32 %v570, %v617
      %v650 = vmul.f32 %v572, %v618
      %v651 = vmul.f32 %v574, %v619
      %v652 = vmul.f32 %v576, %v620
      %v653 = vmul.f32 %v578, %v621
      %v654 = vmul.f32 %v580, %v622
      %v655 = vmul.f32 %v582, %v623
      %v656 = vmul.f32 %v584, %v624
      %v657 = vmul.f32 %v586, %v625
      %v658 = vmul.f32 %v588, %v626
      %v659 = vmul.f32 %v590, %v627
      %v660 = vmul.f32 %v592, %v628
      %v661 = vmul.f32 %v594, %v629
      %v662 = vmul.f32 %v596, %v630
      %v663 = vmul.f32 %v598, %v631
      %v664 = vmul.f32 %v600, %v632
      %v665 = vadd.f32 %v633, 2.0
      %v666 = vadd.f32 %v634, 2.0
      %v667 = vadd.f32 %v635, 2.0
      %v668 = vadd.f32 %v636, 2.0
      %v669 = vadd.f32 %v637, 2.0
      %v670 = vadd.f32 %v638, 2.0
      %v671 = vadd.f32 %v639, 2.0
      %v672 = vadd.f32 %v640, 2.0
      %v673 = vadd.f32 %v641, 2.0
      %v674 = vadd.f32 %v642, 2.0
      %v675 = vadd.f32 %v643, 2.0
      %v676 = vadd.f32 %v644, 2.0
      %v677 = vadd.f32 %v645, 2.0
      %v678 = vadd.f32 %v646, 2.0
      %v679 = vadd.f32 %v647, 2.0
      %v680 = vadd.f32 %v648, 2.0
      %v681 = vadd.f32 %v649, 2.0
      %v682 = vadd.f32 %v650, 2.0
      %v683 = vadd.f32 %v651, 2.0
      %v684 = vadd.f32 %v652, 2.0
      %v685 = vadd.f32 %v653, 2.0
      %v686 = vadd.f32 %v654, 2.0
      %v687 = vadd.f32 %v655, 2.0
      %v688 = vadd.f32 %v656, 2.0
      %v689 = vadd.f32 %v657, 2.0
      %v690 = vadd.f32 %v658, 2.0
      %v691 = vadd.f32 %v659, 2.0
      %v692 = vadd.f32 %v660, 2.0
      %v693 = vadd.f32 %v661, 2.0
      %v694 = vadd.f32 %v662, 2.0
      %v695 = vadd.f32 %v663, 2.0
      %v696 = vadd.f32 %v664, 2.0
      %v697 = vrcp.pop %v665
      %v698 = vrcp.pop %v666
      %v699 = vrcp.pop %v667
      %v700 = vrcp.pop %v668
      %v701 = vrcp.pop %v669
      %v702 = vrcp.pop %v670
      %v703 = vrcp.pop %v671
      %v704 = vrcp.pop %v672
      %v705 = vrcp.pop %v673
      %v706 = vrcp.pop %v674
      %v707 = vrcp.pop %v675
      %v708 = vrcp.pop %v676
      %v709 = vrcp.pop %v677
      %v710 = vrcp.pop %v678
      %v711 = vrcp.pop %v679
      %v712 = vrcp.pop %v680
      %v713 = vrcp.pop %v681
      %v714 = vrcp.pop %v682
      %v715 = vrcp.pop %v683
      %v716 = vrcp.pop %v684
      %v717 = vrcp.pop %v685
      %v718 = vrcp.pop %v686
      %v719 = vrcp.pop %v687
      %v720 = vrcp.pop %v688
      %v721 = vrcp.pop %v689
      %v722 = vrcp.pop %v690
      %v723 = vrcp.pop %v691
      %v724 = vrcp.pop %v692
      %v725 = vrcp.pop %v693
      %v726 = vrcp.pop %v694
      %v727 = vrcp.pop %v695
      %v728 = vrcp.pop %v696
      %v729 = vmul.f32 %v633, %v697
      %v730 = vmul.f32 %v634, %v698
      %v731 = vmul.f32 %v635, %v699
      %v732 = vmul.f32 %v636, %v700
      %v733 = vmul.f32 %v637, %v701
      %v734 = vmul.f32 %v638, %v702
      %v735 = vmul.f32 %v639, %v703
      %v736 = vmul.f32 %v640, %v704
      %v737 = vmul.f32 %v641, %v705
      %v738 = vmul.f32 %v642, %v706
      %v739 = vmul.f32 %v643, %v707
      %v740 = vmul.f32 %v644, %v708
      %v741 = vmul.f32 %v645, %v709
      %v742 = vmul.f32 %v646, %v710
      %v743 = vmul.f32 %v647, %v711
      %v744 = vmul.f32 %v648, %v712
      %v745 = vmul.f32 %v649, %v713
      %v746 = vmul.f32 %v650, %v714
      %v747 = vmul.f32 %v651, %v715
      %v748 = vmul.f32 %v652, %v716
      %v749 = vmul.f32 %v653, %v717
      %v750 = vmul.f32 %v654, %v718
      %v751 = vmul.f32 %v655, %v719
      %v752 = vmul.f32 %v656, %v720
      %v753 = vmul.f32 %v657, %v721
      %v754 = vmul.f32 %v658, %v722
      %v755 = vmul.f32 %v659, %v723
      %v756 = vmul.f32 %v660, %v724
      %v757 = vmul.f32 %v661, %v725
      %v758 = vmul.f32 %v662, %v726
      %v759 = vmul.f32 %v663, %v727
      %v760 = vmul.f32 %v664, %v728
      %vm761 = vcmp.ge.f32.partialorder %v347, 20.0
      %vm762 = vcmp.ge.f32.partialorder %v352, 20.0
      %vm763 = vcmp.ge.f32.partialorder %v357, 20.0
      %vm764 = vcmp.ge.f32.partialorder %v362, 20.0
      %vm765 = vcmp.ge.f32.partialorder %v367, 20.0
      %vm766 = vcmp.ge.f32.partialorder %v372, 20.0
      %vm767 = vcmp.ge.f32.partialorder %v377, 20.0
      %vm768 = vcmp.ge.f32.partialorder %v382, 20.0
      %vm769 = vcmp.ge.f32.partialorder %v387, 20.0
      %vm770 = vcmp.ge.f32.partialorder %v392, 20.0
      %vm771 = vcmp.ge.f32.partialorder %v397, 20.0
      %vm772 = vcmp.ge.f32.partialorder %v402, 20.0
      %vm773 = vcmp.ge.f32.partialorder %v407, 20.0
      %vm774 = vcmp.ge.f32.partialorder %v412, 20.0
      %vm775 = vcmp.ge.f32.partialorder %v417, 20.0
      %vm776 = vcmp.ge.f32.partialorder %v422, 20.0
      %vm777 = vcmp.ge.f32.partialorder %v427, 20.0
      %vm778 = vcmp.ge.f32.partialorder %v432, 20.0
      %vm779 = vcmp.ge.f32.partialorder %v437, 20.0
      %vm780 = vcmp.ge.f32.partialorder %v442, 20.0
      %vm781 = vcmp.ge.f32.partialorder %v447, 20.0
      %vm782 = vcmp.ge.f32.partialorder %v452, 20.0
      %vm783 = vcmp.ge.f32.partialorder %v457, 20.0
      %vm784 = vcmp.ge.f32.partialorder %v462, 20.0
      %vm785 = vcmp.ge.f32.partialorder %v467, 20.0
      %vm786 = vcmp.ge.f32.partialorder %v472, 20.0
      %vm787 = vcmp.ge.f32.partialorder %v477, 20.0
      %vm788 = vcmp.ge.f32.partialorder %v482, 20.0
      %vm789 = vcmp.ge.f32.partialorder %v487, 20.0
      %vm790 = vcmp.ge.f32.partialorder %v492, 20.0
      %vm791 = vcmp.ge.f32.partialorder %v497, 20.0
      %vm792 = vcmp.ge.f32.partialorder %v502, 20.0
      %v793 = vsel %vm761, 1.0, %v729
      %v794 = vsel %vm762, 1.0, %v730
      %v795 = vsel %vm763, 1.0, %v731
      %v796 = vsel %vm764, 1.0, %v732
      %v797 = vsel %vm765, 1.0, %v733
      %v798 = vsel %vm766, 1.0, %v734
      %v799 = vsel %vm767, 1.0, %v735
      %v800 = vsel %vm768, 1.0, %v736
      %v801 = vsel %vm769, 1.0, %v737
      %v802 = vsel %vm770, 1.0, %v738
      %v803 = vsel %vm771, 1.0, %v739
      %v804 = vsel %vm772, 1.0, %v740
      %v805 = vsel %vm773, 1.0, %v741
      %v806 = vsel %vm774, 1.0, %v742
      %v807 = vsel %vm775, 1.0, %v743
      %v808 = vsel %vm776, 1.0, %v744
      %v809 = vsel %vm777, 1.0, %v745
      %v810 = vsel %vm778, 1.0, %v746
      %v811 = vsel %vm779, 1.0, %v747
      %v812 = vsel %vm780, 1.0, %v748
      %v813 = vsel %vm781, 1.0, %v749
      %v814 = vsel %vm782, 1.0, %v750
      %v815 = vsel %vm783, 1.0, %v751
      %v816 = vsel %vm784, 1.0, %v752
      %v817 = vsel %vm785, 1.0, %v753
      %v818 = vsel %vm786, 1.0, %v754
      %v819 = vsel %vm787, 1.0, %v755
      %v820 = vsel %vm788, 1.0, %v756
      %v821 = vsel %vm789, 1.0, %v757
      %v822 = vsel %vm790, 1.0, %v758
      %v823 = vsel %vm791, 1.0, %v759
      %v824 = vsel %vm792, 1.0, %v760
      %v825 = vmul.f32 %v347, %v793
      %v826 = vmul.f32 %v352, %v794
      %v827 = vmul.f32 %v357, %v795
      %v828 = vmul.f32 %v362, %v796
      %v829 = vmul.f32 %v367, %v797
      %v830 = vmul.f32 %v372, %v798
      %v831 = vmul.f32 %v377, %v799
      %v832 = vmul.f32 %v382, %v800
      %v833 = vmul.f32 %v387, %v801
      %v834 = vmul.f32 %v392, %v802
      %v835 = vmul.f32 %v397, %v803
      %v836 = vmul.f32 %v402, %v804
      %v837 = vmul.f32 %v407, %v805
      %v838 = vmul.f32 %v412, %v806
      %v839 = vmul.f32 %v417, %v807
      %v840 = vmul.f32 %v422, %v808
      %v841 = vmul.f32 %v427, %v809
      %v842 = vmul.f32 %v432, %v810
      %v843 = vmul.f32 %v437, %v811
      %v844 = vmul.f32 %v442, %v812
      %v845 = vmul.f32 %v447, %v813
      %v846 = vmul.f32 %v452, %v814
      %v847 = vmul.f32 %v457, %v815
      %v848 = vmul.f32 %v462, %v816
      %v849 = vmul.f32 %v467, %v817
      %v850 = vmul.f32 %v472, %v818
      %v851 = vmul.f32 %v477, %v819
      %v852 = vmul.f32 %v482, %v820
      %v853 = vmul.f32 %v487, %v821
      %v854 = vmul.f32 %v492, %v822
      %v855 = vmul.f32 %v497, %v823
      %v856 = vmul.f32 %v502, %v824
      %v857 = vlaneseq
      %v858 = vshrl.u32 %v857, 7
      %v859 = vadd.s32 %v858, 8
      %vm860 = vcmp.ge.s32.totalorder %v858, 1
      %vm861 = vcmp.ge.s32.totalorder %v859, 1
      %vm862 = vcmp.le.s32.totalorder %v858, 14
      %vm863 = vcmp.le.s32.totalorder %v859, 14
      %v864 = vrot.slane %v825, 7
      %v865 = vrot.slane %v826, 7
      %v866 = vrot.slane %v827, 7
      %v867 = vrot.slane %v828, 7
      %v868 = vrot.slane %v829, 7
      %v869 = vrot.slane %v830, 7
      %v870 = vrot.slane %v831, 7
      %v871 = vrot.slane %v832, 7
      %v872 = vrot.slane %v833, 7
      %v873 = vrot.slane %v834, 7
      %v874 = vrot.slane %v835, 7
      %v875 = vrot.slane %v836, 7
      %v876 = vrot.slane %v837, 7
      %v877 = vrot.slane %v838, 7
      %v878 = vrot.slane %v839, 7
      %v879 = vrot.slane %v840, 7
      %v880 = vrot.slane %v841, 7
      %v881 = vrot.slane %v842, 7
      %v882 = vrot.slane %v843, 7
      %v883 = vrot.slane %v844, 7
      %v884 = vrot.slane %v845, 7
      %v885 = vrot.slane %v846, 7
      %v886 = vrot.slane %v847, 7
      %v887 = vrot.slane %v848, 7
      %v888 = vrot.slane %v849, 7
      %v889 = vrot.slane %v850, 7
      %v890 = vrot.slane %v851, 7
      %v891 = vrot.slane %v852, 7
      %v892 = vrot.slane %v853, 7
      %v893 = vrot.slane %v854, 7
      %v894 = vrot.slane %v856, 7
      %vm895 = vcmp.lt.s32.totalorder %v858, 1
      %v896 = vsel %vm895, %v892, %v893
      %v897 = vsel %vm895, %v891, %v892
      %v898 = vsel %vm895, %v890, %v891
      %v899 = vsel %vm895, %v889, %v890
      %v900 = vsel %vm895, %v888, %v889
      %v901 = vsel %vm895, %v887, %v888
      %v902 = vsel %vm895, %v886, %v887
      %v903 = vsel %vm895, %v885, %v886
      %v904 = vsel %vm895, %v884, %v885
      %v905 = vsel %vm895, %v883, %v884
      %v906 = vsel %vm895, %v882, %v883
      %v907 = vsel %vm895, %v881, %v882
      %v908 = vsel %vm895, %v880, %v881
      %v909 = vsel %vm895, %v879, %v880
      %v910 = vsel %vm895, %v878, %v879
      %v911 = vsel %vm895, %v877, %v878
      %v912 = vsel %vm895, %v876, %v877
      %v913 = vsel %vm895, %v875, %v876
      %v914 = vsel %vm895, %v874, %v875
      %v915 = vsel %vm895, %v873, %v874
      %v916 = vsel %vm895, %v872, %v873
      %v917 = vsel %vm895, %v871, %v872
      %v918 = vsel %vm895, %v870, %v871
      %v919 = vsel %vm895, %v869, %v870
      %v920 = vsel %vm895, %v868, %v869
      %v921 = vsel %vm895, %v867, %v868
      %v922 = vsel %vm895, %v866, %v867
      %v923 = vsel %vm895, %v865, %v866
      %v924 = vsel %vm895, %v864, %v865
      %v925 = vsel %vm895, %v894, %v864
      %v926 = vsel %vm860, 1, 0
      %v927 = vsel %vm861, 1, 0
      %vm928 = vcmp.eq.s32.totalorder %v926, 1
      %vm929 = vcmp.eq.s32.totalorder %v927, 1
      %v930 = vsel %vm928, %v925, 0.0
      %v931 = vsel %vm929, %v924, 0.0
      %v932 = vsel %vm928, %v923, 0.0
      %v933 = vsel %vm929, %v922, 0.0
      %v934 = vsel %vm928, %v921, 0.0
      %v935 = vsel %vm929, %v920, 0.0
      %v936 = vsel %vm928, %v919, 0.0
      %v937 = vsel %vm929, %v918, 0.0
      %v938 = vsel %vm928, %v917, 0.0
      %v939 = vsel %vm929, %v916, 0.0
      %v940 = vsel %vm928, %v915, 0.0
      %v941 = vsel %vm929, %v914, 0.0
      %v942 = vsel %vm928, %v913, 0.0
      %v943 = vsel %vm929, %v912, 0.0
      %v944 = vsel %vm928, %v911, 0.0
      %v945 = vsel %vm929, %v910, 0.0
      %v946 = vsel %vm928, %v909, 0.0
      %v947 = vsel %vm929, %v908, 0.0
      %v948 = vsel %vm928, %v907, 0.0
      %v949 = vsel %vm929, %v906, 0.0
      %v950 = vsel %vm928, %v905, 0.0
      %v951 = vsel %vm929, %v904, 0.0
      %v952 = vsel %vm928, %v903, 0.0
      %v953 = vsel %vm929, %v902, 0.0
      %v954 = vsel %vm928, %v901, 0.0
      %v955 = vsel %vm929, %v900, 0.0
      %v956 = vsel %vm928, %v899, 0.0
      %v957 = vsel %vm929, %v898, 0.0
      %v958 = vsel %vm928, %v897, 0.0
      %v959 = vsel %vm929, %v896, 0.0
      %v960 = vld [vmem:[%s3] sm:$0xff]
      %v961 = vld [vmem:[%s3 + $0x8] sm:$0xff]
      %v962 = vld [vmem:[%s3 + $0x10] sm:$0xff]
      %v963 = vld [vmem:[%s3 + $0x18] sm:$0xff]
      %v964 = vld [vmem:[%s3 + $0x20] sm:$0xff]
      %v965 = vld [vmem:[%s3 + $0x28] sm:$0xff]
      %v966 = vld [vmem:[%s3 + $0x30] sm:$0xff]
      %v967 = vld [vmem:[%s3 + $0x38] sm:$0xff]
      %v968 = vld [vmem:[%s3 + $0x40] sm:$0xff]
      %v969 = vld [vmem:[%s3 + $0x48] sm:$0xff]
      %v970 = vld [vmem:[%s3 + $0x50] sm:$0xff]
      %v971 = vld [vmem:[%s3 + $0x58] sm:$0xff]
      %v972 = vld [vmem:[%s3 + $0x60] sm:$0xff]
      %v973 = vld [vmem:[%s3 + $0x68] sm:$0xff]
      %v974 = vld [vmem:[%s3 + $0x70] sm:$0xff]
      %v975 = vld [vmem:[%s3 + $0x78] sm:$0xff]
      %s976 = scalar_lea.vmem %s3, 128
      %v977 = vld [vmem:[%s976] sm:$0xff]
      %v978 = vld [vmem:[%s976 + $0x8] sm:$0xff]
      %v979 = vld [vmem:[%s976 + $0x10] sm:$0xff]
      %v980 = vld [vmem:[%s976 + $0x18] sm:$0xff]
      %v981 = vld [vmem:[%s976 + $0x20] sm:$0xff]
      %v982 = vld [vmem:[%s976 + $0x28] sm:$0xff]
      %v983 = vld [vmem:[%s976 + $0x30] sm:$0xff]
      %v984 = vld [vmem:[%s976 + $0x38] sm:$0xff]
      %v985 = vld [vmem:[%s976 + $0x40] sm:$0xff]
      %v986 = vld [vmem:[%s976 + $0x48] sm:$0xff]
      %v987 = vld [vmem:[%s976 + $0x50] sm:$0xff]
      %v988 = vld [vmem:[%s976 + $0x58] sm:$0xff]
      %v989 = vld [vmem:[%s976 + $0x60] sm:$0xff]
      %v990 = vld [vmem:[%s976 + $0x68] sm:$0xff]
      %v991 = vld [vmem:[%s976 + $0x70] sm:$0xff]
      %v992 = vld [vmem:[%s976 + $0x78] sm:$0xff]
      %993 = vmatprep.subr.mxu0 0.0
      %994 = vmatpush1.msra.mxu0 %v977
      %995 = vmatprep.subr.mxu0 0.0
      %996 = vmatpush1.msra.mxu0 %v978
      %997 = vmatprep.subr.mxu0 0.0
      %998 = vmatpush1.msra.mxu0 %v979
      %999 = vmatprep.subr.mxu0 0.0
      %1000 = vmatpush1.msra.mxu0 %v980
      %1001 = vmatprep.subr.mxu0 0.0
      %1002 = vmatpush1.msra.mxu0 %v981
      %1003 = vmatprep.subr.mxu0 0.0
      %1004 = vmatpush1.msra.mxu0 %v982
      %1005 = vmatprep.subr.mxu0 0.0
      %1006 = vmatpush1.msra.mxu0 %v983
      %1007 = vmatprep.subr.mxu0 0.0
      %1008 = vmatpush1.msra.mxu0 %v984
      %1009 = vmatprep.subr.mxu0 0.0
      %1010 = vmatpush1.msra.mxu0 %v985
      %1011 = vmatprep.subr.mxu0 0.0
      %1012 = vmatpush1.msra.mxu0 %v986
      %1013 = vmatprep.subr.mxu0 0.0
      %1014 = vmatpush1.msra.mxu0 %v987
      %1015 = vmatprep.subr.mxu0 0.0
      %1016 = vmatpush1.msra.mxu0 %v988
      %1017 = vmatprep.subr.mxu0 0.0
      %1018 = vmatpush1.msra.mxu0 %v989
      %1019 = vmatprep.subr.mxu0 0.0
      %1020 = vmatpush1.msra.mxu0 %v990
      %1021 = vmatprep.subr.mxu0 0.0
      %1022 = vmatpush1.msra.mxu0 %v991
      %1023 = vmatprep.subr.mxu0 0.0
      %1024 = vmatpush1.msra.mxu0 %v992
      %1025 = vmatprep.subr.mxu0 0.0
      %1026 = vmatpush1.msra.mxu0 0.0
      %1027 = vmatprep.subr.mxu0 0.0
      %1028 = vmatpush1.msra.mxu0 0.0
      %1029 = vmatprep.subr.mxu0 0.0
      %1030 = vmatpush1.msra.mxu0 0.0
      %1031 = vmatprep.subr.mxu0 0.0
      %1032 = vmatpush1.msra.mxu0 0.0
      %1033 = vmatprep.subr.mxu0 0.0
      %1034 = vmatpush1.msra.mxu0 0.0
      %1035 = vmatprep.subr.mxu0 0.0
      %1036 = vmatpush1.msra.mxu0 0.0
      %1037 = vmatprep.subr.mxu0 0.0
      %1038 = vmatpush1.msra.mxu0 0.0
      %1039 = vmatprep.subr.mxu0 0.0
      %1040 = vmatpush1.msra.mxu0 0.0
      %1041 = vmatprep.subr.mxu0 0.0
      %1042 = vmatpush1.msra.mxu0 0.0
      %1043 = vmatprep.subr.mxu0 0.0
      %1044 = vmatpush1.msra.mxu0 0.0
      %1045 = vmatprep.subr.mxu0 0.0
      %1046 = vmatpush1.msra.mxu0 0.0
      %1047 = vmatprep.subr.mxu0 0.0
      %1048 = vmatpush1.msra.mxu0 0.0
      %1049 = vmatprep.subr.mxu0 0.0
      %1050 = vmatpush1.msra.mxu0 0.0
      %1051 = vmatprep.subr.mxu0 0.0
      %1052 = vmatpush1.msra.mxu0 0.0
      %1053 = vmatprep.subr.mxu0 0.0
      %1054 = vmatpush1.msra.mxu0 0.0
      %1055 = vmatprep.subr.mxu0 0.0
      %1056 = vmatpush1.msra.mxu0 0.0
      %1057 = vmatprep.mubr.f32.mxu0 0.0
      %1058 = vmatmul.mubr.f32.gmra.mrb[0].mxu0 0.0
      %v1059 = vpop.f32.mrb[0].mxu0
      %v1060 = vadd.f32 0.0, %v1059
      %v1061 = vpop.f32.mrb[0].mxu0
      %1062 = vmatprep.mubr.f32.mxu0 0.0
      %1063 = vmatmul.mubr.f32.gmra.mrb[0].mxu0 0.0
      %v1064 = vpop.f32.mrb[0].mxu0
      %v1065 = vadd.f32 0.0, %v1064
      %v1066 = vpop.f32.mrb[0].mxu0
      %1067 = vmatprep.mubr.f32.mxu0 0.0
      %1068 = vmatmul.mubr.f32.gmra.mrb[0].mxu0 %v825
      %v1069 = vpop.f32.mrb[0].mxu0
      %v1070 = vadd.f32 0.0, %v1069
      %v1071 = vpop.f32.mrb[0].mxu0
      %1072 = vmatprep.mubr.f32.mxu0 0.0
      %1073 = vmatmul.mubr.f32.gmra.mrb[0].mxu0 %v826
      %v1074 = vpop.f32.mrb[0].mxu0
      %v1075 = vadd.f32 0.0, %v1074
      %v1076 = vpop.f32.mrb[0].mxu0
      %1077 = vmatprep.mubr.f32.mxu0 0.0
      %1078 = vmatmul.mubr.f32.gmra.mrb[0].mxu0 %v827
      %v1079 = vpop.f32.mrb[0].mxu0
      %v1080 = vadd.f32 0.0, %v1079
      %v1081 = vpop.f32.mrb[0].mxu0
      %1082 = vmatprep.mubr.f32.mxu0 0.0
      %1083 = vmatmul.mubr.f32.gmra.mrb[0].mxu0 %v828
      %v1084 = vpop.f32.mrb[0].mxu0
      %v1085 = vadd.f32 0.0, %v1084
      %v1086 = vpop.f32.mrb[0].mxu0
      %1087 = vmatprep.mubr.f32.mxu0 0.0
      %1088 = vmatmul.mubr.f32.gmra.mrb[0].mxu0 %v829
      %v1089 = vpop.f32.mrb[0].mxu0
      %v1090 = vadd.f32 0.0, %v1089
      %v1091 = vpop.f32.mrb[0].mxu0
      %1092 = vmatprep.mubr.f32.mxu0 0.0
      %1093 = vmatmul.mubr.f32.gmra.mrb[0].mxu0 %v830
      %v1094 = vpop.f32.mrb[0].mxu0
      %v1095 = vadd.f32 0.0, %v1094
      %v1096 = vpop.f32.mrb[0].mxu0
      %1097 = vmatprep.mubr.f32.mxu0 0.0
      %1098 = vmatmul.mubr.f32.gmra.mrb[0].mxu0 %v831
      %v1099 = vpop.f32.mrb[0].mxu0
      %v1100 = vadd.f32 0.0, %v1099
      %v1101 = vpop.f32.mrb[0].mxu0
      %1102 = vmatprep.mubr.f32.mxu0 0.0
      %1103 = vmatmul.mubr.f32.gmra.mrb[0].mxu0 %v832
      %v1104 = vpop.f32.mrb[0].mxu0
      %v1105 = vadd.f32 0.0, %v1104
      %v1106 = vpop.f32.mrb[0].mxu0
      %1107 = vmatprep.mubr.f32.mxu0 0.0
      %1108 = vmatmul.mubr.f32.gmra.mrb[0].mxu0 %v833
      %v1109 = vpop.f32.mrb[0].mxu0
      %v1110 = vadd.f32 0.0, %v1109
      %v1111 = vpop.f32.mrb[0].mxu0
      %1112 = vmatprep.mubr.f32.mxu0 0.0
      %1113 = vmatmul.mubr.f32.gmra.mrb[0].mxu0 %v834
      %v1114 = vpop.f32.mrb[0].mxu0
      %v1115 = vadd.f32 0.0, %v1114
      %v1116 = vpop.f32.mrb[0].mxu0
      %1117 = vmatprep.mubr.f32.mxu0 0.0
      %1118 = vmatmul.mubr.f32.gmra.mrb[0].mxu0 %v835
      %v1119 = vpop.f32.mrb[0].mxu0
      %v1120 = vadd.f32 0.0, %v1119
      %v1121 = vpop.f32.mrb[0].mxu0
      %1122 = vmatprep.mubr.f32.mxu0 0.0
      %1123 = vmatmul.mubr.f32.gmra.mrb[0].mxu0 %v836
      %v1124 = vpop.f32.mrb[0].mxu0
      %v1125 = vadd.f32 0.0, %v1124
      %v1126 = vpop.f32.mrb[0].mxu0
      %1127 = vmatprep.mubr.f32.mxu0 0.0
      %1128 = vmatmul.mubr.f32.gmra.mrb[0].mxu0 %v837
      %v1129 = vpop.f32.mrb[0].mxu0
      %v1130 = vadd.f32 0.0, %v1129
      %v1131 = vpop.f32.mrb[0].mxu0
      %1132 = vmatprep.mubr.f32.mxu0 0.0
      %1133 = vmatmul.mubr.f32.gmra.mrb[0].mxu0 %v838
      %v1134 = vpop.f32.mrb[0].mxu0
      %v1135 = vadd.f32 0.0, %v1134
      %v1136 = vpop.f32.mrb[0].mxu0
      %1137 = vmatprep.mubr.f32.mxu0 0.0
      %1138 = vmatmul.mubr.f32.gmra.mrb[0].mxu0 %v839
      %v1139 = vpop.f32.mrb[0].mxu0
      %v1140 = vadd.f32 0.0, %v1139
      %v1141 = vpop.f32.mrb[0].mxu0
      %1142 = vmatprep.mubr.f32.mxu0 0.0
      %1143 = vmatmul.mubr.f32.gmra.mrb[0].mxu0 %v840
      %v1144 = vpop.f32.mrb[0].mxu0
      %v1145 = vadd.f32 0.0, %v1144
      %v1146 = vpop.f32.mrb[0].mxu0
      %1147 = vmatprep.mubr.f32.mxu0 0.0
      %1148 = vmatmul.mubr.f32.gmra.mrb[0].mxu0 %v841
      %v1149 = vpop.f32.mrb[0].mxu0
      %v1150 = vadd.f32 0.0, %v1149
      %v1151 = vpop.f32.mrb[0].mxu0
      %1152 = vmatprep.mubr.f32.mxu0 0.0
      %1153 = vmatmul.mubr.f32.gmra.mrb[0].mxu0 %v842
      %v1154 = vpop.f32.mrb[0].mxu0
      %v1155 = vadd.f32 0.0, %v1154
      %v1156 = vpop.f32.mrb[0].mxu0
      %1157 = vmatprep.mubr.f32.mxu0 0.0
      %1158 = vmatmul.mubr.f32.gmra.mrb[0].mxu0 %v843
      %v1159 = vpop.f32.mrb[0].mxu0
      %v1160 = vadd.f32 0.0, %v1159
      %v1161 = vpop.f32.mrb[0].mxu0
      %1162 = vmatprep.mubr.f32.mxu0 0.0
      %1163 = vmatmul.mubr.f32.gmra.mrb[0].mxu0 %v844
      %v1164 = vpop.f32.mrb[0].mxu0
      %v1165 = vadd.f32 0.0, %v1164
      %v1166 = vpop.f32.mrb[0].mxu0
      %1167 = vmatprep.mubr.f32.mxu0 0.0
      %1168 = vmatmul.mubr.f32.gmra.mrb[0].mxu0 %v845
      %v1169 = vpop.f32.mrb[0].mxu0
      %v1170 = vadd.f32 0.0, %v1169
      %v1171 = vpop.f32.mrb[0].mxu0
      %1172 = vmatprep.mubr.f32.mxu0 0.0
      %1173 = vmatmul.mubr.f32.gmra.mrb[0].mxu0 %v846
      %v1174 = vpop.f32.mrb[0].mxu0
      %v1175 = vadd.f32 0.0, %v1174
      %v1176 = vpop.f32.mrb[0].mxu0
      %1177 = vmatprep.mubr.f32.mxu0 0.0
      %1178 = vmatmul.mubr.f32.gmra.mrb[0].mxu0 %v847
      %v1179 = vpop.f32.mrb[0].mxu0
      %v1180 = vadd.f32 0.0, %v1179
      %v1181 = vpop.f32.mrb[0].mxu0
      %1182 = vmatprep.mubr.f32.mxu0 0.0
      %1183 = vmatmul.mubr.f32.gmra.mrb[0].mxu0 %v848
      %v1184 = vpop.f32.mrb[0].mxu0
      %v1185 = vadd.f32 0.0, %v1184
      %v1186 = vpop.f32.mrb[0].mxu0
      %1187 = vmatprep.mubr.f32.mxu0 0.0
      %1188 = vmatmul.mubr.f32.gmra.mrb[0].mxu0 %v849
      %v1189 = vpop.f32.mrb[0].mxu0
      %v1190 = vadd.f32 0.0, %v1189
      %v1191 = vpop.f32.mrb[0].mxu0
      %1192 = vmatprep.mubr.f32.mxu0 0.0
      %1193 = vmatmul.mubr.f32.gmra.mrb[0].mxu0 %v850
      %v1194 = vpop.f32.mrb[0].mxu0
      %v1195 = vadd.f32 0.0, %v1194
      %v1196 = vpop.f32.mrb[0].mxu0
      %1197 = vmatprep.mubr.f32.mxu0 0.0
      %1198 = vmatmul.mubr.f32.gmra.mrb[0].mxu0 %v851
      %v1199 = vpop.f32.mrb[0].mxu0
      %v1200 = vadd.f32 0.0, %v1199
      %v1201 = vpop.f32.mrb[0].mxu0
      %1202 = vmatprep.mubr.f32.mxu0 0.0
      %1203 = vmatmul.mubr.f32.gmra.mrb[0].mxu0 %v852
      %v1204 = vpop.f32.mrb[0].mxu0
      %v1205 = vadd.f32 0.0, %v1204
      %v1206 = vpop.f32.mrb[0].mxu0
      %1207 = vmatprep.mubr.f32.mxu0 0.0
      %1208 = vmatmul.mubr.f32.gmra.mrb[0].mxu0 %v853
      %v1209 = vpop.f32.mrb[0].mxu0
      %v1210 = vadd.f32 0.0, %v1209
      %v1211 = vpop.f32.mrb[0].mxu0
      %1212 = vmatprep.mubr.f32.mxu0 0.0
      %1213 = vmatmul.mubr.f32.gmra.mrb[0].mxu0 %v854
      %v1214 = vpop.f32.mrb[0].mxu0
      %v1215 = vadd.f32 0.0, %v1214
      %v1216 = vpop.f32.mrb[0].mxu0
      %1217 = vdwg.mxu0
      %1218 = vmatprep.subr.mxu0 0.0
      %1219 = vmatpush1.msra.mxu0 %v960
      %1220 = vmatprep.subr.mxu0 0.0
      %1221 = vmatpush1.msra.mxu0 %v961
      %1222 = vmatprep.subr.mxu0 0.0
      %1223 = vmatpush1.msra.mxu0 %v962
      %1224 = vmatprep.subr.mxu0 0.0
      %1225 = vmatpush1.msra.mxu0 %v963
      %1226 = vmatprep.subr.mxu0 0.0
      %1227 = vmatpush1.msra.mxu0 %v964
      %1228 = vmatprep.subr.mxu0 0.0
      %1229 = vmatpush1.msra.mxu0 %v965
      %1230 = vmatprep.subr.mxu0 0.0
      %1231 = vmatpush1.msra.mxu0 %v966
      %1232 = vmatprep.subr.mxu0 0.0
      %1233 = vmatpush1.msra.mxu0 %v967
      %1234 = vmatprep.subr.mxu0 0.0
      %1235 = vmatpush1.msra.mxu0 %v968
      %1236 = vmatprep.subr.mxu0 0.0
      %1237 = vmatpush1.msra.mxu0 %v969
      %1238 = vmatprep.subr.mxu0 0.0
      %1239 = vmatpush1.msra.mxu0 %v970
      %1240 = vmatprep.subr.mxu0 0.0
      %1241 = vmatpush1.msra.mxu0 %v971
      %1242 = vmatprep.subr.mxu0 0.0
      %1243 = vmatpush1.msra.mxu0 %v972
      %1244 = vmatprep.subr.mxu0 0.0
      %1245 = vmatpush1.msra.mxu0 %v973
      %1246 = vmatprep.subr.mxu0 0.0
      %1247 = vmatpush1.msra.mxu0 %v974
      %1248 = vmatprep.subr.mxu0 0.0
      %1249 = vmatpush1.msra.mxu0 %v975
      %1250 = vmatprep.subr.mxu0 0.0
      %1251 = vmatpush1.msra.mxu0 0.0
      %1252 = vmatprep.subr.mxu0 0.0
      %1253 = vmatpush1.msra.mxu0 0.0
      %1254 = vmatprep.subr.mxu0 0.0
      %1255 = vmatpush1.msra.mxu0 0.0
      %1256 = vmatprep.subr.mxu0 0.0
      %1257 = vmatpush1.msra.mxu0 0.0
      %1258 = vmatprep.subr.mxu0 0.0
      %1259 = vmatpush1.msra.mxu0 0.0
      %1260 = vmatprep.subr.mxu0 0.0
      %1261 = vmatpush1.msra.mxu0 0.0
      %1262 = vmatprep.subr.mxu0 0.0
      %1263 = vmatpush1.msra.mxu0 0.0
      %1264 = vmatprep.subr.mxu0 0.0
      %1265 = vmatpush1.msra.mxu0 0.0
      %1266 = vmatprep.subr.mxu0 0.0
      %1267 = vmatpush1.msra.mxu0 0.0
      %1268 = vmatprep.subr.mxu0 0.0
      %1269 = vmatpush1.msra.mxu0 0.0
      %1270 = vmatprep.subr.mxu0 0.0
      %1271 = vmatpush1.msra.mxu0 0.0
      %1272 = vmatprep.subr.mxu0 0.0
      %1273 = vmatpush1.msra.mxu0 0.0
      %1274 = vmatprep.subr.mxu0 0.0
      %1275 = vmatpush1.msra.mxu0 0.0
      %1276 = vmatprep.subr.mxu0 0.0
      %1277 = vmatpush1.msra.mxu0 0.0
      %1278 = vmatprep.subr.mxu0 0.0
      %1279 = vmatpush1.msra.mxu0 0.0
      %1280 = vmatprep.subr.mxu0 0.0
      %1281 = vmatpush1.msra.mxu0 0.0
      %1282 = vmatprep.mubr.f32.mxu0 0.0
      %1283 = vmatmul.mubr.f32.gmra.mrb[0].mxu0 0.0
      %v1284 = vpop.f32.mrb[0].mxu0
      %v1285 = vadd.f32 %v1060, %v1284
      %v1286 = vpop.f32.mrb[0].mxu0
      %1287 = vmatprep.mubr.f32.mxu0 0.0
      %1288 = vmatmul.mubr.f32.gmra.mrb[0].mxu0 0.0
      %v1289 = vpop.f32.mrb[0].mxu0
      %v1290 = vadd.f32 %v1065, %v1289
      %v1291 = vpop.f32.mrb[0].mxu0
      %1292 = vmatprep.mubr.f32.mxu0 0.0
      %1293 = vmatmul.mubr.f32.gmra.mrb[0].mxu0 %v930
      %v1294 = vpop.f32.mrb[0].mxu0
      %v1295 = vadd.f32 %v1070, %v1294
      %v1296 = vpop.f32.mrb[0].mxu0
      %1297 = vmatprep.mubr.f32.mxu0 0.0
      %1298 = vmatmul.mubr.f32.gmra.mrb[0].mxu0 %v931
      %v1299 = vpop.f32.mrb[0].mxu0
      %v1300 = vadd.f32 %v1075, %v1299
      %v1301 = vpop.f32.mrb[0].mxu0
      %1302 = vmatprep.mubr.f32.mxu0 0.0
      %1303 = vmatmul.mubr.f32.gmra.mrb[0].mxu0 %v932
      %v1304 = vpop.f32.mrb[0].mxu0
      %v1305 = vadd.f32 %v1080, %v1304
      %v1306 = vpop.f32.mrb[0].mxu0
      %1307 = vmatprep.mubr.f32.mxu0 0.0
      %1308 = vmatmul.mubr.f32.gmra.mrb[0].mxu0 %v933
      %v1309 = vpop.f32.mrb[0].mxu0
      %v1310 = vadd.f32 %v1085, %v1309
      %v1311 = vpop.f32.mrb[0].mxu0
      %1312 = vmatprep.mubr.f32.mxu0 0.0
      %1313 = vmatmul.mubr.f32.gmra.mrb[0].mxu0 %v934
      %v1314 = vpop.f32.mrb[0].mxu0
      %v1315 = vadd.f32 %v1090, %v1314
      %v1316 = vpop.f32.mrb[0].mxu0
      %1317 = vmatprep.mubr.f32.mxu0 0.0
      %1318 = vmatmul.mubr.f32.gmra.mrb[0].mxu0 %v935
      %v1319 = vpop.f32.mrb[0].mxu0
      %v1320 = vadd.f32 %v1095, %v1319
      %v1321 = vpop.f32.mrb[0].mxu0
      %1322 = vmatprep.mubr.f32.mxu0 0.0
      %1323 = vmatmul.mubr.f32.gmra.mrb[0].mxu0 %v936
      %v1324 = vpop.f32.mrb[0].mxu0
      %v1325 = vadd.f32 %v1100, %v1324
      %v1326 = vpop.f32.mrb[0].mxu0
      %1327 = vmatprep.mubr.f32.mxu0 0.0
      %1328 = vmatmul.mubr.f32.gmra.mrb[0].mxu0 %v937
      %v1329 = vpop.f32.mrb[0].mxu0
      %v1330 = vadd.f32 %v1105, %v1329
      %v1331 = vpop.f32.mrb[0].mxu0
      %1332 = vmatprep.mubr.f32.mxu0 0.0
      %1333 = vmatmul.mubr.f32.gmra.mrb[0].mxu0 %v938
      %v1334 = vpop.f32.mrb[0].mxu0
      %v1335 = vadd.f32 %v1110, %v1334
      %v1336 = vpop.f32.mrb[0].mxu0
      %1337 = vmatprep.mubr.f32.mxu0 0.0
      %1338 = vmatmul.mubr.f32.gmra.mrb[0].mxu0 %v939
      %v1339 = vpop.f32.mrb[0].mxu0
      %v1340 = vadd.f32 %v1115, %v1339
      %v1341 = vpop.f32.mrb[0].mxu0
      %1342 = vmatprep.mubr.f32.mxu0 0.0
      %1343 = vmatmul.mubr.f32.gmra.mrb[0].mxu0 %v940
      %v1344 = vpop.f32.mrb[0].mxu0
      %v1345 = vadd.f32 %v1120, %v1344
      %v1346 = vpop.f32.mrb[0].mxu0
      %1347 = vmatprep.mubr.f32.mxu0 0.0
      %1348 = vmatmul.mubr.f32.gmra.mrb[0].mxu0 %v941
      %v1349 = vpop.f32.mrb[0].mxu0
      %v1350 = vadd.f32 %v1125, %v1349
      %v1351 = vpop.f32.mrb[0].mxu0
      %1352 = vmatprep.mubr.f32.mxu0 0.0
      %1353 = vmatmul.mubr.f32.gmra.mrb[0].mxu0 %v942
      %v1354 = vpop.f32.mrb[0].mxu0
      %v1355 = vadd.f32 %v1130, %v1354
      %v1356 = vpop.f32.mrb[0].mxu0
      %1357 = vmatprep.mubr.f32.mxu0 0.0
      %1358 = vmatmul.mubr.f32.gmra.mrb[0].mxu0 %v943
      %v1359 = vpop.f32.mrb[0].mxu0
      %v1360 = vadd.f32 %v1135, %v1359
      %v1361 = vpop.f32.mrb[0].mxu0
      %1362 = vmatprep.mubr.f32.mxu0 0.0
      %1363 = vmatmul.mubr.f32.gmra.mrb[0].mxu0 %v944
      %v1364 = vpop.f32.mrb[0].mxu0
      %v1365 = vadd.f32 %v1140, %v1364
      %v1366 = vpop.f32.mrb[0].mxu0
      %1367 = vmatprep.mubr.f32.mxu0 0.0
      %1368 = vmatmul.mubr.f32.gmra.mrb[0].mxu0 %v945
      %v1369 = vpop.f32.mrb[0].mxu0
      %v1370 = vadd.f32 %v1145, %v1369
      %v1371 = vpop.f32.mrb[0].mxu0
      %1372 = vmatprep.mubr.f32.mxu0 0.0
      %1373 = vmatmul.mubr.f32.gmra.mrb[0].mxu0 %v946
      %v1374 = vpop.f32.mrb[0].mxu0
      %v1375 = vadd.f32 %v1150, %v1374
      %v1376 = vpop.f32.mrb[0].mxu0
      %1377 = vmatprep.mubr.f32.mxu0 0.0
      %1378 = vmatmul.mubr.f32.gmra.mrb[0].mxu0 %v947
      %v1379 = vpop.f32.mrb[0].mxu0
      %v1380 = vadd.f32 %v1155, %v1379
      %v1381 = vpop.f32.mrb[0].mxu0
      %1382 = vmatprep.mubr.f32.mxu0 0.0
      %1383 = vmatmul.mubr.f32.gmra.mrb[0].mxu0 %v948
      %v1384 = vpop.f32.mrb[0].mxu0
      %v1385 = vadd.f32 %v1160, %v1384
      %v1386 = vpop.f32.mrb[0].mxu0
      %1387 = vmatprep.mubr.f32.mxu0 0.0
      %1388 = vmatmul.mubr.f32.gmra.mrb[0].mxu0 %v949
      %v1389 = vpop.f32.mrb[0].mxu0
      %v1390 = vadd.f32 %v1165, %v1389
      %v1391 = vpop.f32.mrb[0].mxu0
      %1392 = vmatprep.mubr.f32.mxu0 0.0
      %1393 = vmatmul.mubr.f32.gmra.mrb[0].mxu0 %v950
      %v1394 = vpop.f32.mrb[0].mxu0
      %v1395 = vadd.f32 %v1170, %v1394
      %v1396 = vpop.f32.mrb[0].mxu0
      %1397 = vmatprep.mubr.f32.mxu0 0.0
      %1398 = vmatmul.mubr.f32.gmra.mrb[0].mxu0 %v951
      %v1399 = vpop.f32.mrb[0].mxu0
      %v1400 = vadd.f32 %v1175, %v1399
      %v1401 = vpop.f32.mrb[0].mxu0
      %1402 = vmatprep.mubr.f32.mxu0 0.0
      %1403 = vmatmul.mubr.f32.gmra.mrb[0].mxu0 %v952
      %v1404 = vpop.f32.mrb[0].mxu0
      %v1405 = vadd.f32 %v1180, %v1404
      %v1406 = vpop.f32.mrb[0].mxu0
      %1407 = vmatprep.mubr.f32.mxu0 0.0
      %1408 = vmatmul.mubr.f32.gmra.mrb[0].mxu0 %v953
      %v1409 = vpop.f32.mrb[0].mxu0
      %v1410 = vadd.f32 %v1185, %v1409
      %v1411 = vpop.f32.mrb[0].mxu0
      %1412 = vmatprep.mubr.f32.mxu0 0.0
      %1413 = vmatmul.mubr.f32.gmra.mrb[0].mxu0 %v954
      %v1414 = vpop.f32.mrb[0].mxu0
      %v1415 = vadd.f32 %v1190, %v1414
      %v1416 = vpop.f32.mrb[0].mxu0
      %1417 = vmatprep.mubr.f32.mxu0 0.0
      %1418 = vmatmul.mubr.f32.gmra.mrb[0].mxu0 %v955
      %v1419 = vpop.f32.mrb[0].mxu0
      %v1420 = vadd.f32 %v1195, %v1419
      %v1421 = vpop.f32.mrb[0].mxu0
      %1422 = vmatprep.mubr.f32.mxu0 0.0
      %1423 = vmatmul.mubr.f32.gmra.mrb[0].mxu0 %v956
      %v1424 = vpop.f32.mrb[0].mxu0
      %v1425 = vadd.f32 %v1200, %v1424
      %v1426 = vpop.f32.mrb[0].mxu0
      %1427 = vmatprep.mubr.f32.mxu0 0.0
      %1428 = vmatmul.mubr.f32.gmra.mrb[0].mxu0 %v957
      %v1429 = vpop.f32.mrb[0].mxu0
      %v1430 = vadd.f32 %v1205, %v1429
      %v1431 = vpop.f32.mrb[0].mxu0
      %1432 = vmatprep.mubr.f32.mxu0 0.0
      %1433 = vmatmul.mubr.f32.gmra.mrb[0].mxu0 %v958
      %v1434 = vpop.f32.mrb[0].mxu0
      %v1435 = vadd.f32 %v1210, %v1434
      %v1436 = vpop.f32.mrb[0].mxu0
      %1437 = vmatprep.mubr.f32.mxu0 0.0
      %1438 = vmatmul.mubr.f32.gmra.mrb[0].mxu0 %v959
      %v1439 = vpop.f32.mrb[0].mxu0
      %v1440 = vadd.f32 %v1215, %v1439
      %v1441 = vpop.f32.mrb[0].mxu0
      %1442 = vdwg.mxu0
      %v1443 = vrot.slane %v825, 1
      %v1444 = vrot.slane %v826, 1
      %v1445 = vrot.slane %v827, 1
      %v1446 = vrot.slane %v828, 1
      %v1447 = vrot.slane %v829, 1
      %v1448 = vrot.slane %v830, 1
      %v1449 = vrot.slane %v831, 1
      %v1450 = vrot.slane %v832, 1
      %v1451 = vrot.slane %v833, 1
      %v1452 = vrot.slane %v834, 1
      %v1453 = vrot.slane %v835, 1
      %v1454 = vrot.slane %v836, 1
      %v1455 = vrot.slane %v837, 1
      %v1456 = vrot.slane %v838, 1
      %v1457 = vrot.slane %v839, 1
      %v1458 = vrot.slane %v840, 1
      %v1459 = vrot.slane %v841, 1
      %v1460 = vrot.slane %v842, 1
      %v1461 = vrot.slane %v843, 1
      %v1462 = vrot.slane %v844, 1
      %v1463 = vrot.slane %v845, 1
      %v1464 = vrot.slane %v846, 1
      %v1465 = vrot.slane %v847, 1
      %v1466 = vrot.slane %v848, 1
      %v1467 = vrot.slane %v849, 1
      %v1468 = vrot.slane %v850, 1
      %v1469 = vrot.slane %v851, 1
      %v1470 = vrot.slane %v852, 1
      %v1471 = vrot.slane %v853, 1
      %v1472 = vrot.slane %v854, 1
      %v1473 = vrot.slane %v855, 1
      %vm1474 = vcmp.lt.s32.totalorder %v858, 7
      %v1475 = vsel %vm1474, %v1472, %v1473
      %v1476 = vsel %vm1474, %v1471, %v1472
      %v1477 = vsel %vm1474, %v1470, %v1471
      %v1478 = vsel %vm1474, %v1469, %v1470
      %v1479 = vsel %vm1474, %v1468, %v1469
      %v1480 = vsel %vm1474, %v1467, %v1468
      %v1481 = vsel %vm1474, %v1466, %v1467
      %v1482 = vsel %vm1474, %v1465, %v1466
      %v1483 = vsel %vm1474, %v1464, %v1465
      %v1484 = vsel %vm1474, %v1463, %v1464
      %v1485 = vsel %vm1474, %v1462, %v1463
      %v1486 = vsel %vm1474, %v1461, %v1462
      %v1487 = vsel %vm1474, %v1460, %v1461
      %v1488 = vsel %vm1474, %v1459, %v1460
      %v1489 = vsel %vm1474, %v1458, %v1459
      %v1490 = vsel %vm1474, %v1457, %v1458
      %v1491 = vsel %vm1474, %v1456, %v1457
      %v1492 = vsel %vm1474, %v1455, %v1456
      %v1493 = vsel %vm1474, %v1454, %v1455
      %v1494 = vsel %vm1474, %v1453, %v1454
      %v1495 = vsel %vm1474, %v1452, %v1453
      %v1496 = vsel %vm1474, %v1451, %v1452
      %v1497 = vsel %vm1474, %v1450, %v1451
      %v1498 = vsel %vm1474, %v1449, %v1450
      %v1499 = vsel %vm1474, %v1448, %v1449
      %v1500 = vsel %vm1474, %v1447, %v1448
      %v1501 = vsel %vm1474, %v1446, %v1447
      %v1502 = vsel %vm1474, %v1445, %v1446
      %v1503 = vsel %vm1474, %v1444, %v1445
      %v1504 = vsel %vm1474, %v1443, %v1444
      %v1505 = vsel %vm862, 1, 0
      %v1506 = vsel %vm863, 1, 0
      %vm1507 = vcmp.eq.s32.totalorder %v1505, 1
      %vm1508 = vcmp.eq.s32.totalorder %v1506, 1
      %v1509 = vsel %vm1507, %v1504, 0.0
      %v1510 = vsel %vm1508, %v1503, 0.0
      %v1511 = vsel %vm1507, %v1502, 0.0
      %v1512 = vsel %vm1508, %v1501, 0.0
      %v1513 = vsel %vm1507, %v1500, 0.0
      %v1514 = vsel %vm1508, %v1499, 0.0
      %v1515 = vsel %vm1507, %v1498, 0.0
      %v1516 = vsel %vm1508, %v1497, 0.0
      %v1517 = vsel %vm1507, %v1496, 0.0
      %v1518 = vsel %vm1508, %v1495, 0.0
      %v1519 = vsel %vm1507, %v1494, 0.0
      %v1520 = vsel %vm1508, %v1493, 0.0
      %v1521 = vsel %vm1507, %v1492, 0.0
      %v1522 = vsel %vm1508, %v1491, 0.0
      %v1523 = vsel %vm1507, %v1490, 0.0
      %v1524 = vsel %vm1508, %v1489, 0.0
      %v1525 = vsel %vm1507, %v1488, 0.0
      %v1526 = vsel %vm1508, %v1487, 0.0
      %v1527 = vsel %vm1507, %v1486, 0.0
      %v1528 = vsel %vm1508, %v1485, 0.0
      %v1529 = vsel %vm1507, %v1484, 0.0
      %v1530 = vsel %vm1508, %v1483, 0.0
      %v1531 = vsel %vm1507, %v1482, 0.0
      %v1532 = vsel %vm1508, %v1481, 0.0
      %v1533 = vsel %vm1507, %v1480, 0.0
      %v1534 = vsel %vm1508, %v1479, 0.0
      %v1535 = vsel %vm1507, %v1478, 0.0
      %v1536 = vsel %vm1508, %v1477, 0.0
      %v1537 = vsel %vm1507, %v1476, 0.0
      %v1538 = vsel %vm1508, %v1475, 0.0
      %s1539 = scalar_lea.vmem %s3, 256
      %v1540 = vld [vmem:[%s1539] sm:$0xff]
      %v1541 = vld [vmem:[%s1539 + $0x8] sm:$0xff]
      %v1542 = vld [vmem:[%s1539 + $0x10] sm:$0xff]
      %v1543 = vld [vmem:[%s1539 + $0x18] sm:$0xff]
      %v1544 = vld [vmem:[%s1539 + $0x20] sm:$0xff]
      %v1545 = vld [vmem:[%s1539 + $0x28] sm:$0xff]
      %v1546 = vld [vmem:[%s1539 + $0x30] sm:$0xff]
      %v1547 = vld [vmem:[%s1539 + $0x38] sm:$0xff]
      %v1548 = vld [vmem:[%s1539 + $0x40] sm:$0xff]
      %v1549 = vld [vmem:[%s1539 + $0x48] sm:$0xff]
      %v1550 = vld [vmem:[%s1539 + $0x50] sm:$0xff]
      %v1551 = vld [vmem:[%s1539 + $0x58] sm:$0xff]
      %v1552 = vld [vmem:[%s1539 + $0x60] sm:$0xff]
      %v1553 = vld [vmem:[%s1539 + $0x68] sm:$0xff]
      %v1554 = vld [vmem:[%s1539 + $0x70] sm:$0xff]
      %v1555 = vld [vmem:[%s1539 + $0x78] sm:$0xff]
      %1556 = vmatprep.subr.mxu0 0.0
      %1557 = vmatpush1.msra.mxu0 %v1540
      %1558 = vmatprep.subr.mxu0 0.0
      %1559 = vmatpush1.msra.mxu0 %v1541
      %1560 = vmatprep.subr.mxu0 0.0
      %1561 = vmatpush1.msra.mxu0 %v1542
      %1562 = vmatprep.subr.mxu0 0.0
      %1563 = vmatpush1.msra.mxu0 %v1543
      %1564 = vmatprep.subr.mxu0 0.0
      %1565 = vmatpush1.msra.mxu0 %v1544
      %1566 = vmatprep.subr.mxu0 0.0
      %1567 = vmatpush1.msra.mxu0 %v1545
      %1568 = vmatprep.subr.mxu0 0.0
      %1569 = vmatpush1.msra.mxu0 %v1546
      %1570 = vmatprep.subr.mxu0 0.0
      %1571 = vmatpush1.msra.mxu0 %v1547
      %1572 = vmatprep.subr.mxu0 0.0
      %1573 = vmatpush1.msra.mxu0 %v1548
      %1574 = vmatprep.subr.mxu0 0.0
      %1575 = vmatpush1.msra.mxu0 %v1549
      %1576 = vmatprep.subr.mxu0 0.0
      %1577 = vmatpush1.msra.mxu0 %v1550
      %1578 = vmatprep.subr.mxu0 0.0
      %1579 = vmatpush1.msra.mxu0 %v1551
      %1580 = vmatprep.subr.mxu0 0.0
      %1581 = vmatpush1.msra.mxu0 %v1552
      %1582 = vmatprep.subr.mxu0 0.0
      %1583 = vmatpush1.msra.mxu0 %v1553
      %1584 = vmatprep.subr.mxu0 0.0
      %1585 = vmatpush1.msra.mxu0 %v1554
      %1586 = vmatprep.subr.mxu0 0.0
      %1587 = vmatpush1.msra.mxu0 %v1555
      %1588 = vmatprep.subr.mxu0 0.0
      %1589 = vmatpush1.msra.mxu0 0.0
      %1590 = vmatprep.subr.mxu0 0.0
      %1591 = vmatpush1.msra.mxu0 0.0
      %1592 = vmatprep.subr.mxu0 0.0
      %1593 = vmatpush1.msra.mxu0 0.0
      %1594 = vmatprep.subr.mxu0 0.0
      %1595 = vmatpush1.msra.mxu0 0.0
      %1596 = vmatprep.subr.mxu0 0.0
      %1597 = vmatpush1.msra.mxu0 0.0
      %1598 = vmatprep.subr.mxu0 0.0
      %1599 = vmatpush1.msra.mxu0 0.0
      %1600 = vmatprep.subr.mxu0 0.0
      %1601 = vmatpush1.msra.mxu0 0.0
      %1602 = vmatprep.subr.mxu0 0.0
      %1603 = vmatpush1.msra.mxu0 0.0
      %1604 = vmatprep.subr.mxu0 0.0
      %1605 = vmatpush1.msra.mxu0 0.0
      %1606 = vmatprep.subr.mxu0 0.0
      %1607 = vmatpush1.msra.mxu0 0.0
      %1608 = vmatprep.subr.mxu0 0.0
      %1609 = vmatpush1.msra.mxu0 0.0
      %1610 = vmatprep.subr.mxu0 0.0
      %1611 = vmatpush1.msra.mxu0 0.0
      %1612 = vmatprep.subr.mxu0 0.0
      %1613 = vmatpush1.msra.mxu0 0.0
      %1614 = vmatprep.subr.mxu0 0.0
      %1615 = vmatpush1.msra.mxu0 0.0
      %1616 = vmatprep.subr.mxu0 0.0
      %1617 = vmatpush1.msra.mxu0 0.0
      %1618 = vmatprep.subr.mxu0 0.0
      %1619 = vmatpush1.msra.mxu0 0.0
      %1620 = vmatprep.mubr.f32.mxu0 0.0
      %1621 = vmatmul.mubr.f32.gmra.mrb[0].mxu0 0.0
      %v1622 = vpop.f32.mrb[0].mxu0
      %v1623 = vadd.f32 0.0, %v1622
      %v1624 = vpop.f32.mrb[0].mxu0
      %1625 = vmatprep.mubr.f32.mxu0 0.0
      %1626 = vmatmul.mubr.f32.gmra.mrb[0].mxu0 0.0
      %v1627 = vpop.f32.mrb[0].mxu0
      %v1628 = vadd.f32 0.0, %v1627
      %v1629 = vpop.f32.mrb[0].mxu0
      %1630 = vmatprep.mubr.f32.mxu0 0.0
      %1631 = vmatmul.mubr.f32.gmra.mrb[0].mxu0 %v1509
      %v1632 = vpop.f32.mrb[0].mxu0
      %v1633 = vadd.f32 0.0, %v1632
      %v1634 = vpop.f32.mrb[0].mxu0
      %1635 = vmatprep.mubr.f32.mxu0 0.0
      %1636 = vmatmul.mubr.f32.gmra.mrb[0].mxu0 %v1510
      %v1637 = vpop.f32.mrb[0].mxu0
      %v1638 = vadd.f32 0.0, %v1637
      %v1639 = vpop.f32.mrb[0].mxu0
      %1640 = vmatprep.mubr.f32.mxu0 0.0
      %1641 = vmatmul.mubr.f32.gmra.mrb[0].mxu0 %v1511
      %v1642 = vpop.f32.mrb[0].mxu0
      %v1643 = vadd.f32 0.0, %v1642
      %v1644 = vpop.f32.mrb[0].mxu0
      %1645 = vmatprep.mubr.f32.mxu0 0.0
      %1646 = vmatmul.mubr.f32.gmra.mrb[0].mxu0 %v1512
      %v1647 = vpop.f32.mrb[0].mxu0
      %v1648 = vadd.f32 0.0, %v1647
      %v1649 = vpop.f32.mrb[0].mxu0
      %1650 = vmatprep.mubr.f32.mxu0 0.0
      %1651 = vmatmul.mubr.f32.gmra.mrb[0].mxu0 %v1513
      %v1652 = vpop.f32.mrb[0].mxu0
      %v1653 = vadd.f32 0.0, %v1652
      %v1654 = vpop.f32.mrb[0].mxu0
      %1655 = vmatprep.mubr.f32.mxu0 0.0
      %1656 = vmatmul.mubr.f32.gmra.mrb[0].mxu0 %v1514
      %v1657 = vpop.f32.mrb[0].mxu0
      %v1658 = vadd.f32 0.0, %v1657
      %v1659 = vpop.f32.mrb[0].mxu0
      %1660 = vmatprep.mubr.f32.mxu0 0.0
      %1661 = vmatmul.mubr.f32.gmra.mrb[0].mxu0 %v1515
      %v1662 = vpop.f32.mrb[0].mxu0
      %v1663 = vadd.f32 0.0, %v1662
      %v1664 = vpop.f32.mrb[0].mxu0
      %1665 = vmatprep.mubr.f32.mxu0 0.0
      %1666 = vmatmul.mubr.f32.gmra.mrb[0].mxu0 %v1516
      %v1667 = vpop.f32.mrb[0].mxu0
      %v1668 = vadd.f32 0.0, %v1667
      %v1669 = vpop.f32.mrb[0].mxu0
      %1670 = vmatprep.mubr.f32.mxu0 0.0
      %1671 = vmatmul.mubr.f32.gmra.mrb[0].mxu0 %v1517
      %v1672 = vpop.f32.mrb[0].mxu0
      %v1673 = vadd.f32 0.0, %v1672
      %v1674 = vpop.f32.mrb[0].mxu0
      %1675 = vmatprep.mubr.f32.mxu0 0.0
      %1676 = vmatmul.mubr.f32.gmra.mrb[0].mxu0 %v1518
      %v1677 = vpop.f32.mrb[0].mxu0
      %v1678 = vadd.f32 0.0, %v1677
      %v1679 = vpop.f32.mrb[0].mxu0
      %1680 = vmatprep.mubr.f32.mxu0 0.0
      %1681 = vmatmul.mubr.f32.gmra.mrb[0].mxu0 %v1519
      %v1682 = vpop.f32.mrb[0].mxu0
      %v1683 = vadd.f32 0.0, %v1682
      %v1684 = vpop.f32.mrb[0].mxu0
      %1685 = vmatprep.mubr.f32.mxu0 0.0
      %1686 = vmatmul.mubr.f32.gmra.mrb[0].mxu0 %v1520
      %v1687 = vpop.f32.mrb[0].mxu0
      %v1688 = vadd.f32 0.0, %v1687
      %v1689 = vpop.f32.mrb[0].mxu0
      %1690 = vmatprep.mubr.f32.mxu0 0.0
      %1691 = vmatmul.mubr.f32.gmra.mrb[0].mxu0 %v1521
      %v1692 = vpop.f32.mrb[0].mxu0
      %v1693 = vadd.f32 0.0, %v1692
      %v1694 = vpop.f32.mrb[0].mxu0
      %1695 = vmatprep.mubr.f32.mxu0 0.0
      %1696 = vmatmul.mubr.f32.gmra.mrb[0].mxu0 %v1522
      %v1697 = vpop.f32.mrb[0].mxu0
      %v1698 = vadd.f32 0.0, %v1697
      %v1699 = vpop.f32.mrb[0].mxu0
      %1700 = vmatprep.mubr.f32.mxu0 0.0
      %1701 = vmatmul.mubr.f32.gmra.mrb[0].mxu0 %v1523
      %v1702 = vpop.f32.mrb[0].mxu0
      %v1703 = vadd.f32 0.0, %v1702
      %v1704 = vpop.f32.mrb[0].mxu0
      %1705 = vmatprep.mubr.f32.mxu0 0.0
      %1706 = vmatmul.mubr.f32.gmra.mrb[0].mxu0 %v1524
      %v1707 = vpop.f32.mrb[0].mxu0
      %v1708 = vadd.f32 0.0, %v1707
      %v1709 = vpop.f32.mrb[0].mxu0
      %1710 = vmatprep.mubr.f32.mxu0 0.0
      %1711 = vmatmul.mubr.f32.gmra.mrb[0].mxu0 %v1525
      %v1712 = vpop.f32.mrb[0].mxu0
      %v1713 = vadd.f32 0.0, %v1712
      %v1714 = vpop.f32.mrb[0].mxu0
      %1715 = vmatprep.mubr.f32.mxu0 0.0
      %1716 = vmatmul.mubr.f32.gmra.mrb[0].mxu0 %v1526
      %v1717 = vpop.f32.mrb[0].mxu0
      %v1718 = vadd.f32 0.0, %v1717
      %v1719 = vpop.f32.mrb[0].mxu0
      %1720 = vmatprep.mubr.f32.mxu0 0.0
      %1721 = vmatmul.mubr.f32.gmra.mrb[0].mxu0 %v1527
      %v1722 = vpop.f32.mrb[0].mxu0
      %v1723 = vadd.f32 0.0, %v1722
      %v1724 = vpop.f32.mrb[0].mxu0
      %1725 = vmatprep.mubr.f32.mxu0 0.0
      %1726 = vmatmul.mubr.f32.gmra.mrb[0].mxu0 %v1528
      %v1727 = vpop.f32.mrb[0].mxu0
      %v1728 = vadd.f32 0.0, %v1727
      %v1729 = vpop.f32.mrb[0].mxu0
      %1730 = vmatprep.mubr.f32.mxu0 0.0
      %1731 = vmatmul.mubr.f32.gmra.mrb[0].mxu0 %v1529
      %v1732 = vpop.f32.mrb[0].mxu0
      %v1733 = vadd.f32 0.0, %v1732
      %v1734 = vpop.f32.mrb[0].mxu0
      %1735 = vmatprep.mubr.f32.mxu0 0.0
      %1736 = vmatmul.mubr.f32.gmra.mrb[0].mxu0 %v1530
      %v1737 = vpop.f32.mrb[0].mxu0
      %v1738 = vadd.f32 0.0, %v1737
      %v1739 = vpop.f32.mrb[0].mxu0
      %1740 = vmatprep.mubr.f32.mxu0 0.0
      %1741 = vmatmul.mubr.f32.gmra.mrb[0].mxu0 %v1531
      %v1742 = vpop.f32.mrb[0].mxu0
      %v1743 = vadd.f32 0.0, %v1742
      %v1744 = vpop.f32.mrb[0].mxu0
      %1745 = vmatprep.mubr.f32.mxu0 0.0
      %1746 = vmatmul.mubr.f32.gmra.mrb[0].mxu0 %v1532
      %v1747 = vpop.f32.mrb[0].mxu0
      %v1748 = vadd.f32 0.0, %v1747
      %v1749 = vpop.f32.mrb[0].mxu0
      %1750 = vmatprep.mubr.f32.mxu0 0.0
      %1751 = vmatmul.mubr.f32.gmra.mrb[0].mxu0 %v1533
      %v1752 = vpop.f32.mrb[0].mxu0
      %v1753 = vadd.f32 0.0, %v1752
      %v1754 = vpop.f32.mrb[0].mxu0
      %1755 = vmatprep.mubr.f32.mxu0 0.0
      %1756 = vmatmul.mubr.f32.gmra.mrb[0].mxu0 %v1534
      %v1757 = vpop.f32.mrb[0].mxu0
      %v1758 = vadd.f32 0.0, %v1757
      %v1759 = vpop.f32.mrb[0].mxu0
      %1760 = vmatprep.mubr.f32.mxu0 0.0
      %1761 = vmatmul.mubr.f32.gmra.mrb[0].mxu0 %v1535
      %v1762 = vpop.f32.mrb[0].mxu0
      %v1763 = vadd.f32 0.0, %v1762
      %v1764 = vpop.f32.mrb[0].mxu0
      %1765 = vmatprep.mubr.f32.mxu0 0.0
      %1766 = vmatmul.mubr.f32.gmra.mrb[0].mxu0 %v1536
      %v1767 = vpop.f32.mrb[0].mxu0
      %v1768 = vadd.f32 0.0, %v1767
      %v1769 = vpop.f32.mrb[0].mxu0
      %1770 = vmatprep.mubr.f32.mxu0 0.0
      %1771 = vmatmul.mubr.f32.gmra.mrb[0].mxu0 %v1537
      %v1772 = vpop.f32.mrb[0].mxu0
      %v1773 = vadd.f32 0.0, %v1772
      %v1774 = vpop.f32.mrb[0].mxu0
      %1775 = vmatprep.mubr.f32.mxu0 0.0
      %1776 = vmatmul.mubr.f32.gmra.mrb[0].mxu0 %v1538
      %v1777 = vpop.f32.mrb[0].mxu0
      %v1778 = vadd.f32 0.0, %v1777
      %v1779 = vpop.f32.mrb[0].mxu0
      %1780 = vdwg.mxu0
      %v1781 = vadd.f32 %v1285, %v1623
      %v1782 = vadd.f32 %v1290, %v1628
      %v1783 = vadd.f32 %v1295, %v1633
      %v1784 = vadd.f32 %v1300, %v1638
      %v1785 = vadd.f32 %v1305, %v1643
      %v1786 = vadd.f32 %v1310, %v1648
      %v1787 = vadd.f32 %v1315, %v1653
      %v1788 = vadd.f32 %v1320, %v1658
      %v1789 = vadd.f32 %v1325, %v1663
      %v1790 = vadd.f32 %v1330, %v1668
      %v1791 = vadd.f32 %v1335, %v1673
      %v1792 = vadd.f32 %v1340, %v1678
      %v1793 = vadd.f32 %v1345, %v1683
      %v1794 = vadd.f32 %v1350, %v1688
      %v1795 = vadd.f32 %v1355, %v1693
      %v1796 = vadd.f32 %v1360, %v1698
      %v1797 = vadd.f32 %v1365, %v1703
      %v1798 = vadd.f32 %v1370, %v1708
      %v1799 = vadd.f32 %v1375, %v1713
      %v1800 = vadd.f32 %v1380, %v1718
      %v1801 = vadd.f32 %v1385, %v1723
      %v1802 = vadd.f32 %v1390, %v1728
      %v1803 = vadd.f32 %v1395, %v1733
      %v1804 = vadd.f32 %v1400, %v1738
      %v1805 = vadd.f32 %v1405, %v1743
      %v1806 = vadd.f32 %v1410, %v1748
      %v1807 = vadd.f32 %v1415, %v1753
      %v1808 = vadd.f32 %v1420, %v1758
      %v1809 = vadd.f32 %v1425, %v1763
      %v1810 = vadd.f32 %v1430, %v1768
      %v1811 = vadd.f32 %v1435, %v1773
      %v1812 = vadd.f32 %v1440, %v1778
      %v1813 = vrot.slane %v855, 7
      %v1814 = vsel %vm895, %v1813, %v894
      %v1815 = vsel %vm895, %v893, %v1813
      %v1816 = vsel %vm928, %v1815, 0.0
      %v1817 = vsel %vm929, %v1814, 0.0
      %s1818 = scalar_lea.vmem %s3, 384
      %v1819 = vld [vmem:[%s1818] sm:$0xff]
      %v1820 = vld [vmem:[%s1818 + $0x8] sm:$0xff]
      %v1821 = vld [vmem:[%s1818 + $0x10] sm:$0xff]
      %v1822 = vld [vmem:[%s1818 + $0x18] sm:$0xff]
      %v1823 = vld [vmem:[%s1818 + $0x20] sm:$0xff]
      %v1824 = vld [vmem:[%s1818 + $0x28] sm:$0xff]
      %v1825 = vld [vmem:[%s1818 + $0x30] sm:$0xff]
      %v1826 = vld [vmem:[%s1818 + $0x38] sm:$0xff]
      %v1827 = vld [vmem:[%s1818 + $0x40] sm:$0xff]
      %v1828 = vld [vmem:[%s1818 + $0x48] sm:$0xff]
      %v1829 = vld [vmem:[%s1818 + $0x50] sm:$0xff]
      %v1830 = vld [vmem:[%s1818 + $0x58] sm:$0xff]
      %v1831 = vld [vmem:[%s1818 + $0x60] sm:$0xff]
      %v1832 = vld [vmem:[%s1818 + $0x68] sm:$0xff]
      %v1833 = vld [vmem:[%s1818 + $0x70] sm:$0xff]
      %v1834 = vld [vmem:[%s1818 + $0x78] sm:$0xff]
      %1835 = vmatprep.subr.mxu0 0.0
      %1836 = vmatpush1.msra.mxu0 %v1819
      %1837 = vmatprep.subr.mxu0 0.0
      %1838 = vmatpush1.msra.mxu0 %v1820
      %1839 = vmatprep.subr.mxu0 0.0
      %1840 = vmatpush1.msra.mxu0 %v1821
      %1841 = vmatprep.subr.mxu0 0.0
      %1842 = vmatpush1.msra.mxu0 %v1822
      %1843 = vmatprep.subr.mxu0 0.0
      %1844 = vmatpush1.msra.mxu0 %v1823
      %1845 = vmatprep.subr.mxu0 0.0
      %1846 = vmatpush1.msra.mxu0 %v1824
      %1847 = vmatprep.subr.mxu0 0.0
      %1848 = vmatpush1.msra.mxu0 %v1825
      %1849 = vmatprep.subr.mxu0 0.0
      %1850 = vmatpush1.msra.mxu0 %v1826
      %1851 = vmatprep.subr.mxu0 0.0
      %1852 = vmatpush1.msra.mxu0 %v1827
      %1853 = vmatprep.subr.mxu0 0.0
      %1854 = vmatpush1.msra.mxu0 %v1828
      %1855 = vmatprep.subr.mxu0 0.0
      %1856 = vmatpush1.msra.mxu0 %v1829
      %1857 = vmatprep.subr.mxu0 0.0
      %1858 = vmatpush1.msra.mxu0 %v1830
      %1859 = vmatprep.subr.mxu0 0.0
      %1860 = vmatpush1.msra.mxu0 %v1831
      %1861 = vmatprep.subr.mxu0 0.0
      %1862 = vmatpush1.msra.mxu0 %v1832
      %1863 = vmatprep.subr.mxu0 0.0
      %1864 = vmatpush1.msra.mxu0 %v1833
      %1865 = vmatprep.subr.mxu0 0.0
      %1866 = vmatpush1.msra.mxu0 %v1834
      %1867 = vmatprep.subr.mxu0 0.0
      %1868 = vmatpush1.msra.mxu0 0.0
      %1869 = vmatprep.subr.mxu0 0.0
      %1870 = vmatpush1.msra.mxu0 0.0
      %1871 = vmatprep.subr.mxu0 0.0
      %1872 = vmatpush1.msra.mxu0 0.0
      %1873 = vmatprep.subr.mxu0 0.0
      %1874 = vmatpush1.msra.mxu0 0.0
      %1875 = vmatprep.subr.mxu0 0.0
      %1876 = vmatpush1.msra.mxu0 0.0
      %1877 = vmatprep.subr.mxu0 0.0
      %1878 = vmatpush1.msra.mxu0 0.0
      %1879 = vmatprep.subr.mxu0 0.0
      %1880 = vmatpush1.msra.mxu0 0.0
      %1881 = vmatprep.subr.mxu0 0.0
      %1882 = vmatpush1.msra.mxu0 0.0
      %1883 = vmatprep.subr.mxu0 0.0
      %1884 = vmatpush1.msra.mxu0 0.0
      %1885 = vmatprep.subr.mxu0 0.0
      %1886 = vmatpush1.msra.mxu0 0.0
      %1887 = vmatprep.subr.mxu0 0.0
      %1888 = vmatpush1.msra.mxu0 0.0
      %1889 = vmatprep.subr.mxu0 0.0
      %1890 = vmatpush1.msra.mxu0 0.0
      %1891 = vmatprep.subr.mxu0 0.0
      %1892 = vmatpush1.msra.mxu0 0.0
      %1893 = vmatprep.subr.mxu0 0.0
      %1894 = vmatpush1.msra.mxu0 0.0
      %1895 = vmatprep.subr.mxu0 0.0
      %1896 = vmatpush1.msra.mxu0 0.0
      %1897 = vmatprep.subr.mxu0 0.0
      %1898 = vmatpush1.msra.mxu0 0.0
      %1899 = vmatprep.mubr.f32.mxu0 0.0
      %1900 = vmatmul.mubr.f32.gmra.mrb[0].mxu0 %v930
      %v1901 = vpop.f32.mrb[0].mxu0
      %v1902 = vadd.f32 0.0, %v1901
      %v1903 = vpop.f32.mrb[0].mxu0
      %1904 = vmatprep.mubr.f32.mxu0 0.0
      %1905 = vmatmul.mubr.f32.gmra.mrb[0].mxu0 %v931
      %v1906 = vpop.f32.mrb[0].mxu0
      %v1907 = vadd.f32 0.0, %v1906
      %v1908 = vpop.f32.mrb[0].mxu0
      %1909 = vmatprep.mubr.f32.mxu0 0.0
      %1910 = vmatmul.mubr.f32.gmra.mrb[0].mxu0 %v932
      %v1911 = vpop.f32.mrb[0].mxu0
      %v1912 = vadd.f32 0.0, %v1911
      %v1913 = vpop.f32.mrb[0].mxu0
      %1914 = vmatprep.mubr.f32.mxu0 0.0
      %1915 = vmatmul.mubr.f32.gmra.mrb[0].mxu0 %v933
      %v1916 = vpop.f32.mrb[0].mxu0
      %v1917 = vadd.f32 0.0, %v1916
      %v1918 = vpop.f32.mrb[0].mxu0
      %1919 = vmatprep.mubr.f32.mxu0 0.0
      %1920 = vmatmul.mubr.f32.gmra.mrb[0].mxu0 %v934
      %v1921 = vpop.f32.mrb[0].mxu0
      %v1922 = vadd.f32 0.0, %v1921
      %v1923 = vpop.f32.mrb[0].mxu0
      %1924 = vmatprep.mubr.f32.mxu0 0.0
      %1925 = vmatmul.mubr.f32.gmra.mrb[0].mxu0 %v935
      %v1926 = vpop.f32.mrb[0].mxu0
      %v1927 = vadd.f32 0.0, %v1926
      %v1928 = vpop.f32.mrb[0].mxu0
      %1929 = vmatprep.mubr.f32.mxu0 0.0
      %1930 = vmatmul.mubr.f32.gmra.mrb[0].mxu0 %v936
      %v1931 = vpop.f32.mrb[0].mxu0
      %v1932 = vadd.f32 0.0, %v1931
      %v1933 = vpop.f32.mrb[0].mxu0
      %1934 = vmatprep.mubr.f32.mxu0 0.0
      %1935 = vmatmul.mubr.f32.gmra.mrb[0].mxu0 %v937
      %v1936 = vpop.f32.mrb[0].mxu0
      %v1937 = vadd.f32 0.0, %v1936
      %v1938 = vpop.f32.mrb[0].mxu0
      %1939 = vmatprep.mubr.f32.mxu0 0.0
      %1940 = vmatmul.mubr.f32.gmra.mrb[0].mxu0 %v938
      %v1941 = vpop.f32.mrb[0].mxu0
      %v1942 = vadd.f32 0.0, %v1941
      %v1943 = vpop.f32.mrb[0].mxu0
      %1944 = vmatprep.mubr.f32.mxu0 0.0
      %1945 = vmatmul.mubr.f32.gmra.mrb[0].mxu0 %v939
      %v1946 = vpop.f32.mrb[0].mxu0
      %v1947 = vadd.f32 0.0, %v1946
      %v1948 = vpop.f32.mrb[0].mxu0
      %1949 = vmatprep.mubr.f32.mxu0 0.0
      %1950 = vmatmul.mubr.f32.gmra.mrb[0].mxu0 %v940
      %v1951 = vpop.f32.mrb[0].mxu0
      %v1952 = vadd.f32 0.0, %v1951
      %v1953 = vpop.f32.mrb[0].mxu0
      %1954 = vmatprep.mubr.f32.mxu0 0.0
      %1955 = vmatmul.mubr.f32.gmra.mrb[0].mxu0 %v941
      %v1956 = vpop.f32.mrb[0].mxu0
      %v1957 = vadd.f32 0.0, %v1956
      %v1958 = vpop.f32.mrb[0].mxu0
      %1959 = vmatprep.mubr.f32.mxu0 0.0
      %1960 = vmatmul.mubr.f32.gmra.mrb[0].mxu0 %v942
      %v1961 = vpop.f32.mrb[0].mxu0
      %v1962 = vadd.f32 0.0, %v1961
      %v1963 = vpop.f32.mrb[0].mxu0
      %1964 = vmatprep.mubr.f32.mxu0 0.0
      %1965 = vmatmul.mubr.f32.gmra.mrb[0].mxu0 %v943
      %v1966 = vpop.f32.mrb[0].mxu0
      %v1967 = vadd.f32 0.0, %v1966
      %v1968 = vpop.f32.mrb[0].mxu0
      %1969 = vmatprep.mubr.f32.mxu0 0.0
      %1970 = vmatmul.mubr.f32.gmra.mrb[0].mxu0 %v944
      %v1971 = vpop.f32.mrb[0].mxu0
      %v1972 = vadd.f32 0.0, %v1971
      %v1973 = vpop.f32.mrb[0].mxu0
      %1974 = vmatprep.mubr.f32.mxu0 0.0
      %1975 = vmatmul.mubr.f32.gmra.mrb[0].mxu0 %v945
      %v1976 = vpop.f32.mrb[0].mxu0
      %v1977 = vadd.f32 0.0, %v1976
      %v1978 = vpop.f32.mrb[0].mxu0
      %1979 = vmatprep.mubr.f32.mxu0 0.0
      %1980 = vmatmul.mubr.f32.gmra.mrb[0].mxu0 %v946
      %v1981 = vpop.f32.mrb[0].mxu0
      %v1982 = vadd.f32 0.0, %v1981
      %v1983 = vpop.f32.mrb[0].mxu0
      %1984 = vmatprep.mubr.f32.mxu0 0.0
      %1985 = vmatmul.mubr.f32.gmra.mrb[0].mxu0 %v947
      %v1986 = vpop.f32.mrb[0].mxu0
      %v1987 = vadd.f32 0.0, %v1986
      %v1988 = vpop.f32.mrb[0].mxu0
      %1989 = vmatprep.mubr.f32.mxu0 0.0
      %1990 = vmatmul.mubr.f32.gmra.mrb[0].mxu0 %v948
      %v1991 = vpop.f32.mrb[0].mxu0
      %v1992 = vadd.f32 0.0, %v1991
      %v1993 = vpop.f32.mrb[0].mxu0
      %1994 = vmatprep.mubr.f32.mxu0 0.0
      %1995 = vmatmul.mubr.f32.gmra.mrb[0].mxu0 %v949
      %v1996 = vpop.f32.mrb[0].mxu0
      %v1997 = vadd.f32 0.0, %v1996
      %v1998 = vpop.f32.mrb[0].mxu0
      %1999 = vmatprep.mubr.f32.mxu0 0.0
      %2000 = vmatmul.mubr.f32.gmra.mrb[0].mxu0 %v950
      %v2001 = vpop.f32.mrb[0].mxu0
      %v2002 = vadd.f32 0.0, %v2001
      %v2003 = vpop.f32.mrb[0].mxu0
      %2004 = vmatprep.mubr.f32.mxu0 0.0
      %2005 = vmatmul.mubr.f32.gmra.mrb[0].mxu0 %v951
      %v2006 = vpop.f32.mrb[0].mxu0
      %v2007 = vadd.f32 0.0, %v2006
      %v2008 = vpop.f32.mrb[0].mxu0
      %2009 = vmatprep.mubr.f32.mxu0 0.0
      %2010 = vmatmul.mubr.f32.gmra.mrb[0].mxu0 %v952
      %v2011 = vpop.f32.mrb[0].mxu0
      %v2012 = vadd.f32 0.0, %v2011
      %v2013 = vpop.f32.mrb[0].mxu0
      %2014 = vmatprep.mubr.f32.mxu0 0.0
      %2015 = vmatmul.mubr.f32.gmra.mrb[0].mxu0 %v953
      %v2016 = vpop.f32.mrb[0].mxu0
      %v2017 = vadd.f32 0.0, %v2016
      %v2018 = vpop.f32.mrb[0].mxu0
      %2019 = vmatprep.mubr.f32.mxu0 0.0
      %2020 = vmatmul.mubr.f32.gmra.mrb[0].mxu0 %v954
      %v2021 = vpop.f32.mrb[0].mxu0
      %v2022 = vadd.f32 0.0, %v2021
      %v2023 = vpop.f32.mrb[0].mxu0
      %2024 = vmatprep.mubr.f32.mxu0 0.0
      %2025 = vmatmul.mubr.f32.gmra.mrb[0].mxu0 %v955
      %v2026 = vpop.f32.mrb[0].mxu0
      %v2027 = vadd.f32 0.0, %v2026
      %v2028 = vpop.f32.mrb[0].mxu0
      %2029 = vmatprep.mubr.f32.mxu0 0.0
      %2030 = vmatmul.mubr.f32.gmra.mrb[0].mxu0 %v956
      %v2031 = vpop.f32.mrb[0].mxu0
      %v2032 = vadd.f32 0.0, %v2031
      %v2033 = vpop.f32.mrb[0].mxu0
      %2034 = vmatprep.mubr.f32.mxu0 0.0
      %2035 = vmatmul.mubr.f32.gmra.mrb[0].mxu0 %v957
      %v2036 = vpop.f32.mrb[0].mxu0
      %v2037 = vadd.f32 0.0, %v2036
      %v2038 = vpop.f32.mrb[0].mxu0
      %2039 = vmatprep.mubr.f32.mxu0 0.0
      %2040 = vmatmul.mubr.f32.gmra.mrb[0].mxu0 %v958
      %v2041 = vpop.f32.mrb[0].mxu0
      %v2042 = vadd.f32 0.0, %v2041
      %v2043 = vpop.f32.mrb[0].mxu0
      %2044 = vmatprep.mubr.f32.mxu0 0.0
      %2045 = vmatmul.mubr.f32.gmra.mrb[0].mxu0 %v959
      %v2046 = vpop.f32.mrb[0].mxu0
      %v2047 = vadd.f32 0.0, %v2046
      %v2048 = vpop.f32.mrb[0].mxu0
      %2049 = vmatprep.mubr.f32.mxu0 0.0
      %2050 = vmatmul.mubr.f32.gmra.mrb[0].mxu0 %v1816
      %v2051 = vpop.f32.mrb[0].mxu0
      %v2052 = vadd.f32 0.0, %v2051
      %v2053 = vpop.f32.mrb[0].mxu0
      %2054 = vmatprep.mubr.f32.mxu0 0.0
      %2055 = vmatmul.mubr.f32.gmra.mrb[0].mxu0 %v1817
      %v2056 = vpop.f32.mrb[0].mxu0
      %v2057 = vadd.f32 0.0, %v2056
      %v2058 = vpop.f32.mrb[0].mxu0
      %2059 = vdwg.mxu0
      %v2060 = vadd.f32 %v1781, %v1902
      %v2061 = vadd.f32 %v1782, %v1907
      %v2062 = vadd.f32 %v1783, %v1912
      %v2063 = vadd.f32 %v1784, %v1917
      %v2064 = vadd.f32 %v1785, %v1922
      %v2065 = vadd.f32 %v1786, %v1927
      %v2066 = vadd.f32 %v1787, %v1932
      %v2067 = vadd.f32 %v1788, %v1937
      %v2068 = vadd.f32 %v1789, %v1942
      %v2069 = vadd.f32 %v1790, %v1947
      %v2070 = vadd.f32 %v1791, %v1952
      %v2071 = vadd.f32 %v1792, %v1957
      %v2072 = vadd.f32 %v1793, %v1962
      %v2073 = vadd.f32 %v1794, %v1967
      %v2074 = vadd.f32 %v1795, %v1972
      %v2075 = vadd.f32 %v1796, %v1977
      %v2076 = vadd.f32 %v1797, %v1982
      %v2077 = vadd.f32 %v1798, %v1987
      %v2078 = vadd.f32 %v1799, %v1992
      %v2079 = vadd.f32 %v1800, %v1997
      %v2080 = vadd.f32 %v1801, %v2002
      %v2081 = vadd.f32 %v1802, %v2007
      %v2082 = vadd.f32 %v1803, %v2012
      %v2083 = vadd.f32 %v1804, %v2017
      %v2084 = vadd.f32 %v1805, %v2022
      %v2085 = vadd.f32 %v1806, %v2027
      %v2086 = vadd.f32 %v1807, %v2032
      %v2087 = vadd.f32 %v1808, %v2037
      %v2088 = vadd.f32 %v1809, %v2042
      %v2089 = vadd.f32 %v1810, %v2047
      %v2090 = vadd.f32 %v1811, %v2052
      %v2091 = vadd.f32 %v1812, %v2057
      %s2092 = scalar_lea.vmem %s3, 512
      %v2093 = vld [vmem:[%s2092] sm:$0xff]
      %v2094 = vld [vmem:[%s2092 + $0x8] sm:$0xff]
      %v2095 = vld [vmem:[%s2092 + $0x10] sm:$0xff]
      %v2096 = vld [vmem:[%s2092 + $0x18] sm:$0xff]
      %v2097 = vld [vmem:[%s2092 + $0x20] sm:$0xff]
      %v2098 = vld [vmem:[%s2092 + $0x28] sm:$0xff]
      %v2099 = vld [vmem:[%s2092 + $0x30] sm:$0xff]
      %v2100 = vld [vmem:[%s2092 + $0x38] sm:$0xff]
      %v2101 = vld [vmem:[%s2092 + $0x40] sm:$0xff]
      %v2102 = vld [vmem:[%s2092 + $0x48] sm:$0xff]
      %v2103 = vld [vmem:[%s2092 + $0x50] sm:$0xff]
      %v2104 = vld [vmem:[%s2092 + $0x58] sm:$0xff]
      %v2105 = vld [vmem:[%s2092 + $0x60] sm:$0xff]
      %v2106 = vld [vmem:[%s2092 + $0x68] sm:$0xff]
      %v2107 = vld [vmem:[%s2092 + $0x70] sm:$0xff]
      %v2108 = vld [vmem:[%s2092 + $0x78] sm:$0xff]
      %2109 = vmatprep.subr.mxu0 0.0
      %2110 = vmatpush1.msra.mxu0 %v2093
      %2111 = vmatprep.subr.mxu0 0.0
      %2112 = vmatpush1.msra.mxu0 %v2094
      %2113 = vmatprep.subr.mxu0 0.0
      %2114 = vmatpush1.msra.mxu0 %v2095
      %2115 = vmatprep.subr.mxu0 0.0
      %2116 = vmatpush1.msra.mxu0 %v2096
      %2117 = vmatprep.subr.mxu0 0.0
      %2118 = vmatpush1.msra.mxu0 %v2097
      %2119 = vmatprep.subr.mxu0 0.0
      %2120 = vmatpush1.msra.mxu0 %v2098
      %2121 = vmatprep.subr.mxu0 0.0
      %2122 = vmatpush1.msra.mxu0 %v2099
      %2123 = vmatprep.subr.mxu0 0.0
      %2124 = vmatpush1.msra.mxu0 %v2100
      %2125 = vmatprep.subr.mxu0 0.0
      %2126 = vmatpush1.msra.mxu0 %v2101
      %2127 = vmatprep.subr.mxu0 0.0
      %2128 = vmatpush1.msra.mxu0 %v2102
      %2129 = vmatprep.subr.mxu0 0.0
      %2130 = vmatpush1.msra.mxu0 %v2103
      %2131 = vmatprep.subr.mxu0 0.0
      %2132 = vmatpush1.msra.mxu0 %v2104
      %2133 = vmatprep.subr.mxu0 0.0
      %2134 = vmatpush1.msra.mxu0 %v2105
      %2135 = vmatprep.subr.mxu0 0.0
      %2136 = vmatpush1.msra.mxu0 %v2106
      %2137 = vmatprep.subr.mxu0 0.0
      %2138 = vmatpush1.msra.mxu0 %v2107
      %2139 = vmatprep.subr.mxu0 0.0
      %2140 = vmatpush1.msra.mxu0 %v2108
      %2141 = vmatprep.subr.mxu0 0.0
      %2142 = vmatpush1.msra.mxu0 0.0
      %2143 = vmatprep.subr.mxu0 0.0
      %2144 = vmatpush1.msra.mxu0 0.0
      %2145 = vmatprep.subr.mxu0 0.0
      %2146 = vmatpush1.msra.mxu0 0.0
      %2147 = vmatprep.subr.mxu0 0.0
      %2148 = vmatpush1.msra.mxu0 0.0
      %2149 = vmatprep.subr.mxu0 0.0
      %2150 = vmatpush1.msra.mxu0 0.0
      %2151 = vmatprep.subr.mxu0 0.0
      %2152 = vmatpush1.msra.mxu0 0.0
      %2153 = vmatprep.subr.mxu0 0.0
      %2154 = vmatpush1.msra.mxu0 0.0
      %2155 = vmatprep.subr.mxu0 0.0
      %2156 = vmatpush1.msra.mxu0 0.0
      %2157 = vmatprep.subr.mxu0 0.0
      %2158 = vmatpush1.msra.mxu0 0.0
      %2159 = vmatprep.subr.mxu0 0.0
      %2160 = vmatpush1.msra.mxu0 0.0
      %2161 = vmatprep.subr.mxu0 0.0
      %2162 = vmatpush1.msra.mxu0 0.0
      %2163 = vmatprep.subr.mxu0 0.0
      %2164 = vmatpush1.msra.mxu0 0.0
      %2165 = vmatprep.subr.mxu0 0.0
      %2166 = vmatpush1.msra.mxu0 0.0
      %2167 = vmatprep.subr.mxu0 0.0
      %2168 = vmatpush1.msra.mxu0 0.0
      %2169 = vmatprep.subr.mxu0 0.0
      %2170 = vmatpush1.msra.mxu0 0.0
      %2171 = vmatprep.subr.mxu0 0.0
      %2172 = vmatpush1.msra.mxu0 0.0
      %2173 = vmatprep.mubr.f32.mxu0 0.0
      %2174 = vmatmul.mubr.f32.gmra.mrb[0].mxu0 %v825
      %v2175 = vpop.f32.mrb[0].mxu0
      %v2176 = vadd.f32 0.0, %v2175
      %v2177 = vpop.f32.mrb[0].mxu0
      %2178 = vmatprep.mubr.f32.mxu0 0.0
      %2179 = vmatmul.mubr.f32.gmra.mrb[0].mxu0 %v826
      %v2180 = vpop.f32.mrb[0].mxu0
      %v2181 = vadd.f32 0.0, %v2180
      %v2182 = vpop.f32.mrb[0].mxu0
      %2183 = vmatprep.mubr.f32.mxu0 0.0
      %2184 = vmatmul.mubr.f32.gmra.mrb[0].mxu0 %v827
      %v2185 = vpop.f32.mrb[0].mxu0
      %v2186 = vadd.f32 0.0, %v2185
      %v2187 = vpop.f32.mrb[0].mxu0
      %2188 = vmatprep.mubr.f32.mxu0 0.0
      %2189 = vmatmul.mubr.f32.gmra.mrb[0].mxu0 %v828
      %v2190 = vpop.f32.mrb[0].mxu0
      %v2191 = vadd.f32 0.0, %v2190
      %v2192 = vpop.f32.mrb[0].mxu0
      %2193 = vmatprep.mubr.f32.mxu0 0.0
      %2194 = vmatmul.mubr.f32.gmra.mrb[0].mxu0 %v829
      %v2195 = vpop.f32.mrb[0].mxu0
      %v2196 = vadd.f32 0.0, %v2195
      %v2197 = vpop.f32.mrb[0].mxu0
      %2198 = vmatprep.mubr.f32.mxu0 0.0
      %2199 = vmatmul.mubr.f32.gmra.mrb[0].mxu0 %v830
      %v2200 = vpop.f32.mrb[0].mxu0
      %v2201 = vadd.f32 0.0, %v2200
      %v2202 = vpop.f32.mrb[0].mxu0
      %2203 = vmatprep.mubr.f32.mxu0 0.0
      %2204 = vmatmul.mubr.f32.gmra.mrb[0].mxu0 %v831
      %v2205 = vpop.f32.mrb[0].mxu0
      %v2206 = vadd.f32 0.0, %v2205
      %v2207 = vpop.f32.mrb[0].mxu0
      %2208 = vmatprep.mubr.f32.mxu0 0.0
      %2209 = vmatmul.mubr.f32.gmra.mrb[0].mxu0 %v832
      %v2210 = vpop.f32.mrb[0].mxu0
      %v2211 = vadd.f32 0.0, %v2210
      %v2212 = vpop.f32.mrb[0].mxu0
      %2213 = vmatprep.mubr.f32.mxu0 0.0
      %2214 = vmatmul.mubr.f32.gmra.mrb[0].mxu0 %v833
      %v2215 = vpop.f32.mrb[0].mxu0
      %v2216 = vadd.f32 0.0, %v2215
      %v2217 = vpop.f32.mrb[0].mxu0
      %2218 = vmatprep.mubr.f32.mxu0 0.0
      %2219 = vmatmul.mubr.f32.gmra.mrb[0].mxu0 %v834
      %v2220 = vpop.f32.mrb[0].mxu0
      %v2221 = vadd.f32 0.0, %v2220
      %v2222 = vpop.f32.mrb[0].mxu0
      %2223 = vmatprep.mubr.f32.mxu0 0.0
      %2224 = vmatmul.mubr.f32.gmra.mrb[0].mxu0 %v835
      %v2225 = vpop.f32.mrb[0].mxu0
      %v2226 = vadd.f32 0.0, %v2225
      %v2227 = vpop.f32.mrb[0].mxu0
      %2228 = vmatprep.mubr.f32.mxu0 0.0
      %2229 = vmatmul.mubr.f32.gmra.mrb[0].mxu0 %v836
      %v2230 = vpop.f32.mrb[0].mxu0
      %v2231 = vadd.f32 0.0, %v2230
      %v2232 = vpop.f32.mrb[0].mxu0
      %2233 = vmatprep.mubr.f32.mxu0 0.0
      %2234 = vmatmul.mubr.f32.gmra.mrb[0].mxu0 %v837
      %v2235 = vpop.f32.mrb[0].mxu0
      %v2236 = vadd.f32 0.0, %v2235
      %v2237 = vpop.f32.mrb[0].mxu0
      %2238 = vmatprep.mubr.f32.mxu0 0.0
      %2239 = vmatmul.mubr.f32.gmra.mrb[0].mxu0 %v838
      %v2240 = vpop.f32.mrb[0].mxu0
      %v2241 = vadd.f32 0.0, %v2240
      %v2242 = vpop.f32.mrb[0].mxu0
      %2243 = vmatprep.mubr.f32.mxu0 0.0
      %2244 = vmatmul.mubr.f32.gmra.mrb[0].mxu0 %v839
      %v2245 = vpop.f32.mrb[0].mxu0
      %v2246 = vadd.f32 0.0, %v2245
      %v2247 = vpop.f32.mrb[0].mxu0
      %2248 = vmatprep.mubr.f32.mxu0 0.0
      %2249 = vmatmul.mubr.f32.gmra.mrb[0].mxu0 %v840
      %v2250 = vpop.f32.mrb[0].mxu0
      %v2251 = vadd.f32 0.0, %v2250
      %v2252 = vpop.f32.mrb[0].mxu0
      %2253 = vmatprep.mubr.f32.mxu0 0.0
      %2254 = vmatmul.mubr.f32.gmra.mrb[0].mxu0 %v841
      %v2255 = vpop.f32.mrb[0].mxu0
      %v2256 = vadd.f32 0.0, %v2255
      %v2257 = vpop.f32.mrb[0].mxu0
      %2258 = vmatprep.mubr.f32.mxu0 0.0
      %2259 = vmatmul.mubr.f32.gmra.mrb[0].mxu0 %v842
      %v2260 = vpop.f32.mrb[0].mxu0
      %v2261 = vadd.f32 0.0, %v2260
      %v2262 = vpop.f32.mrb[0].mxu0
      %2263 = vmatprep.mubr.f32.mxu0 0.0
      %2264 = vmatmul.mubr.f32.gmra.mrb[0].mxu0 %v843
      %v2265 = vpop.f32.mrb[0].mxu0
      %v2266 = vadd.f32 0.0, %v2265
      %v2267 = vpop.f32.mrb[0].mxu0
      %2268 = vmatprep.mubr.f32.mxu0 0.0
      %2269 = vmatmul.mubr.f32.gmra.mrb[0].mxu0 %v844
      %v2270 = vpop.f32.mrb[0].mxu0
      %v2271 = vadd.f32 0.0, %v2270
      %v2272 = vpop.f32.mrb[0].mxu0
      %2273 = vmatprep.mubr.f32.mxu0 0.0
      %2274 = vmatmul.mubr.f32.gmra.mrb[0].mxu0 %v845
      %v2275 = vpop.f32.mrb[0].mxu0
      %v2276 = vadd.f32 0.0, %v2275
      %v2277 = vpop.f32.mrb[0].mxu0
      %2278 = vmatprep.mubr.f32.mxu0 0.0
      %2279 = vmatmul.mubr.f32.gmra.mrb[0].mxu0 %v846
      %v2280 = vpop.f32.mrb[0].mxu0
      %v2281 = vadd.f32 0.0, %v2280
      %v2282 = vpop.f32.mrb[0].mxu0
      %2283 = vmatprep.mubr.f32.mxu0 0.0
      %2284 = vmatmul.mubr.f32.gmra.mrb[0].mxu0 %v847
      %v2285 = vpop.f32.mrb[0].mxu0
      %v2286 = vadd.f32 0.0, %v2285
      %v2287 = vpop.f32.mrb[0].mxu0
      %2288 = vmatprep.mubr.f32.mxu0 0.0
      %2289 = vmatmul.mubr.f32.gmra.mrb[0].mxu0 %v848
      %v2290 = vpop.f32.mrb[0].mxu0
      %v2291 = vadd.f32 0.0, %v2290
      %v2292 = vpop.f32.mrb[0].mxu0
      %2293 = vmatprep.mubr.f32.mxu0 0.0
      %2294 = vmatmul.mubr.f32.gmra.mrb[0].mxu0 %v849
      %v2295 = vpop.f32.mrb[0].mxu0
      %v2296 = vadd.f32 0.0, %v2295
      %v2297 = vpop.f32.mrb[0].mxu0
      %2298 = vmatprep.mubr.f32.mxu0 0.0
      %2299 = vmatmul.mubr.f32.gmra.mrb[0].mxu0 %v850
      %v2300 = vpop.f32.mrb[0].mxu0
      %v2301 = vadd.f32 0.0, %v2300
      %v2302 = vpop.f32.mrb[0].mxu0
      %2303 = vmatprep.mubr.f32.mxu0 0.0
      %2304 = vmatmul.mubr.f32.gmra.mrb[0].mxu0 %v851
      %v2305 = vpop.f32.mrb[0].mxu0
      %v2306 = vadd.f32 0.0, %v2305
      %v2307 = vpop.f32.mrb[0].mxu0
      %2308 = vmatprep.mubr.f32.mxu0 0.0
      %2309 = vmatmul.mubr.f32.gmra.mrb[0].mxu0 %v852
      %v2310 = vpop.f32.mrb[0].mxu0
      %v2311 = vadd.f32 0.0, %v2310
      %v2312 = vpop.f32.mrb[0].mxu0
      %2313 = vmatprep.mubr.f32.mxu0 0.0
      %2314 = vmatmul.mubr.f32.gmra.mrb[0].mxu0 %v853
      %v2315 = vpop.f32.mrb[0].mxu0
      %v2316 = vadd.f32 0.0, %v2315
      %v2317 = vpop.f32.mrb[0].mxu0
      %2318 = vmatprep.mubr.f32.mxu0 0.0
      %2319 = vmatmul.mubr.f32.gmra.mrb[0].mxu0 %v854
      %v2320 = vpop.f32.mrb[0].mxu0
      %v2321 = vadd.f32 0.0, %v2320
      %v2322 = vpop.f32.mrb[0].mxu0
      %2323 = vmatprep.mubr.f32.mxu0 0.0
      %2324 = vmatmul.mubr.f32.gmra.mrb[0].mxu0 %v855
      %v2325 = vpop.f32.mrb[0].mxu0
      %v2326 = vadd.f32 0.0, %v2325
      %v2327 = vpop.f32.mrb[0].mxu0
      %2328 = vmatprep.mubr.f32.mxu0 0.0
      %2329 = vmatmul.mubr.f32.gmra.mrb[0].mxu0 %v856
      %v2330 = vpop.f32.mrb[0].mxu0
      %v2331 = vadd.f32 0.0, %v2330
      %v2332 = vpop.f32.mrb[0].mxu0
      %2333 = vdwg.mxu0
      %v2334 = vadd.f32 %v2060, %v2176
      %v2335 = vadd.f32 %v2061, %v2181
      %v2336 = vadd.f32 %v2062, %v2186
      %v2337 = vadd.f32 %v2063, %v2191
      %v2338 = vadd.f32 %v2064, %v2196
      %v2339 = vadd.f32 %v2065, %v2201
      %v2340 = vadd.f32 %v2066, %v2206
      %v2341 = vadd.f32 %v2067, %v2211
      %v2342 = vadd.f32 %v2068, %v2216
      %v2343 = vadd.f32 %v2069, %v2221
      %v2344 = vadd.f32 %v2070, %v2226
      %v2345 = vadd.f32 %v2071, %v2231
      %v2346 = vadd.f32 %v2072, %v2236
      %v2347 = vadd.f32 %v2073, %v2241
      %v2348 = vadd.f32 %v2074, %v2246
      %v2349 = vadd.f32 %v2075, %v2251
      %v2350 = vadd.f32 %v2076, %v2256
      %v2351 = vadd.f32 %v2077, %v2261
      %v2352 = vadd.f32 %v2078, %v2266
      %v2353 = vadd.f32 %v2079, %v2271
      %v2354 = vadd.f32 %v2080, %v2276
      %v2355 = vadd.f32 %v2081, %v2281
      %v2356 = vadd.f32 %v2082, %v2286
      %v2357 = vadd.f32 %v2083, %v2291
      %v2358 = vadd.f32 %v2084, %v2296
      %v2359 = vadd.f32 %v2085, %v2301
      %v2360 = vadd.f32 %v2086, %v2306
      %v2361 = vadd.f32 %v2087, %v2311
      %v2362 = vadd.f32 %v2088, %v2316
      %v2363 = vadd.f32 %v2089, %v2321
      %v2364 = vadd.f32 %v2090, %v2326
      %v2365 = vadd.f32 %v2091, %v2331
      %v2366 = vrot.slane %v856, 1
      %v2367 = vsel %vm1474, %v1473, %v2366
      %v2368 = vsel %vm1474, %v2366, %v1443
      %v2369 = vsel %vm1507, %v2367, 0.0
      %v2370 = vsel %vm1508, %v2368, 0.0
      %s2371 = scalar_lea.vmem %s3, 640
      %v2372 = vld [vmem:[%s2371] sm:$0xff]
      %v2373 = vld [vmem:[%s2371 + $0x8] sm:$0xff]
      %v2374 = vld [vmem:[%s2371 + $0x10] sm:$0xff]
      %v2375 = vld [vmem:[%s2371 + $0x18] sm:$0xff]
      %v2376 = vld [vmem:[%s2371 + $0x20] sm:$0xff]
      %v2377 = vld [vmem:[%s2371 + $0x28] sm:$0xff]
      %v2378 = vld [vmem:[%s2371 + $0x30] sm:$0xff]
      %v2379 = vld [vmem:[%s2371 + $0x38] sm:$0xff]
      %v2380 = vld [vmem:[%s2371 + $0x40] sm:$0xff]
      %v2381 = vld [vmem:[%s2371 + $0x48] sm:$0xff]
      %v2382 = vld [vmem:[%s2371 + $0x50] sm:$0xff]
      %v2383 = vld [vmem:[%s2371 + $0x58] sm:$0xff]
      %v2384 = vld [vmem:[%s2371 + $0x60] sm:$0xff]
      %v2385 = vld [vmem:[%s2371 + $0x68] sm:$0xff]
      %v2386 = vld [vmem:[%s2371 + $0x70] sm:$0xff]
      %v2387 = vld [vmem:[%s2371 + $0x78] sm:$0xff]
      %2388 = vmatprep.subr.mxu0 0.0
      %2389 = vmatpush1.msra.mxu0 %v2372
      %2390 = vmatprep.subr.mxu0 0.0
      %2391 = vmatpush1.msra.mxu0 %v2373
      %2392 = vmatprep.subr.mxu0 0.0
      %2393 = vmatpush1.msra.mxu0 %v2374
      %2394 = vmatprep.subr.mxu0 0.0
      %2395 = vmatpush1.msra.mxu0 %v2375
      %2396 = vmatprep.subr.mxu0 0.0
      %2397 = vmatpush1.msra.mxu0 %v2376
      %2398 = vmatprep.subr.mxu0 0.0
      %2399 = vmatpush1.msra.mxu0 %v2377
      %2400 = vmatprep.subr.mxu0 0.0
      %2401 = vmatpush1.msra.mxu0 %v2378
      %2402 = vmatprep.subr.mxu0 0.0
      %2403 = vmatpush1.msra.mxu0 %v2379
      %2404 = vmatprep.subr.mxu0 0.0
      %2405 = vmatpush1.msra.mxu0 %v2380
      %2406 = vmatprep.subr.mxu0 0.0
      %2407 = vmatpush1.msra.mxu0 %v2381
      %2408 = vmatprep.subr.mxu0 0.0
      %2409 = vmatpush1.msra.mxu0 %v2382
      %2410 = vmatprep.subr.mxu0 0.0
      %2411 = vmatpush1.msra.mxu0 %v2383
      %2412 = vmatprep.subr.mxu0 0.0
      %2413 = vmatpush1.msra.mxu0 %v2384
      %2414 = vmatprep.subr.mxu0 0.0
      %2415 = vmatpush1.msra.mxu0 %v2385
      %2416 = vmatprep.subr.mxu0 0.0
      %2417 = vmatpush1.msra.mxu0 %v2386
      %2418 = vmatprep.subr.mxu0 0.0
      %2419 = vmatpush1.msra.mxu0 %v2387
      %2420 = vmatprep.subr.mxu0 0.0
      %2421 = vmatpush1.msra.mxu0 0.0
      %2422 = vmatprep.subr.mxu0 0.0
      %2423 = vmatpush1.msra.mxu0 0.0
      %2424 = vmatprep.subr.mxu0 0.0
      %2425 = vmatpush1.msra.mxu0 0.0
      %2426 = vmatprep.subr.mxu0 0.0
      %2427 = vmatpush1.msra.mxu0 0.0
      %2428 = vmatprep.subr.mxu0 0.0
      %2429 = vmatpush1.msra.mxu0 0.0
      %2430 = vmatprep.subr.mxu0 0.0
      %2431 = vmatpush1.msra.mxu0 0.0
      %2432 = vmatprep.subr.mxu0 0.0
      %2433 = vmatpush1.msra.mxu0 0.0
      %2434 = vmatprep.subr.mxu0 0.0
      %2435 = vmatpush1.msra.mxu0 0.0
      %2436 = vmatprep.subr.mxu0 0.0
      %2437 = vmatpush1.msra.mxu0 0.0
      %2438 = vmatprep.subr.mxu0 0.0
      %2439 = vmatpush1.msra.mxu0 0.0
      %2440 = vmatprep.subr.mxu0 0.0
      %2441 = vmatpush1.msra.mxu0 0.0
      %2442 = vmatprep.subr.mxu0 0.0
      %2443 = vmatpush1.msra.mxu0 0.0
      %2444 = vmatprep.subr.mxu0 0.0
      %2445 = vmatpush1.msra.mxu0 0.0
      %2446 = vmatprep.subr.mxu0 0.0
      %2447 = vmatpush1.msra.mxu0 0.0
      %2448 = vmatprep.subr.mxu0 0.0
      %2449 = vmatpush1.msra.mxu0 0.0
      %2450 = vmatprep.subr.mxu0 0.0
      %2451 = vmatpush1.msra.mxu0 0.0
      %2452 = vmatprep.mubr.f32.mxu0 0.0
      %2453 = vmatmul.mubr.f32.gmra.mrb[0].mxu0 %v1509
      %v2454 = vpop.f32.mrb[0].mxu0
      %v2455 = vadd.f32 0.0, %v2454
      %v2456 = vpop.f32.mrb[0].mxu0
      %2457 = vmatprep.mubr.f32.mxu0 0.0
      %2458 = vmatmul.mubr.f32.gmra.mrb[0].mxu0 %v1510
      %v2459 = vpop.f32.mrb[0].mxu0
      %v2460 = vadd.f32 0.0, %v2459
      %v2461 = vpop.f32.mrb[0].mxu0
      %2462 = vmatprep.mubr.f32.mxu0 0.0
      %2463 = vmatmul.mubr.f32.gmra.mrb[0].mxu0 %v1511
      %v2464 = vpop.f32.mrb[0].mxu0
      %v2465 = vadd.f32 0.0, %v2464
      %v2466 = vpop.f32.mrb[0].mxu0
      %2467 = vmatprep.mubr.f32.mxu0 0.0
      %2468 = vmatmul.mubr.f32.gmra.mrb[0].mxu0 %v1512
      %v2469 = vpop.f32.mrb[0].mxu0
      %v2470 = vadd.f32 0.0, %v2469
      %v2471 = vpop.f32.mrb[0].mxu0
      %2472 = vmatprep.mubr.f32.mxu0 0.0
      %2473 = vmatmul.mubr.f32.gmra.mrb[0].mxu0 %v1513
      %v2474 = vpop.f32.mrb[0].mxu0
      %v2475 = vadd.f32 0.0, %v2474
      %v2476 = vpop.f32.mrb[0].mxu0
      %2477 = vmatprep.mubr.f32.mxu0 0.0
      %2478 = vmatmul.mubr.f32.gmra.mrb[0].mxu0 %v1514
      %v2479 = vpop.f32.mrb[0].mxu0
      %v2480 = vadd.f32 0.0, %v2479
      %v2481 = vpop.f32.mrb[0].mxu0
      %2482 = vmatprep.mubr.f32.mxu0 0.0
      %2483 = vmatmul.mubr.f32.gmra.mrb[0].mxu0 %v1515
      %v2484 = vpop.f32.mrb[0].mxu0
      %v2485 = vadd.f32 0.0, %v2484
      %v2486 = vpop.f32.mrb[0].mxu0
      %2487 = vmatprep.mubr.f32.mxu0 0.0
      %2488 = vmatmul.mubr.f32.gmra.mrb[0].mxu0 %v1516
      %v2489 = vpop.f32.mrb[0].mxu0
      %v2490 = vadd.f32 0.0, %v2489
      %v2491 = vpop.f32.mrb[0].mxu0
      %2492 = vmatprep.mubr.f32.mxu0 0.0
      %2493 = vmatmul.mubr.f32.gmra.mrb[0].mxu0 %v1517
      %v2494 = vpop.f32.mrb[0].mxu0
      %v2495 = vadd.f32 0.0, %v2494
      %v2496 = vpop.f32.mrb[0].mxu0
      %2497 = vmatprep.mubr.f32.mxu0 0.0
      %2498 = vmatmul.mubr.f32.gmra.mrb[0].mxu0 %v1518
      %v2499 = vpop.f32.mrb[0].mxu0
      %v2500 = vadd.f32 0.0, %v2499
      %v2501 = vpop.f32.mrb[0].mxu0
      %2502 = vmatprep.mubr.f32.mxu0 0.0
      %2503 = vmatmul.mubr.f32.gmra.mrb[0].mxu0 %v1519
      %v2504 = vpop.f32.mrb[0].mxu0
      %v2505 = vadd.f32 0.0, %v2504
      %v2506 = vpop.f32.mrb[0].mxu0
      %2507 = vmatprep.mubr.f32.mxu0 0.0
      %2508 = vmatmul.mubr.f32.gmra.mrb[0].mxu0 %v1520
      %v2509 = vpop.f32.mrb[0].mxu0
      %v2510 = vadd.f32 0.0, %v2509
      %v2511 = vpop.f32.mrb[0].mxu0
      %2512 = vmatprep.mubr.f32.mxu0 0.0
      %2513 = vmatmul.mubr.f32.gmra.mrb[0].mxu0 %v1521
      %v2514 = vpop.f32.mrb[0].mxu0
      %v2515 = vadd.f32 0.0, %v2514
      %v2516 = vpop.f32.mrb[0].mxu0
      %2517 = vmatprep.mubr.f32.mxu0 0.0
      %2518 = vmatmul.mubr.f32.gmra.mrb[0].mxu0 %v1522
      %v2519 = vpop.f32.mrb[0].mxu0
      %v2520 = vadd.f32 0.0, %v2519
      %v2521 = vpop.f32.mrb[0].mxu0
      %2522 = vmatprep.mubr.f32.mxu0 0.0
      %2523 = vmatmul.mubr.f32.gmra.mrb[0].mxu0 %v1523
      %v2524 = vpop.f32.mrb[0].mxu0
      %v2525 = vadd.f32 0.0, %v2524
      %v2526 = vpop.f32.mrb[0].mxu0
      %2527 = vmatprep.mubr.f32.mxu0 0.0
      %2528 = vmatmul.mubr.f32.gmra.mrb[0].mxu0 %v1524
      %v2529 = vpop.f32.mrb[0].mxu0
      %v2530 = vadd.f32 0.0, %v2529
      %v2531 = vpop.f32.mrb[0].mxu0
      %2532 = vmatprep.mubr.f32.mxu0 0.0
      %2533 = vmatmul.mubr.f32.gmra.mrb[0].mxu0 %v1525
      %v2534 = vpop.f32.mrb[0].mxu0
      %v2535 = vadd.f32 0.0, %v2534
      %v2536 = vpop.f32.mrb[0].mxu0
      %2537 = vmatprep.mubr.f32.mxu0 0.0
      %2538 = vmatmul.mubr.f32.gmra.mrb[0].mxu0 %v1526
      %v2539 = vpop.f32.mrb[0].mxu0
      %v2540 = vadd.f32 0.0, %v2539
      %v2541 = vpop.f32.mrb[0].mxu0
      %2542 = vmatprep.mubr.f32.mxu0 0.0
      %2543 = vmatmul.mubr.f32.gmra.mrb[0].mxu0 %v1527
      %v2544 = vpop.f32.mrb[0].mxu0
      %v2545 = vadd.f32 0.0, %v2544
      %v2546 = vpop.f32.mrb[0].mxu0
      %2547 = vmatprep.mubr.f32.mxu0 0.0
      %2548 = vmatmul.mubr.f32.gmra.mrb[0].mxu0 %v1528
      %v2549 = vpop.f32.mrb[0].mxu0
      %v2550 = vadd.f32 0.0, %v2549
      %v2551 = vpop.f32.mrb[0].mxu0
      %2552 = vmatprep.mubr.f32.mxu0 0.0
      %2553 = vmatmul.mubr.f32.gmra.mrb[0].mxu0 %v1529
      %v2554 = vpop.f32.mrb[0].mxu0
      %v2555 = vadd.f32 0.0, %v2554
      %v2556 = vpop.f32.mrb[0].mxu0
      %2557 = vmatprep.mubr.f32.mxu0 0.0
      %2558 = vmatmul.mubr.f32.gmra.mrb[0].mxu0 %v1530
      %v2559 = vpop.f32.mrb[0].mxu0
      %v2560 = vadd.f32 0.0, %v2559
      %v2561 = vpop.f32.mrb[0].mxu0
      %2562 = vmatprep.mubr.f32.mxu0 0.0
      %2563 = vmatmul.mubr.f32.gmra.mrb[0].mxu0 %v1531
      %v2564 = vpop.f32.mrb[0].mxu0
      %v2565 = vadd.f32 0.0, %v2564
      %v2566 = vpop.f32.mrb[0].mxu0
      %2567 = vmatprep.mubr.f32.mxu0 0.0
      %2568 = vmatmul.mubr.f32.gmra.mrb[0].mxu0 %v1532
      %v2569 = vpop.f32.mrb[0].mxu0
      %v2570 = vadd.f32 0.0, %v2569
      %v2571 = vpop.f32.mrb[0].mxu0
      %2572 = vmatprep.mubr.f32.mxu0 0.0
      %2573 = vmatmul.mubr.f32.gmra.mrb[0].mxu0 %v1533
      %v2574 = vpop.f32.mrb[0].mxu0
      %v2575 = vadd.f32 0.0, %v2574
      %v2576 = vpop.f32.mrb[0].mxu0
      %2577 = vmatprep.mubr.f32.mxu0 0.0
      %2578 = vmatmul.mubr.f32.gmra.mrb[0].mxu0 %v1534
      %v2579 = vpop.f32.mrb[0].mxu0
      %v2580 = vadd.f32 0.0, %v2579
      %v2581 = vpop.f32.mrb[0].mxu0
      %2582 = vmatprep.mubr.f32.mxu0 0.0
      %2583 = vmatmul.mubr.f32.gmra.mrb[0].mxu0 %v1535
      %v2584 = vpop.f32.mrb[0].mxu0
      %v2585 = vadd.f32 0.0, %v2584
      %v2586 = vpop.f32.mrb[0].mxu0
      %2587 = vmatprep.mubr.f32.mxu0 0.0
      %2588 = vmatmul.mubr.f32.gmra.mrb[0].mxu0 %v1536
      %v2589 = vpop.f32.mrb[0].mxu0
      %v2590 = vadd.f32 0.0, %v2589
      %v2591 = vpop.f32.mrb[0].mxu0
      %2592 = vmatprep.mubr.f32.mxu0 0.0
      %2593 = vmatmul.mubr.f32.gmra.mrb[0].mxu0 %v1537
      %v2594 = vpop.f32.mrb[0].mxu0
      %v2595 = vadd.f32 0.0, %v2594
      %v2596 = vpop.f32.mrb[0].mxu0
      %2597 = vmatprep.mubr.f32.mxu0 0.0
      %2598 = vmatmul.mubr.f32.gmra.mrb[0].mxu0 %v1538
      %v2599 = vpop.f32.mrb[0].mxu0
      %v2600 = vadd.f32 0.0, %v2599
      %v2601 = vpop.f32.mrb[0].mxu0
      %2602 = vmatprep.mubr.f32.mxu0 0.0
      %2603 = vmatmul.mubr.f32.gmra.mrb[0].mxu0 %v2369
      %v2604 = vpop.f32.mrb[0].mxu0
      %v2605 = vadd.f32 0.0, %v2604
      %v2606 = vpop.f32.mrb[0].mxu0
      %2607 = vmatprep.mubr.f32.mxu0 0.0
      %2608 = vmatmul.mubr.f32.gmra.mrb[0].mxu0 %v2370
      %v2609 = vpop.f32.mrb[0].mxu0
      %v2610 = vadd.f32 0.0, %v2609
      %v2611 = vpop.f32.mrb[0].mxu0
      %2612 = vdwg.mxu0
      %v2613 = vadd.f32 %v2334, %v2455
      %v2614 = vadd.f32 %v2335, %v2460
      %v2615 = vadd.f32 %v2336, %v2465
      %v2616 = vadd.f32 %v2337, %v2470
      %v2617 = vadd.f32 %v2338, %v2475
      %v2618 = vadd.f32 %v2339, %v2480
      %v2619 = vadd.f32 %v2340, %v2485
      %v2620 = vadd.f32 %v2341, %v2490
      %v2621 = vadd.f32 %v2342, %v2495
      %v2622 = vadd.f32 %v2343, %v2500
      %v2623 = vadd.f32 %v2344, %v2505
      %v2624 = vadd.f32 %v2345, %v2510
      %v2625 = vadd.f32 %v2346, %v2515
      %v2626 = vadd.f32 %v2347, %v2520
      %v2627 = vadd.f32 %v2348, %v2525
      %v2628 = vadd.f32 %v2349, %v2530
      %v2629 = vadd.f32 %v2350, %v2535
      %v2630 = vadd.f32 %v2351, %v2540
      %v2631 = vadd.f32 %v2352, %v2545
      %v2632 = vadd.f32 %v2353, %v2550
      %v2633 = vadd.f32 %v2354, %v2555
      %v2634 = vadd.f32 %v2355, %v2560
      %v2635 = vadd.f32 %v2356, %v2565
      %v2636 = vadd.f32 %v2357, %v2570
      %v2637 = vadd.f32 %v2358, %v2575
      %v2638 = vadd.f32 %v2359, %v2580
      %v2639 = vadd.f32 %v2360, %v2585
      %v2640 = vadd.f32 %v2361, %v2590
      %v2641 = vadd.f32 %v2362, %v2595
      %v2642 = vadd.f32 %v2363, %v2600
      %v2643 = vadd.f32 %v2364, %v2605
      %v2644 = vadd.f32 %v2365, %v2610
      %s2645 = scalar_lea.vmem %s3, 768
      %v2646 = vld [vmem:[%s2645] sm:$0xff]
      %v2647 = vld [vmem:[%s2645 + $0x8] sm:$0xff]
      %v2648 = vld [vmem:[%s2645 + $0x10] sm:$0xff]
      %v2649 = vld [vmem:[%s2645 + $0x18] sm:$0xff]
      %v2650 = vld [vmem:[%s2645 + $0x20] sm:$0xff]
      %v2651 = vld [vmem:[%s2645 + $0x28] sm:$0xff]
      %v2652 = vld [vmem:[%s2645 + $0x30] sm:$0xff]
      %v2653 = vld [vmem:[%s2645 + $0x38] sm:$0xff]
      %v2654 = vld [vmem:[%s2645 + $0x40] sm:$0xff]
      %v2655 = vld [vmem:[%s2645 + $0x48] sm:$0xff]
      %v2656 = vld [vmem:[%s2645 + $0x50] sm:$0xff]
      %v2657 = vld [vmem:[%s2645 + $0x58] sm:$0xff]
      %v2658 = vld [vmem:[%s2645 + $0x60] sm:$0xff]
      %v2659 = vld [vmem:[%s2645 + $0x68] sm:$0xff]
      %v2660 = vld [vmem:[%s2645 + $0x70] sm:$0xff]
      %v2661 = vld [vmem:[%s2645 + $0x78] sm:$0xff]
      %2662 = vmatprep.subr.mxu0 0.0
      %2663 = vmatpush1.msra.mxu0 %v2646
      %2664 = vmatprep.subr.mxu0 0.0
      %2665 = vmatpush1.msra.mxu0 %v2647
      %2666 = vmatprep.subr.mxu0 0.0
      %2667 = vmatpush1.msra.mxu0 %v2648
      %2668 = vmatprep.subr.mxu0 0.0
      %2669 = vmatpush1.msra.mxu0 %v2649
      %2670 = vmatprep.subr.mxu0 0.0
      %2671 = vmatpush1.msra.mxu0 %v2650
      %2672 = vmatprep.subr.mxu0 0.0
      %2673 = vmatpush1.msra.mxu0 %v2651
      %2674 = vmatprep.subr.mxu0 0.0
      %2675 = vmatpush1.msra.mxu0 %v2652
      %2676 = vmatprep.subr.mxu0 0.0
      %2677 = vmatpush1.msra.mxu0 %v2653
      %2678 = vmatprep.subr.mxu0 0.0
      %2679 = vmatpush1.msra.mxu0 %v2654
      %2680 = vmatprep.subr.mxu0 0.0
      %2681 = vmatpush1.msra.mxu0 %v2655
      %2682 = vmatprep.subr.mxu0 0.0
      %2683 = vmatpush1.msra.mxu0 %v2656
      %2684 = vmatprep.subr.mxu0 0.0
      %2685 = vmatpush1.msra.mxu0 %v2657
      %2686 = vmatprep.subr.mxu0 0.0
      %2687 = vmatpush1.msra.mxu0 %v2658
      %2688 = vmatprep.subr.mxu0 0.0
      %2689 = vmatpush1.msra.mxu0 %v2659
      %2690 = vmatprep.subr.mxu0 0.0
      %2691 = vmatpush1.msra.mxu0 %v2660
      %2692 = vmatprep.subr.mxu0 0.0
      %2693 = vmatpush1.msra.mxu0 %v2661
      %2694 = vmatprep.subr.mxu0 0.0
      %2695 = vmatpush1.msra.mxu0 0.0
      %2696 = vmatprep.subr.mxu0 0.0
      %2697 = vmatpush1.msra.mxu0 0.0
      %2698 = vmatprep.subr.mxu0 0.0
      %2699 = vmatpush1.msra.mxu0 0.0
      %2700 = vmatprep.subr.mxu0 0.0
      %2701 = vmatpush1.msra.mxu0 0.0
      %2702 = vmatprep.subr.mxu0 0.0
      %2703 = vmatpush1.msra.mxu0 0.0
      %2704 = vmatprep.subr.mxu0 0.0
      %2705 = vmatpush1.msra.mxu0 0.0
      %2706 = vmatprep.subr.mxu0 0.0
      %2707 = vmatpush1.msra.mxu0 0.0
      %2708 = vmatprep.subr.mxu0 0.0
      %2709 = vmatpush1.msra.mxu0 0.0
      %2710 = vmatprep.subr.mxu0 0.0
      %2711 = vmatpush1.msra.mxu0 0.0
      %2712 = vmatprep.subr.mxu0 0.0
      %2713 = vmatpush1.msra.mxu0 0.0
      %2714 = vmatprep.subr.mxu0 0.0
      %2715 = vmatpush1.msra.mxu0 0.0
      %2716 = vmatprep.subr.mxu0 0.0
      %2717 = vmatpush1.msra.mxu0 0.0
      %2718 = vmatprep.subr.mxu0 0.0
      %2719 = vmatpush1.msra.mxu0 0.0
      %2720 = vmatprep.subr.mxu0 0.0
      %2721 = vmatpush1.msra.mxu0 0.0
      %2722 = vmatprep.subr.mxu0 0.0
      %2723 = vmatpush1.msra.mxu0 0.0
      %2724 = vmatprep.subr.mxu0 0.0
      %2725 = vmatpush1.msra.mxu0 0.0
      %2726 = vmatprep.mubr.f32.mxu0 0.0
      %2727 = vmatmul.mubr.f32.gmra.mrb[0].mxu0 %v932
      %v2728 = vpop.f32.mrb[0].mxu0
      %v2729 = vadd.f32 0.0, %v2728
      %v2730 = vpop.f32.mrb[0].mxu0
      %2731 = vmatprep.mubr.f32.mxu0 0.0
      %2732 = vmatmul.mubr.f32.gmra.mrb[0].mxu0 %v933
      %v2733 = vpop.f32.mrb[0].mxu0
      %v2734 = vadd.f32 0.0, %v2733
      %v2735 = vpop.f32.mrb[0].mxu0
      %2736 = vmatprep.mubr.f32.mxu0 0.0
      %2737 = vmatmul.mubr.f32.gmra.mrb[0].mxu0 %v934
      %v2738 = vpop.f32.mrb[0].mxu0
      %v2739 = vadd.f32 0.0, %v2738
      %v2740 = vpop.f32.mrb[0].mxu0
      %2741 = vmatprep.mubr.f32.mxu0 0.0
      %2742 = vmatmul.mubr.f32.gmra.mrb[0].mxu0 %v935
      %v2743 = vpop.f32.mrb[0].mxu0
      %v2744 = vadd.f32 0.0, %v2743
      %v2745 = vpop.f32.mrb[0].mxu0
      %2746 = vmatprep.mubr.f32.mxu0 0.0
      %2747 = vmatmul.mubr.f32.gmra.mrb[0].mxu0 %v936
      %v2748 = vpop.f32.mrb[0].mxu0
      %v2749 = vadd.f32 0.0, %v2748
      %v2750 = vpop.f32.mrb[0].mxu0
      %2751 = vmatprep.mubr.f32.mxu0 0.0
      %2752 = vmatmul.mubr.f32.gmra.mrb[0].mxu0 %v937
      %v2753 = vpop.f32.mrb[0].mxu0
      %v2754 = vadd.f32 0.0, %v2753
      %v2755 = vpop.f32.mrb[0].mxu0
      %2756 = vmatprep.mubr.f32.mxu0 0.0
      %2757 = vmatmul.mubr.f32.gmra.mrb[0].mxu0 %v938
      %v2758 = vpop.f32.mrb[0].mxu0
      %v2759 = vadd.f32 0.0, %v2758
      %v2760 = vpop.f32.mrb[0].mxu0
      %2761 = vmatprep.mubr.f32.mxu0 0.0
      %2762 = vmatmul.mubr.f32.gmra.mrb[0].mxu0 %v939
      %v2763 = vpop.f32.mrb[0].mxu0
      %v2764 = vadd.f32 0.0, %v2763
      %v2765 = vpop.f32.mrb[0].mxu0
      %2766 = vmatprep.mubr.f32.mxu0 0.0
      %2767 = vmatmul.mubr.f32.gmra.mrb[0].mxu0 %v940
      %v2768 = vpop.f32.mrb[0].mxu0
      %v2769 = vadd.f32 0.0, %v2768
      %v2770 = vpop.f32.mrb[0].mxu0
      %2771 = vmatprep.mubr.f32.mxu0 0.0
      %2772 = vmatmul.mubr.f32.gmra.mrb[0].mxu0 %v941
      %v2773 = vpop.f32.mrb[0].mxu0
      %v2774 = vadd.f32 0.0, %v2773
      %v2775 = vpop.f32.mrb[0].mxu0
      %2776 = vmatprep.mubr.f32.mxu0 0.0
      %2777 = vmatmul.mubr.f32.gmra.mrb[0].mxu0 %v942
      %v2778 = vpop.f32.mrb[0].mxu0
      %v2779 = vadd.f32 0.0, %v2778
      %v2780 = vpop.f32.mrb[0].mxu0
      %2781 = vmatprep.mubr.f32.mxu0 0.0
      %2782 = vmatmul.mubr.f32.gmra.mrb[0].mxu0 %v943
      %v2783 = vpop.f32.mrb[0].mxu0
      %v2784 = vadd.f32 0.0, %v2783
      %v2785 = vpop.f32.mrb[0].mxu0
      %2786 = vmatprep.mubr.f32.mxu0 0.0
      %2787 = vmatmul.mubr.f32.gmra.mrb[0].mxu0 %v944
      %v2788 = vpop.f32.mrb[0].mxu0
      %v2789 = vadd.f32 0.0, %v2788
      %v2790 = vpop.f32.mrb[0].mxu0
      %2791 = vmatprep.mubr.f32.mxu0 0.0
      %2792 = vmatmul.mubr.f32.gmra.mrb[0].mxu0 %v945
      %v2793 = vpop.f32.mrb[0].mxu0
      %v2794 = vadd.f32 0.0, %v2793
      %v2795 = vpop.f32.mrb[0].mxu0
      %2796 = vmatprep.mubr.f32.mxu0 0.0
      %2797 = vmatmul.mubr.f32.gmra.mrb[0].mxu0 %v946
      %v2798 = vpop.f32.mrb[0].mxu0
      %v2799 = vadd.f32 0.0, %v2798
      %v2800 = vpop.f32.mrb[0].mxu0
      %2801 = vmatprep.mubr.f32.mxu0 0.0
      %2802 = vmatmul.mubr.f32.gmra.mrb[0].mxu0 %v947
      %v2803 = vpop.f32.mrb[0].mxu0
      %v2804 = vadd.f32 0.0, %v2803
      %v2805 = vpop.f32.mrb[0].mxu0
      %2806 = vmatprep.mubr.f32.mxu0 0.0
      %2807 = vmatmul.mubr.f32.gmra.mrb[0].mxu0 %v948
      %v2808 = vpop.f32.mrb[0].mxu0
      %v2809 = vadd.f32 0.0, %v2808
      %v2810 = vpop.f32.mrb[0].mxu0
      %2811 = vmatprep.mubr.f32.mxu0 0.0
      %2812 = vmatmul.mubr.f32.gmra.mrb[0].mxu0 %v949
      %v2813 = vpop.f32.mrb[0].mxu0
      %v2814 = vadd.f32 0.0, %v2813
      %v2815 = vpop.f32.mrb[0].mxu0
      %2816 = vmatprep.mubr.f32.mxu0 0.0
      %2817 = vmatmul.mubr.f32.gmra.mrb[0].mxu0 %v950
      %v2818 = vpop.f32.mrb[0].mxu0
      %v2819 = vadd.f32 0.0, %v2818
      %v2820 = vpop.f32.mrb[0].mxu0
      %2821 = vmatprep.mubr.f32.mxu0 0.0
      %2822 = vmatmul.mubr.f32.gmra.mrb[0].mxu0 %v951
      %v2823 = vpop.f32.mrb[0].mxu0
      %v2824 = vadd.f32 0.0, %v2823
      %v2825 = vpop.f32.mrb[0].mxu0
      %2826 = vmatprep.mubr.f32.mxu0 0.0
      %2827 = vmatmul.mubr.f32.gmra.mrb[0].mxu0 %v952
      %v2828 = vpop.f32.mrb[0].mxu0
      %v2829 = vadd.f32 0.0, %v2828
      %v2830 = vpop.f32.mrb[0].mxu0
      %2831 = vmatprep.mubr.f32.mxu0 0.0
      %2832 = vmatmul.mubr.f32.gmra.mrb[0].mxu0 %v953
      %v2833 = vpop.f32.mrb[0].mxu0
      %v2834 = vadd.f32 0.0, %v2833
      %v2835 = vpop.f32.mrb[0].mxu0
      %2836 = vmatprep.mubr.f32.mxu0 0.0
      %2837 = vmatmul.mubr.f32.gmra.mrb[0].mxu0 %v954
      %v2838 = vpop.f32.mrb[0].mxu0
      %v2839 = vadd.f32 0.0, %v2838
      %v2840 = vpop.f32.mrb[0].mxu0
      %2841 = vmatprep.mubr.f32.mxu0 0.0
      %2842 = vmatmul.mubr.f32.gmra.mrb[0].mxu0 %v955
      %v2843 = vpop.f32.mrb[0].mxu0
      %v2844 = vadd.f32 0.0, %v2843
      %v2845 = vpop.f32.mrb[0].mxu0
      %2846 = vmatprep.mubr.f32.mxu0 0.0
      %2847 = vmatmul.mubr.f32.gmra.mrb[0].mxu0 %v956
      %v2848 = vpop.f32.mrb[0].mxu0
      %v2849 = vadd.f32 0.0, %v2848
      %v2850 = vpop.f32.mrb[0].mxu0
      %2851 = vmatprep.mubr.f32.mxu0 0.0
      %2852 = vmatmul.mubr.f32.gmra.mrb[0].mxu0 %v957
      %v2853 = vpop.f32.mrb[0].mxu0
      %v2854 = vadd.f32 0.0, %v2853
      %v2855 = vpop.f32.mrb[0].mxu0
      %2856 = vmatprep.mubr.f32.mxu0 0.0
      %2857 = vmatmul.mubr.f32.gmra.mrb[0].mxu0 %v958
      %v2858 = vpop.f32.mrb[0].mxu0
      %v2859 = vadd.f32 0.0, %v2858
      %v2860 = vpop.f32.mrb[0].mxu0
      %2861 = vmatprep.mubr.f32.mxu0 0.0
      %2862 = vmatmul.mubr.f32.gmra.mrb[0].mxu0 %v959
      %v2863 = vpop.f32.mrb[0].mxu0
      %v2864 = vadd.f32 0.0, %v2863
      %v2865 = vpop.f32.mrb[0].mxu0
      %2866 = vmatprep.mubr.f32.mxu0 0.0
      %2867 = vmatmul.mubr.f32.gmra.mrb[0].mxu0 %v1816
      %v2868 = vpop.f32.mrb[0].mxu0
      %v2869 = vadd.f32 0.0, %v2868
      %v2870 = vpop.f32.mrb[0].mxu0
      %2871 = vmatprep.mubr.f32.mxu0 0.0
      %2872 = vmatmul.mubr.f32.gmra.mrb[0].mxu0 %v1817
      %v2873 = vpop.f32.mrb[0].mxu0
      %v2874 = vadd.f32 0.0, %v2873
      %v2875 = vpop.f32.mrb[0].mxu0
      %2876 = vmatprep.mubr.f32.mxu0 0.0
      %2877 = vmatmul.mubr.f32.gmra.mrb[0].mxu0 0.0
      %v2878 = vpop.f32.mrb[0].mxu0
      %v2879 = vadd.f32 0.0, %v2878
      %v2880 = vpop.f32.mrb[0].mxu0
      %2881 = vmatprep.mubr.f32.mxu0 0.0
      %2882 = vmatmul.mubr.f32.gmra.mrb[0].mxu0 0.0
      %v2883 = vpop.f32.mrb[0].mxu0
      %v2884 = vadd.f32 0.0, %v2883
      %v2885 = vpop.f32.mrb[0].mxu0
      %2886 = vdwg.mxu0
      %v2887 = vadd.f32 %v2613, %v2729
      %v2888 = vadd.f32 %v2614, %v2734
      %v2889 = vadd.f32 %v2615, %v2739
      %v2890 = vadd.f32 %v2616, %v2744
      %v2891 = vadd.f32 %v2617, %v2749
      %v2892 = vadd.f32 %v2618, %v2754
      %v2893 = vadd.f32 %v2619, %v2759
      %v2894 = vadd.f32 %v2620, %v2764
      %v2895 = vadd.f32 %v2621, %v2769
      %v2896 = vadd.f32 %v2622, %v2774
      %v2897 = vadd.f32 %v2623, %v2779
      %v2898 = vadd.f32 %v2624, %v2784
      %v2899 = vadd.f32 %v2625, %v2789
      %v2900 = vadd.f32 %v2626, %v2794
      %v2901 = vadd.f32 %v2627, %v2799
      %v2902 = vadd.f32 %v2628, %v2804
      %v2903 = vadd.f32 %v2629, %v2809
      %v2904 = vadd.f32 %v2630, %v2814
      %v2905 = vadd.f32 %v2631, %v2819
      %v2906 = vadd.f32 %v2632, %v2824
      %v2907 = vadd.f32 %v2633, %v2829
      %v2908 = vadd.f32 %v2634, %v2834
      %v2909 = vadd.f32 %v2635, %v2839
      %v2910 = vadd.f32 %v2636, %v2844
      %v2911 = vadd.f32 %v2637, %v2849
      %v2912 = vadd.f32 %v2638, %v2854
      %v2913 = vadd.f32 %v2639, %v2859
      %v2914 = vadd.f32 %v2640, %v2864
      %v2915 = vadd.f32 %v2641, %v2869
      %v2916 = vadd.f32 %v2642, %v2874
      %v2917 = vadd.f32 %v2643, %v2879
      %v2918 = vadd.f32 %v2644, %v2884
      %s2919 = scalar_lea.vmem %s3, 896
      %v2920 = vld [vmem:[%s2919] sm:$0xff]
      %v2921 = vld [vmem:[%s2919 + $0x8] sm:$0xff]
      %v2922 = vld [vmem:[%s2919 + $0x10] sm:$0xff]
      %v2923 = vld [vmem:[%s2919 + $0x18] sm:$0xff]
      %v2924 = vld [vmem:[%s2919 + $0x20] sm:$0xff]
      %v2925 = vld [vmem:[%s2919 + $0x28] sm:$0xff]
      %v2926 = vld [vmem:[%s2919 + $0x30] sm:$0xff]
      %v2927 = vld [vmem:[%s2919 + $0x38] sm:$0xff]
      %v2928 = vld [vmem:[%s2919 + $0x40] sm:$0xff]
      %v2929 = vld [vmem:[%s2919 + $0x48] sm:$0xff]
      %v2930 = vld [vmem:[%s2919 + $0x50] sm:$0xff]
      %v2931 = vld [vmem:[%s2919 + $0x58] sm:$0xff]
      %v2932 = vld [vmem:[%s2919 + $0x60] sm:$0xff]
      %v2933 = vld [vmem:[%s2919 + $0x68] sm:$0xff]
      %v2934 = vld [vmem:[%s2919 + $0x70] sm:$0xff]
      %v2935 = vld [vmem:[%s2919 + $0x78] sm:$0xff]
      %2936 = vmatprep.subr.mxu0 0.0
      %2937 = vmatpush1.msra.mxu0 %v2920
      %2938 = vmatprep.subr.mxu0 0.0
      %2939 = vmatpush1.msra.mxu0 %v2921
      %2940 = vmatprep.subr.mxu0 0.0
      %2941 = vmatpush1.msra.mxu0 %v2922
      %2942 = vmatprep.subr.mxu0 0.0
      %2943 = vmatpush1.msra.mxu0 %v2923
      %2944 = vmatprep.subr.mxu0 0.0
      %2945 = vmatpush1.msra.mxu0 %v2924
      %2946 = vmatprep.subr.mxu0 0.0
      %2947 = vmatpush1.msra.mxu0 %v2925
      %2948 = vmatprep.subr.mxu0 0.0
      %2949 = vmatpush1.msra.mxu0 %v2926
      %2950 = vmatprep.subr.mxu0 0.0
      %2951 = vmatpush1.msra.mxu0 %v2927
      %2952 = vmatprep.subr.mxu0 0.0
      %2953 = vmatpush1.msra.mxu0 %v2928
      %2954 = vmatprep.subr.mxu0 0.0
      %2955 = vmatpush1.msra.mxu0 %v2929
      %2956 = vmatprep.subr.mxu0 0.0
      %2957 = vmatpush1.msra.mxu0 %v2930
      %2958 = vmatprep.subr.mxu0 0.0
      %2959 = vmatpush1.msra.mxu0 %v2931
      %2960 = vmatprep.subr.mxu0 0.0
      %2961 = vmatpush1.msra.mxu0 %v2932
      %2962 = vmatprep.subr.mxu0 0.0
      %2963 = vmatpush1.msra.mxu0 %v2933
      %2964 = vmatprep.subr.mxu0 0.0
      %2965 = vmatpush1.msra.mxu0 %v2934
      %2966 = vmatprep.subr.mxu0 0.0
      %2967 = vmatpush1.msra.mxu0 %v2935
      %2968 = vmatprep.subr.mxu0 0.0
      %2969 = vmatpush1.msra.mxu0 0.0
      %2970 = vmatprep.subr.mxu0 0.0
      %2971 = vmatpush1.msra.mxu0 0.0
      %2972 = vmatprep.subr.mxu0 0.0
      %2973 = vmatpush1.msra.mxu0 0.0
      %2974 = vmatprep.subr.mxu0 0.0
      %2975 = vmatpush1.msra.mxu0 0.0
      %2976 = vmatprep.subr.mxu0 0.0
      %2977 = vmatpush1.msra.mxu0 0.0
      %2978 = vmatprep.subr.mxu0 0.0
      %2979 = vmatpush1.msra.mxu0 0.0
      %2980 = vmatprep.subr.mxu0 0.0
      %2981 = vmatpush1.msra.mxu0 0.0
      %2982 = vmatprep.subr.mxu0 0.0
      %2983 = vmatpush1.msra.mxu0 0.0
      %2984 = vmatprep.subr.mxu0 0.0
      %2985 = vmatpush1.msra.mxu0 0.0
      %2986 = vmatprep.subr.mxu0 0.0
      %2987 = vmatpush1.msra.mxu0 0.0
      %2988 = vmatprep.subr.mxu0 0.0
      %2989 = vmatpush1.msra.mxu0 0.0
      %2990 = vmatprep.subr.mxu0 0.0
      %2991 = vmatpush1.msra.mxu0 0.0
      %2992 = vmatprep.subr.mxu0 0.0
      %2993 = vmatpush1.msra.mxu0 0.0
      %2994 = vmatprep.subr.mxu0 0.0
      %2995 = vmatpush1.msra.mxu0 0.0
      %2996 = vmatprep.subr.mxu0 0.0
      %2997 = vmatpush1.msra.mxu0 0.0
      %2998 = vmatprep.subr.mxu0 0.0
      %2999 = vmatpush1.msra.mxu0 0.0
      %3000 = vmatprep.mubr.f32.mxu0 0.0
      %3001 = vmatmul.mubr.f32.gmra.mrb[0].mxu0 %v827
      %v3002 = vpop.f32.mrb[0].mxu0
      %v3003 = vadd.f32 0.0, %v3002
      %v3004 = vpop.f32.mrb[0].mxu0
      %3005 = vmatprep.mubr.f32.mxu0 0.0
      %3006 = vmatmul.mubr.f32.gmra.mrb[0].mxu0 %v828
      %v3007 = vpop.f32.mrb[0].mxu0
      %v3008 = vadd.f32 0.0, %v3007
      %v3009 = vpop.f32.mrb[0].mxu0
      %3010 = vmatprep.mubr.f32.mxu0 0.0
      %3011 = vmatmul.mubr.f32.gmra.mrb[0].mxu0 %v829
      %v3012 = vpop.f32.mrb[0].mxu0
      %v3013 = vadd.f32 0.0, %v3012
      %v3014 = vpop.f32.mrb[0].mxu0
      %3015 = vmatprep.mubr.f32.mxu0 0.0
      %3016 = vmatmul.mubr.f32.gmra.mrb[0].mxu0 %v830
      %v3017 = vpop.f32.mrb[0].mxu0
      %v3018 = vadd.f32 0.0, %v3017
      %v3019 = vpop.f32.mrb[0].mxu0
      %3020 = vmatprep.mubr.f32.mxu0 0.0
      %3021 = vmatmul.mubr.f32.gmra.mrb[0].mxu0 %v831
      %v3022 = vpop.f32.mrb[0].mxu0
      %v3023 = vadd.f32 0.0, %v3022
      %v3024 = vpop.f32.mrb[0].mxu0
      %3025 = vmatprep.mubr.f32.mxu0 0.0
      %3026 = vmatmul.mubr.f32.gmra.mrb[0].mxu0 %v832
      %v3027 = vpop.f32.mrb[0].mxu0
      %v3028 = vadd.f32 0.0, %v3027
      %v3029 = vpop.f32.mrb[0].mxu0
      %3030 = vmatprep.mubr.f32.mxu0 0.0
      %3031 = vmatmul.mubr.f32.gmra.mrb[0].mxu0 %v833
      %v3032 = vpop.f32.mrb[0].mxu0
      %v3033 = vadd.f32 0.0, %v3032
      %v3034 = vpop.f32.mrb[0].mxu0
      %3035 = vmatprep.mubr.f32.mxu0 0.0
      %3036 = vmatmul.mubr.f32.gmra.mrb[0].mxu0 %v834
      %v3037 = vpop.f32.mrb[0].mxu0
      %v3038 = vadd.f32 0.0, %v3037
      %v3039 = vpop.f32.mrb[0].mxu0
      %3040 = vmatprep.mubr.f32.mxu0 0.0
      %3041 = vmatmul.mubr.f32.gmra.mrb[0].mxu0 %v835
      %v3042 = vpop.f32.mrb[0].mxu0
      %v3043 = vadd.f32 0.0, %v3042
      %v3044 = vpop.f32.mrb[0].mxu0
      %3045 = vmatprep.mubr.f32.mxu0 0.0
      %3046 = vmatmul.mubr.f32.gmra.mrb[0].mxu0 %v836
      %v3047 = vpop.f32.mrb[0].mxu0
      %v3048 = vadd.f32 0.0, %v3047
      %v3049 = vpop.f32.mrb[0].mxu0
      %3050 = vmatprep.mubr.f32.mxu0 0.0
      %3051 = vmatmul.mubr.f32.gmra.mrb[0].mxu0 %v837
      %v3052 = vpop.f32.mrb[0].mxu0
      %v3053 = vadd.f32 0.0, %v3052
      %v3054 = vpop.f32.mrb[0].mxu0
      %3055 = vmatprep.mubr.f32.mxu0 0.0
      %3056 = vmatmul.mubr.f32.gmra.mrb[0].mxu0 %v838
      %v3057 = vpop.f32.mrb[0].mxu0
      %v3058 = vadd.f32 0.0, %v3057
      %v3059 = vpop.f32.mrb[0].mxu0
      %3060 = vmatprep.mubr.f32.mxu0 0.0
      %3061 = vmatmul.mubr.f32.gmra.mrb[0].mxu0 %v839
      %v3062 = vpop.f32.mrb[0].mxu0
      %v3063 = vadd.f32 0.0, %v3062
      %v3064 = vpop.f32.mrb[0].mxu0
      %3065 = vmatprep.mubr.f32.mxu0 0.0
      %3066 = vmatmul.mubr.f32.gmra.mrb[0].mxu0 %v840
      %v3067 = vpop.f32.mrb[0].mxu0
      %v3068 = vadd.f32 0.0, %v3067
      %v3069 = vpop.f32.mrb[0].mxu0
      %3070 = vmatprep.mubr.f32.mxu0 0.0
      %3071 = vmatmul.mubr.f32.gmra.mrb[0].mxu0 %v841
      %v3072 = vpop.f32.mrb[0].mxu0
      %v3073 = vadd.f32 0.0, %v3072
      %v3074 = vpop.f32.mrb[0].mxu0
      %3075 = vmatprep.mubr.f32.mxu0 0.0
      %3076 = vmatmul.mubr.f32.gmra.mrb[0].mxu0 %v842
      %v3077 = vpop.f32.mrb[0].mxu0
      %v3078 = vadd.f32 0.0, %v3077
      %v3079 = vpop.f32.mrb[0].mxu0
      %3080 = vmatprep.mubr.f32.mxu0 0.0
      %3081 = vmatmul.mubr.f32.gmra.mrb[0].mxu0 %v843
      %v3082 = vpop.f32.mrb[0].mxu0
      %v3083 = vadd.f32 0.0, %v3082
      %v3084 = vpop.f32.mrb[0].mxu0
      %3085 = vmatprep.mubr.f32.mxu0 0.0
      %3086 = vmatmul.mubr.f32.gmra.mrb[0].mxu0 %v844
      %v3087 = vpop.f32.mrb[0].mxu0
      %v3088 = vadd.f32 0.0, %v3087
      %v3089 = vpop.f32.mrb[0].mxu0
      %3090 = vmatprep.mubr.f32.mxu0 0.0
      %3091 = vmatmul.mubr.f32.gmra.mrb[0].mxu0 %v845
      %v3092 = vpop.f32.mrb[0].mxu0
      %v3093 = vadd.f32 0.0, %v3092
      %v3094 = vpop.f32.mrb[0].mxu0
      %3095 = vmatprep.mubr.f32.mxu0 0.0
      %3096 = vmatmul.mubr.f32.gmra.mrb[0].mxu0 %v846
      %v3097 = vpop.f32.mrb[0].mxu0
      %v3098 = vadd.f32 0.0, %v3097
      %v3099 = vpop.f32.mrb[0].mxu0
      %3100 = vmatprep.mubr.f32.mxu0 0.0
      %3101 = vmatmul.mubr.f32.gmra.mrb[0].mxu0 %v847
      %v3102 = vpop.f32.mrb[0].mxu0
      %v3103 = vadd.f32 0.0, %v3102
      %v3104 = vpop.f32.mrb[0].mxu0
      %3105 = vmatprep.mubr.f32.mxu0 0.0
      %3106 = vmatmul.mubr.f32.gmra.mrb[0].mxu0 %v848
      %v3107 = vpop.f32.mrb[0].mxu0
      %v3108 = vadd.f32 0.0, %v3107
      %v3109 = vpop.f32.mrb[0].mxu0
      %3110 = vmatprep.mubr.f32.mxu0 0.0
      %3111 = vmatmul.mubr.f32.gmra.mrb[0].mxu0 %v849
      %v3112 = vpop.f32.mrb[0].mxu0
      %v3113 = vadd.f32 0.0, %v3112
      %v3114 = vpop.f32.mrb[0].mxu0
      %3115 = vmatprep.mubr.f32.mxu0 0.0
      %3116 = vmatmul.mubr.f32.gmra.mrb[0].mxu0 %v850
      %v3117 = vpop.f32.mrb[0].mxu0
      %v3118 = vadd.f32 0.0, %v3117
      %v3119 = vpop.f32.mrb[0].mxu0
      %3120 = vmatprep.mubr.f32.mxu0 0.0
      %3121 = vmatmul.mubr.f32.gmra.mrb[0].mxu0 %v851
      %v3122 = vpop.f32.mrb[0].mxu0
      %v3123 = vadd.f32 0.0, %v3122
      %v3124 = vpop.f32.mrb[0].mxu0
      %3125 = vmatprep.mubr.f32.mxu0 0.0
      %3126 = vmatmul.mubr.f32.gmra.mrb[0].mxu0 %v852
      %v3127 = vpop.f32.mrb[0].mxu0
      %v3128 = vadd.f32 0.0, %v3127
      %v3129 = vpop.f32.mrb[0].mxu0
      %3130 = vmatprep.mubr.f32.mxu0 0.0
      %3131 = vmatmul.mubr.f32.gmra.mrb[0].mxu0 %v853
      %v3132 = vpop.f32.mrb[0].mxu0
      %v3133 = vadd.f32 0.0, %v3132
      %v3134 = vpop.f32.mrb[0].mxu0
      %3135 = vmatprep.mubr.f32.mxu0 0.0
      %3136 = vmatmul.mubr.f32.gmra.mrb[0].mxu0 %v854
      %v3137 = vpop.f32.mrb[0].mxu0
      %v3138 = vadd.f32 0.0, %v3137
      %v3139 = vpop.f32.mrb[0].mxu0
      %3140 = vmatprep.mubr.f32.mxu0 0.0
      %3141 = vmatmul.mubr.f32.gmra.mrb[0].mxu0 %v855
      %v3142 = vpop.f32.mrb[0].mxu0
      %v3143 = vadd.f32 0.0, %v3142
      %v3144 = vpop.f32.mrb[0].mxu0
      %3145 = vmatprep.mubr.f32.mxu0 0.0
      %3146 = vmatmul.mubr.f32.gmra.mrb[0].mxu0 %v856
      %v3147 = vpop.f32.mrb[0].mxu0
      %v3148 = vadd.f32 0.0, %v3147
      %v3149 = vpop.f32.mrb[0].mxu0
      %3150 = vmatprep.mubr.f32.mxu0 0.0
      %3151 = vmatmul.mubr.f32.gmra.mrb[0].mxu0 0.0
      %v3152 = vpop.f32.mrb[0].mxu0
      %v3153 = vadd.f32 0.0, %v3152
      %v3154 = vpop.f32.mrb[0].mxu0
      %3155 = vmatprep.mubr.f32.mxu0 0.0
      %3156 = vmatmul.mubr.f32.gmra.mrb[0].mxu0 0.0
      %v3157 = vpop.f32.mrb[0].mxu0
      %v3158 = vadd.f32 0.0, %v3157
      %v3159 = vpop.f32.mrb[0].mxu0
      %3160 = vdwg.mxu0
      %v3161 = vadd.f32 %v2887, %v3003
      %v3162 = vadd.f32 %v2888, %v3008
      %v3163 = vadd.f32 %v2889, %v3013
      %v3164 = vadd.f32 %v2890, %v3018
      %v3165 = vadd.f32 %v2891, %v3023
      %v3166 = vadd.f32 %v2892, %v3028
      %v3167 = vadd.f32 %v2893, %v3033
      %v3168 = vadd.f32 %v2894, %v3038
      %v3169 = vadd.f32 %v2895, %v3043
      %v3170 = vadd.f32 %v2896, %v3048
      %v3171 = vadd.f32 %v2897, %v3053
      %v3172 = vadd.f32 %v2898, %v3058
      %v3173 = vadd.f32 %v2899, %v3063
      %v3174 = vadd.f32 %v2900, %v3068
      %v3175 = vadd.f32 %v2901, %v3073
      %v3176 = vadd.f32 %v2902, %v3078
      %v3177 = vadd.f32 %v2903, %v3083
      %v3178 = vadd.f32 %v2904, %v3088
      %v3179 = vadd.f32 %v2905, %v3093
      %v3180 = vadd.f32 %v2906, %v3098
      %v3181 = vadd.f32 %v2907, %v3103
      %v3182 = vadd.f32 %v2908, %v3108
      %v3183 = vadd.f32 %v2909, %v3113
      %v3184 = vadd.f32 %v2910, %v3118
      %v3185 = vadd.f32 %v2911, %v3123
      %v3186 = vadd.f32 %v2912, %v3128
      %v3187 = vadd.f32 %v2913, %v3133
      %v3188 = vadd.f32 %v2914, %v3138
      %v3189 = vadd.f32 %v2915, %v3143
      %v3190 = vadd.f32 %v2916, %v3148
      %v3191 = vadd.f32 %v2917, %v3153
      %v3192 = vadd.f32 %v2918, %v3158
      %s3193 = scalar_lea.vmem %s3, 1024
      %v3194 = vld [vmem:[%s3193] sm:$0xff]
      %v3195 = vld [vmem:[%s3193 + $0x8] sm:$0xff]
      %v3196 = vld [vmem:[%s3193 + $0x10] sm:$0xff]
      %v3197 = vld [vmem:[%s3193 + $0x18] sm:$0xff]
      %v3198 = vld [vmem:[%s3193 + $0x20] sm:$0xff]
      %v3199 = vld [vmem:[%s3193 + $0x28] sm:$0xff]
      %v3200 = vld [vmem:[%s3193 + $0x30] sm:$0xff]
      %v3201 = vld [vmem:[%s3193 + $0x38] sm:$0xff]
      %v3202 = vld [vmem:[%s3193 + $0x40] sm:$0xff]
      %v3203 = vld [vmem:[%s3193 + $0x48] sm:$0xff]
      %v3204 = vld [vmem:[%s3193 + $0x50] sm:$0xff]
      %v3205 = vld [vmem:[%s3193 + $0x58] sm:$0xff]
      %v3206 = vld [vmem:[%s3193 + $0x60] sm:$0xff]
      %v3207 = vld [vmem:[%s3193 + $0x68] sm:$0xff]
      %v3208 = vld [vmem:[%s3193 + $0x70] sm:$0xff]
      %v3209 = vld [vmem:[%s3193 + $0x78] sm:$0xff]
      %3210 = vmatprep.subr.mxu0 0.0
      %3211 = vmatpush1.msra.mxu0 %v3194
      %3212 = vmatprep.subr.mxu0 0.0
      %3213 = vmatpush1.msra.mxu0 %v3195
      %3214 = vmatprep.subr.mxu0 0.0
      %3215 = vmatpush1.msra.mxu0 %v3196
      %3216 = vmatprep.subr.mxu0 0.0
      %3217 = vmatpush1.msra.mxu0 %v3197
      %3218 = vmatprep.subr.mxu0 0.0
      %3219 = vmatpush1.msra.mxu0 %v3198
      %3220 = vmatprep.subr.mxu0 0.0
      %3221 = vmatpush1.msra.mxu0 %v3199
      %3222 = vmatprep.subr.mxu0 0.0
      %3223 = vmatpush1.msra.mxu0 %v3200
      %3224 = vmatprep.subr.mxu0 0.0
      %3225 = vmatpush1.msra.mxu0 %v3201
      %3226 = vmatprep.subr.mxu0 0.0
      %3227 = vmatpush1.msra.mxu0 %v3202
      %3228 = vmatprep.subr.mxu0 0.0
      %3229 = vmatpush1.msra.mxu0 %v3203
      %3230 = vmatprep.subr.mxu0 0.0
      %3231 = vmatpush1.msra.mxu0 %v3204
      %3232 = vmatprep.subr.mxu0 0.0
      %3233 = vmatpush1.msra.mxu0 %v3205
      %3234 = vmatprep.subr.mxu0 0.0
      %3235 = vmatpush1.msra.mxu0 %v3206
      %3236 = vmatprep.subr.mxu0 0.0
      %3237 = vmatpush1.msra.mxu0 %v3207
      %3238 = vmatprep.subr.mxu0 0.0
      %3239 = vmatpush1.msra.mxu0 %v3208
      %3240 = vmatprep.subr.mxu0 0.0
      %3241 = vmatpush1.msra.mxu0 %v3209
      %3242 = vmatprep.subr.mxu0 0.0
      %3243 = vmatpush1.msra.mxu0 0.0
      %3244 = vmatprep.subr.mxu0 0.0
      %3245 = vmatpush1.msra.mxu0 0.0
      %3246 = vmatprep.subr.mxu0 0.0
      %3247 = vmatpush1.msra.mxu0 0.0
      %3248 = vmatprep.subr.mxu0 0.0
      %3249 = vmatpush1.msra.mxu0 0.0
      %3250 = vmatprep.subr.mxu0 0.0
      %3251 = vmatpush1.msra.mxu0 0.0
      %3252 = vmatprep.subr.mxu0 0.0
      %3253 = vmatpush1.msra.mxu0 0.0
      %3254 = vmatprep.subr.mxu0 0.0
      %3255 = vmatpush1.msra.mxu0 0.0
      %3256 = vmatprep.subr.mxu0 0.0
      %3257 = vmatpush1.msra.mxu0 0.0
      %3258 = vmatprep.subr.mxu0 0.0
      %3259 = vmatpush1.msra.mxu0 0.0
      %3260 = vmatprep.subr.mxu0 0.0
      %3261 = vmatpush1.msra.mxu0 0.0
      %3262 = vmatprep.subr.mxu0 0.0
      %3263 = vmatpush1.msra.mxu0 0.0
      %3264 = vmatprep.subr.mxu0 0.0
      %3265 = vmatpush1.msra.mxu0 0.0
      %3266 = vmatprep.subr.mxu0 0.0
      %3267 = vmatpush1.msra.mxu0 0.0
      %3268 = vmatprep.subr.mxu0 0.0
      %3269 = vmatpush1.msra.mxu0 0.0
      %3270 = vmatprep.subr.mxu0 0.0
      %3271 = vmatpush1.msra.mxu0 0.0
      %3272 = vmatprep.subr.mxu0 0.0
      %3273 = vmatpush1.msra.mxu0 0.0
      %3274 = vmatprep.mubr.f32.mxu0 0.0
      %3275 = vmatmul.mubr.f32.gmra.mrb[0].mxu0 %v1511
      %v3276 = vpop.f32.mrb[0].mxu0
      %v3277 = vadd.f32 0.0, %v3276
      %v3278 = vpop.f32.mrb[0].mxu0
      %3279 = vmatprep.mubr.f32.mxu0 0.0
      %3280 = vmatmul.mubr.f32.gmra.mrb[0].mxu0 %v1512
      %v3281 = vpop.f32.mrb[0].mxu0
      %v3282 = vadd.f32 0.0, %v3281
      %v3283 = vpop.f32.mrb[0].mxu0
      %3284 = vmatprep.mubr.f32.mxu0 0.0
      %3285 = vmatmul.mubr.f32.gmra.mrb[0].mxu0 %v1513
      %v3286 = vpop.f32.mrb[0].mxu0
      %v3287 = vadd.f32 0.0, %v3286
      %v3288 = vpop.f32.mrb[0].mxu0
      %3289 = vmatprep.mubr.f32.mxu0 0.0
      %3290 = vmatmul.mubr.f32.gmra.mrb[0].mxu0 %v1514
      %v3291 = vpop.f32.mrb[0].mxu0
      %v3292 = vadd.f32 0.0, %v3291
      %v3293 = vpop.f32.mrb[0].mxu0
      %3294 = vmatprep.mubr.f32.mxu0 0.0
      %3295 = vmatmul.mubr.f32.gmra.mrb[0].mxu0 %v1515
      %v3296 = vpop.f32.mrb[0].mxu0
      %v3297 = vadd.f32 0.0, %v3296
      %v3298 = vpop.f32.mrb[0].mxu0
      %3299 = vmatprep.mubr.f32.mxu0 0.0
      %3300 = vmatmul.mubr.f32.gmra.mrb[0].mxu0 %v1516
      %v3301 = vpop.f32.mrb[0].mxu0
      %v3302 = vadd.f32 0.0, %v3301
      %v3303 = vpop.f32.mrb[0].mxu0
      %3304 = vmatprep.mubr.f32.mxu0 0.0
      %3305 = vmatmul.mubr.f32.gmra.mrb[0].mxu0 %v1517
      %v3306 = vpop.f32.mrb[0].mxu0
      %v3307 = vadd.f32 0.0, %v3306
      %v3308 = vpop.f32.mrb[0].mxu0
      %3309 = vmatprep.mubr.f32.mxu0 0.0
      %3310 = vmatmul.mubr.f32.gmra.mrb[0].mxu0 %v1518
      %v3311 = vpop.f32.mrb[0].mxu0
      %v3312 = vadd.f32 0.0, %v3311
      %v3313 = vpop.f32.mrb[0].mxu0
      %3314 = vmatprep.mubr.f32.mxu0 0.0
      %3315 = vmatmul.mubr.f32.gmra.mrb[0].mxu0 %v1519
      %v3316 = vpop.f32.mrb[0].mxu0
      %v3317 = vadd.f32 0.0, %v3316
      %v3318 = vpop.f32.mrb[0].mxu0
      %3319 = vmatprep.mubr.f32.mxu0 0.0
      %3320 = vmatmul.mubr.f32.gmra.mrb[0].mxu0 %v1520
      %v3321 = vpop.f32.mrb[0].mxu0
      %v3322 = vadd.f32 0.0, %v3321
      %v3323 = vpop.f32.mrb[0].mxu0
      %3324 = vmatprep.mubr.f32.mxu0 0.0
      %3325 = vmatmul.mubr.f32.gmra.mrb[0].mxu0 %v1521
      %v3326 = vpop.f32.mrb[0].mxu0
      %v3327 = vadd.f32 0.0, %v3326
      %v3328 = vpop.f32.mrb[0].mxu0
      %3329 = vmatprep.mubr.f32.mxu0 0.0
      %3330 = vmatmul.mubr.f32.gmra.mrb[0].mxu0 %v1522
      %v3331 = vpop.f32.mrb[0].mxu0
      %v3332 = vadd.f32 0.0, %v3331
      %v3333 = vpop.f32.mrb[0].mxu0
      %3334 = vmatprep.mubr.f32.mxu0 0.0
      %3335 = vmatmul.mubr.f32.gmra.mrb[0].mxu0 %v1523
      %v3336 = vpop.f32.mrb[0].mxu0
      %v3337 = vadd.f32 0.0, %v3336
      %v3338 = vpop.f32.mrb[0].mxu0
      %3339 = vmatprep.mubr.f32.mxu0 0.0
      %3340 = vmatmul.mubr.f32.gmra.mrb[0].mxu0 %v1524
      %v3341 = vpop.f32.mrb[0].mxu0
      %v3342 = vadd.f32 0.0, %v3341
      %v3343 = vpop.f32.mrb[0].mxu0
      %3344 = vmatprep.mubr.f32.mxu0 0.0
      %3345 = vmatmul.mubr.f32.gmra.mrb[0].mxu0 %v1525
      %v3346 = vpop.f32.mrb[0].mxu0
      %v3347 = vadd.f32 0.0, %v3346
      %v3348 = vpop.f32.mrb[0].mxu0
      %3349 = vmatprep.mubr.f32.mxu0 0.0
      %3350 = vmatmul.mubr.f32.gmra.mrb[0].mxu0 %v1526
      %v3351 = vpop.f32.mrb[0].mxu0
      %v3352 = vadd.f32 0.0, %v3351
      %v3353 = vpop.f32.mrb[0].mxu0
      %3354 = vmatprep.mubr.f32.mxu0 0.0
      %3355 = vmatmul.mubr.f32.gmra.mrb[0].mxu0 %v1527
      %v3356 = vpop.f32.mrb[0].mxu0
      %v3357 = vadd.f32 0.0, %v3356
      %v3358 = vpop.f32.mrb[0].mxu0
      %3359 = vmatprep.mubr.f32.mxu0 0.0
      %3360 = vmatmul.mubr.f32.gmra.mrb[0].mxu0 %v1528
      %v3361 = vpop.f32.mrb[0].mxu0
      %v3362 = vadd.f32 0.0, %v3361
      %v3363 = vpop.f32.mrb[0].mxu0
      %3364 = vmatprep.mubr.f32.mxu0 0.0
      %3365 = vmatmul.mubr.f32.gmra.mrb[0].mxu0 %v1529
      %v3366 = vpop.f32.mrb[0].mxu0
      %v3367 = vadd.f32 0.0, %v3366
      %v3368 = vpop.f32.mrb[0].mxu0
      %3369 = vmatprep.mubr.f32.mxu0 0.0
      %3370 = vmatmul.mubr.f32.gmra.mrb[0].mxu0 %v1530
      %v3371 = vpop.f32.mrb[0].mxu0
      %v3372 = vadd.f32 0.0, %v3371
      %v3373 = vpop.f32.mrb[0].mxu0
      %3374 = vmatprep.mubr.f32.mxu0 0.0
      %3375 = vmatmul.mubr.f32.gmra.mrb[0].mxu0 %v1531
      %v3376 = vpop.f32.mrb[0].mxu0
      %v3377 = vadd.f32 0.0, %v3376
      %v3378 = vpop.f32.mrb[0].mxu0
      %3379 = vmatprep.mubr.f32.mxu0 0.0
      %3380 = vmatmul.mubr.f32.gmra.mrb[0].mxu0 %v1532
      %v3381 = vpop.f32.mrb[0].mxu0
      %v3382 = vadd.f32 0.0, %v3381
      %v3383 = vpop.f32.mrb[0].mxu0
      %3384 = vmatprep.mubr.f32.mxu0 0.0
      %3385 = vmatmul.mubr.f32.gmra.mrb[0].mxu0 %v1533
      %v3386 = vpop.f32.mrb[0].mxu0
      %v3387 = vadd.f32 0.0, %v3386
      %v3388 = vpop.f32.mrb[0].mxu0
      %3389 = vmatprep.mubr.f32.mxu0 0.0
      %3390 = vmatmul.mubr.f32.gmra.mrb[0].mxu0 %v1534
      %v3391 = vpop.f32.mrb[0].mxu0
      %v3392 = vadd.f32 0.0, %v3391
      %v3393 = vpop.f32.mrb[0].mxu0
      %3394 = vmatprep.mubr.f32.mxu0 0.0
      %3395 = vmatmul.mubr.f32.gmra.mrb[0].mxu0 %v1535
      %v3396 = vpop.f32.mrb[0].mxu0
      %v3397 = vadd.f32 0.0, %v3396
      %v3398 = vpop.f32.mrb[0].mxu0
      %3399 = vmatprep.mubr.f32.mxu0 0.0
      %3400 = vmatmul.mubr.f32.gmra.mrb[0].mxu0 %v1536
      %v3401 = vpop.f32.mrb[0].mxu0
      %v3402 = vadd.f32 0.0, %v3401
      %v3403 = vpop.f32.mrb[0].mxu0
      %3404 = vmatprep.mubr.f32.mxu0 0.0
      %3405 = vmatmul.mubr.f32.gmra.mrb[0].mxu0 %v1537
      %v3406 = vpop.f32.mrb[0].mxu0
      %v3407 = vadd.f32 0.0, %v3406
      %v3408 = vpop.f32.mrb[0].mxu0
      %3409 = vmatprep.mubr.f32.mxu0 0.0
      %3410 = vmatmul.mubr.f32.gmra.mrb[0].mxu0 %v1538
      %v3411 = vpop.f32.mrb[0].mxu0
      %v3412 = vadd.f32 0.0, %v3411
      %v3413 = vpop.f32.mrb[0].mxu0
      %3414 = vmatprep.mubr.f32.mxu0 0.0
      %3415 = vmatmul.mubr.f32.gmra.mrb[0].mxu0 %v2369
      %v3416 = vpop.f32.mrb[0].mxu0
      %v3417 = vadd.f32 0.0, %v3416
      %v3418 = vpop.f32.mrb[0].mxu0
      %3419 = vmatprep.mubr.f32.mxu0 0.0
      %3420 = vmatmul.mubr.f32.gmra.mrb[0].mxu0 %v2370
      %v3421 = vpop.f32.mrb[0].mxu0
      %v3422 = vadd.f32 0.0, %v3421
      %v3423 = vpop.f32.mrb[0].mxu0
      %3424 = vmatprep.mubr.f32.mxu0 0.0
      %3425 = vmatmul.mubr.f32.gmra.mrb[0].mxu0 0.0
      %v3426 = vpop.f32.mrb[0].mxu0
      %v3427 = vadd.f32 0.0, %v3426
      %v3428 = vpop.f32.mrb[0].mxu0
      %3429 = vmatprep.mubr.f32.mxu0 0.0
      %3430 = vmatmul.mubr.f32.gmra.mrb[0].mxu0 0.0
      %v3431 = vpop.f32.mrb[0].mxu0
      %v3432 = vadd.f32 0.0, %v3431
      %v3433 = vpop.f32.mrb[0].mxu0
      %3434 = vdwg.mxu0
      %v3435 = vadd.f32 %v3161, %v3277
      %v3436 = vadd.f32 %v3162, %v3282
      %v3437 = vadd.f32 %v3163, %v3287
      %v3438 = vadd.f32 %v3164, %v3292
      %v3439 = vadd.f32 %v3165, %v3297
      %v3440 = vadd.f32 %v3166, %v3302
      %v3441 = vadd.f32 %v3167, %v3307
      %v3442 = vadd.f32 %v3168, %v3312
      %v3443 = vadd.f32 %v3169, %v3317
      %v3444 = vadd.f32 %v3170, %v3322
      %v3445 = vadd.f32 %v3171, %v3327
      %v3446 = vadd.f32 %v3172, %v3332
      %v3447 = vadd.f32 %v3173, %v3337
      %v3448 = vadd.f32 %v3174, %v3342
      %v3449 = vadd.f32 %v3175, %v3347
      %v3450 = vadd.f32 %v3176, %v3352
      %v3451 = vadd.f32 %v3177, %v3357
      %v3452 = vadd.f32 %v3178, %v3362
      %v3453 = vadd.f32 %v3179, %v3367
      %v3454 = vadd.f32 %v3180, %v3372
      %v3455 = vadd.f32 %v3181, %v3377
      %v3456 = vadd.f32 %v3182, %v3382
      %v3457 = vadd.f32 %v3183, %v3387
      %v3458 = vadd.f32 %v3184, %v3392
      %v3459 = vadd.f32 %v3185, %v3397
      %v3460 = vadd.f32 %v3186, %v3402
      %v3461 = vadd.f32 %v3187, %v3407
      %v3462 = vadd.f32 %v3188, %v3412
      %v3463 = vadd.f32 %v3189, %v3417
      %v3464 = vadd.f32 %v3190, %v3422
      %v3465 = vadd.f32 %v3191, %v3427
      %v3466 = vadd.f32 %v3192, %v3432
      %v3467 = vld [vmem:[%s4] sm:$0x1]
      %v3469 = vlaneseq
      %v3470 = vshrl.u32 %v3469, 7
      %v3471 = vsub.s32 0, %v3470
      %v3472 = vrot.slane %v3467, %v3471
      %v3474 = vadd.f32 %v3435, %v3472
      %v3475 = vadd.f32 %v3436, %v3472
      %v3476 = vadd.f32 %v3437, %v3472
      %v3477 = vadd.f32 %v3438, %v3472
      %v3478 = vadd.f32 %v3439, %v3472
      %v3479 = vadd.f32 %v3440, %v3472
      %v3480 = vadd.f32 %v3441, %v3472
      %v3481 = vadd.f32 %v3442, %v3472
      %v3482 = vadd.f32 %v3443, %v3472
      %v3483 = vadd.f32 %v3444, %v3472
      %v3484 = vadd.f32 %v3445, %v3472
      %v3485 = vadd.f32 %v3446, %v3472
      %v3486 = vadd.f32 %v3447, %v3472
      %v3487 = vadd.f32 %v3448, %v3472
      %v3488 = vadd.f32 %v3449, %v3472
      %v3489 = vadd.f32 %v3450, %v3472
      %v3490 = vadd.f32 %v3451, %v3472
      %v3491 = vadd.f32 %v3452, %v3472
      %v3492 = vadd.f32 %v3453, %v3472
      %v3493 = vadd.f32 %v3454, %v3472
      %v3494 = vadd.f32 %v3455, %v3472
      %v3495 = vadd.f32 %v3456, %v3472
      %v3496 = vadd.f32 %v3457, %v3472
      %v3497 = vadd.f32 %v3458, %v3472
      %v3498 = vadd.f32 %v3459, %v3472
      %v3499 = vadd.f32 %v3460, %v3472
      %v3500 = vadd.f32 %v3461, %v3472
      %v3501 = vadd.f32 %v3462, %v3472
      %v3502 = vadd.f32 %v3463, %v3472
      %v3503 = vadd.f32 %v3464, %v3472
      %v3504 = vadd.f32 %v3465, %v3472
      %v3505 = vadd.f32 %v3466, %v3472
      %v3506 = vmin.f32 %v3474, 20.0
      %v3507 = vmin.f32 %v3475, 20.0
      %v3508 = vmin.f32 %v3476, 20.0
      %v3509 = vmin.f32 %v3477, 20.0
      %v3510 = vmin.f32 %v3478, 20.0
      %v3511 = vmin.f32 %v3479, 20.0
      %v3512 = vmin.f32 %v3480, 20.0
      %v3513 = vmin.f32 %v3481, 20.0
      %v3514 = vmin.f32 %v3482, 20.0
      %v3515 = vmin.f32 %v3483, 20.0
      %v3516 = vmin.f32 %v3484, 20.0
      %v3517 = vmin.f32 %v3485, 20.0
      %v3518 = vmin.f32 %v3486, 20.0
      %v3519 = vmin.f32 %v3487, 20.0
      %v3520 = vmin.f32 %v3488, 20.0
      %v3521 = vmin.f32 %v3489, 20.0
      %v3522 = vmin.f32 %v3490, 20.0
      %v3523 = vmin.f32 %v3491, 20.0
      %v3524 = vmin.f32 %v3492, 20.0
      %v3525 = vmin.f32 %v3493, 20.0
      %v3526 = vmin.f32 %v3494, 20.0
      %v3527 = vmin.f32 %v3495, 20.0
      %v3528 = vmin.f32 %v3496, 20.0
      %v3529 = vmin.f32 %v3497, 20.0
      %v3530 = vmin.f32 %v3498, 20.0
      %v3531 = vmin.f32 %v3499, 20.0
      %v3532 = vmin.f32 %v3500, 20.0
      %v3533 = vmin.f32 %v3501, 20.0
      %v3534 = vmin.f32 %v3502, 20.0
      %v3535 = vmin.f32 %v3503, 20.0
      %v3536 = vmin.f32 %v3504, 20.0
      %v3537 = vmin.f32 %v3505, 20.0
      %v3538 = vmul.f32 %v3506, 1.442695
      %v3539 = vpow.pop %v3538
      %v3540 = vmul.f32 %v3507, 1.442695
      %v3541 = vpow.pop %v3540
      %v3542 = vmul.f32 %v3508, 1.442695
      %v3543 = vpow.pop %v3542
      %v3544 = vmul.f32 %v3509, 1.442695
      %v3545 = vpow.pop %v3544
      %v3546 = vmul.f32 %v3510, 1.442695
      %v3547 = vpow.pop %v3546
      %v3548 = vmul.f32 %v3511, 1.442695
      %v3549 = vpow.pop %v3548
      %v3550 = vmul.f32 %v3512, 1.442695
      %v3551 = vpow.pop %v3550
      %v3552 = vmul.f32 %v3513, 1.442695
      %v3553 = vpow.pop %v3552
      %v3554 = vmul.f32 %v3514, 1.442695
      %v3555 = vpow.pop %v3554
      %v3556 = vmul.f32 %v3515, 1.442695
      %v3557 = vpow.pop %v3556
      %v3558 = vmul.f32 %v3516, 1.442695
      %v3559 = vpow.pop %v3558
      %v3560 = vmul.f32 %v3517, 1.442695
      %v3561 = vpow.pop %v3560
      %v3562 = vmul.f32 %v3518, 1.442695
      %v3563 = vpow.pop %v3562
      %v3564 = vmul.f32 %v3519, 1.442695
      %v3565 = vpow.pop %v3564
      %v3566 = vmul.f32 %v3520, 1.442695
      %v3567 = vpow.pop %v3566
      %v3568 = vmul.f32 %v3521, 1.442695
      %v3569 = vpow.pop %v3568
      %v3570 = vmul.f32 %v3522, 1.442695
      %v3571 = vpow.pop %v3570
      %v3572 = vmul.f32 %v3523, 1.442695
      %v3573 = vpow.pop %v3572
      %v3574 = vmul.f32 %v3524, 1.442695
      %v3575 = vpow.pop %v3574
      %v3576 = vmul.f32 %v3525, 1.442695
      %v3577 = vpow.pop %v3576
      %v3578 = vmul.f32 %v3526, 1.442695
      %v3579 = vpow.pop %v3578
      %v3580 = vmul.f32 %v3527, 1.442695
      %v3581 = vpow.pop %v3580
      %v3582 = vmul.f32 %v3528, 1.442695
      %v3583 = vpow.pop %v3582
      %v3584 = vmul.f32 %v3529, 1.442695
      %v3585 = vpow.pop %v3584
      %v3586 = vmul.f32 %v3530, 1.442695
      %v3587 = vpow.pop %v3586
      %v3588 = vmul.f32 %v3531, 1.442695
      %v3589 = vpow.pop %v3588
      %v3590 = vmul.f32 %v3532, 1.442695
      %v3591 = vpow.pop %v3590
      %v3592 = vmul.f32 %v3533, 1.442695
      %v3593 = vpow.pop %v3592
      %v3594 = vmul.f32 %v3534, 1.442695
      %v3595 = vpow.pop %v3594
      %v3596 = vmul.f32 %v3535, 1.442695
      %v3597 = vpow.pop %v3596
      %v3598 = vmul.f32 %v3536, 1.442695
      %v3599 = vpow.pop %v3598
      %v3600 = vmul.f32 %v3537, 1.442695
      %v3601 = vpow.pop %v3600
      %v3602 = vadd.f32 %v3539, 2.0
      %v3603 = vadd.f32 %v3541, 2.0
      %v3604 = vadd.f32 %v3543, 2.0
      %v3605 = vadd.f32 %v3545, 2.0
      %v3606 = vadd.f32 %v3547, 2.0
      %v3607 = vadd.f32 %v3549, 2.0
      %v3608 = vadd.f32 %v3551, 2.0
      %v3609 = vadd.f32 %v3553, 2.0
      %v3610 = vadd.f32 %v3555, 2.0
      %v3611 = vadd.f32 %v3557, 2.0
      %v3612 = vadd.f32 %v3559, 2.0
      %v3613 = vadd.f32 %v3561, 2.0
      %v3614 = vadd.f32 %v3563, 2.0
      %v3615 = vadd.f32 %v3565, 2.0
      %v3616 = vadd.f32 %v3567, 2.0
      %v3617 = vadd.f32 %v3569, 2.0
      %v3618 = vadd.f32 %v3571, 2.0
      %v3619 = vadd.f32 %v3573, 2.0
      %v3620 = vadd.f32 %v3575, 2.0
      %v3621 = vadd.f32 %v3577, 2.0
      %v3622 = vadd.f32 %v3579, 2.0
      %v3623 = vadd.f32 %v3581, 2.0
      %v3624 = vadd.f32 %v3583, 2.0
      %v3625 = vadd.f32 %v3585, 2.0
      %v3626 = vadd.f32 %v3587, 2.0
      %v3627 = vadd.f32 %v3589, 2.0
      %v3628 = vadd.f32 %v3591, 2.0
      %v3629 = vadd.f32 %v3593, 2.0
      %v3630 = vadd.f32 %v3595, 2.0
      %v3631 = vadd.f32 %v3597, 2.0
      %v3632 = vadd.f32 %v3599, 2.0
      %v3633 = vadd.f32 %v3601, 2.0
      %v3634 = vmul.f32 %v3539, %v3602
      %v3635 = vmul.f32 %v3541, %v3603
      %v3636 = vmul.f32 %v3543, %v3604
      %v3637 = vmul.f32 %v3545, %v3605
      %v3638 = vmul.f32 %v3547, %v3606
      %v3639 = vmul.f32 %v3549, %v3607
      %v3640 = vmul.f32 %v3551, %v3608
      %v3641 = vmul.f32 %v3553, %v3609
      %v3642 = vmul.f32 %v3555, %v3610
      %v3643 = vmul.f32 %v3557, %v3611
      %v3644 = vmul.f32 %v3559, %v3612
      %v3645 = vmul.f32 %v3561, %v3613
      %v3646 = vmul.f32 %v3563, %v3614
      %v3647 = vmul.f32 %v3565, %v3615
      %v3648 = vmul.f32 %v3567, %v3616
      %v3649 = vmul.f32 %v3569, %v3617
      %v3650 = vmul.f32 %v3571, %v3618
      %v3651 = vmul.f32 %v3573, %v3619
      %v3652 = vmul.f32 %v3575, %v3620
      %v3653 = vmul.f32 %v3577, %v3621
      %v3654 = vmul.f32 %v3579, %v3622
      %v3655 = vmul.f32 %v3581, %v3623
      %v3656 = vmul.f32 %v3583, %v3624
      %v3657 = vmul.f32 %v3585, %v3625
      %v3658 = vmul.f32 %v3587, %v3626
      %v3659 = vmul.f32 %v3589, %v3627
      %v3660 = vmul.f32 %v3591, %v3628
      %v3661 = vmul.f32 %v3593, %v3629
      %v3662 = vmul.f32 %v3595, %v3630
      %v3663 = vmul.f32 %v3597, %v3631
      %v3664 = vmul.f32 %v3599, %v3632
      %v3665 = vmul.f32 %v3601, %v3633
      %v3666 = vadd.f32 %v3634, 2.0
      %v3667 = vadd.f32 %v3635, 2.0
      %v3668 = vadd.f32 %v3636, 2.0
      %v3669 = vadd.f32 %v3637, 2.0
      %v3670 = vadd.f32 %v3638, 2.0
      %v3671 = vadd.f32 %v3639, 2.0
      %v3672 = vadd.f32 %v3640, 2.0
      %v3673 = vadd.f32 %v3641, 2.0
      %v3674 = vadd.f32 %v3642, 2.0
      %v3675 = vadd.f32 %v3643, 2.0
      %v3676 = vadd.f32 %v3644, 2.0
      %v3677 = vadd.f32 %v3645, 2.0
      %v3678 = vadd.f32 %v3646, 2.0
      %v3679 = vadd.f32 %v3647, 2.0
      %v3680 = vadd.f32 %v3648, 2.0
      %v3681 = vadd.f32 %v3649, 2.0
      %v3682 = vadd.f32 %v3650, 2.0
      %v3683 = vadd.f32 %v3651, 2.0
      %v3684 = vadd.f32 %v3652, 2.0
      %v3685 = vadd.f32 %v3653, 2.0
      %v3686 = vadd.f32 %v3654, 2.0
      %v3687 = vadd.f32 %v3655, 2.0
      %v3688 = vadd.f32 %v3656, 2.0
      %v3689 = vadd.f32 %v3657, 2.0
      %v3690 = vadd.f32 %v3658, 2.0
      %v3691 = vadd.f32 %v3659, 2.0
      %v3692 = vadd.f32 %v3660, 2.0
      %v3693 = vadd.f32 %v3661, 2.0
      %v3694 = vadd.f32 %v3662, 2.0
      %v3695 = vadd.f32 %v3663, 2.0
      %v3696 = vadd.f32 %v3664, 2.0
      %v3697 = vadd.f32 %v3665, 2.0
      %v3698 = vrcp.pop %v3666
      %v3699 = vrcp.pop %v3667
      %v3700 = vrcp.pop %v3668
      %v3701 = vrcp.pop %v3669
      %v3702 = vrcp.pop %v3670
      %v3703 = vrcp.pop %v3671
      %v3704 = vrcp.pop %v3672
      %v3705 = vrcp.pop %v3673
      %v3706 = vrcp.pop %v3674
      %v3707 = vrcp.pop %v3675
      %v3708 = vrcp.pop %v3676
      %v3709 = vrcp.pop %v3677
      %v3710 = vrcp.pop %v3678
      %v3711 = vrcp.pop %v3679
      %v3712 = vrcp.pop %v3680
      %v3713 = vrcp.pop %v3681
      %v3714 = vrcp.pop %v3682
      %v3715 = vrcp.pop %v3683
      %v3716 = vrcp.pop %v3684
      %v3717 = vrcp.pop %v3685
      %v3718 = vrcp.pop %v3686
      %v3719 = vrcp.pop %v3687
      %v3720 = vrcp.pop %v3688
      %v3721 = vrcp.pop %v3689
      %v3722 = vrcp.pop %v3690
      %v3723 = vrcp.pop %v3691
      %v3724 = vrcp.pop %v3692
      %v3725 = vrcp.pop %v3693
      %v3726 = vrcp.pop %v3694
      %v3727 = vrcp.pop %v3695
      %v3728 = vrcp.pop %v3696
      %v3729 = vrcp.pop %v3697
      %v3730 = vmul.f32 %v3634, %v3698
      %v3731 = vmul.f32 %v3635, %v3699
      %v3732 = vmul.f32 %v3636, %v3700
      %v3733 = vmul.f32 %v3637, %v3701
      %v3734 = vmul.f32 %v3638, %v3702
      %v3735 = vmul.f32 %v3639, %v3703
      %v3736 = vmul.f32 %v3640, %v3704
      %v3737 = vmul.f32 %v3641, %v3705
      %v3738 = vmul.f32 %v3642, %v3706
      %v3739 = vmul.f32 %v3643, %v3707
      %v3740 = vmul.f32 %v3644, %v3708
      %v3741 = vmul.f32 %v3645, %v3709
      %v3742 = vmul.f32 %v3646, %v3710
      %v3743 = vmul.f32 %v3647, %v3711
      %v3744 = vmul.f32 %v3648, %v3712
      %v3745 = vmul.f32 %v3649, %v3713
      %v3746 = vmul.f32 %v3650, %v3714
      %v3747 = vmul.f32 %v3651, %v3715
      %v3748 = vmul.f32 %v3652, %v3716
      %v3749 = vmul.f32 %v3653, %v3717
      %v3750 = vmul.f32 %v3654, %v3718
      %v3751 = vmul.f32 %v3655, %v3719
      %v3752 = vmul.f32 %v3656, %v3720
      %v3753 = vmul.f32 %v3657, %v3721
      %v3754 = vmul.f32 %v3658, %v3722
      %v3755 = vmul.f32 %v3659, %v3723
      %v3756 = vmul.f32 %v3660, %v3724
      %v3757 = vmul.f32 %v3661, %v3725
      %v3758 = vmul.f32 %v3662, %v3726
      %v3759 = vmul.f32 %v3663, %v3727
      %v3760 = vmul.f32 %v3664, %v3728
      %v3761 = vmul.f32 %v3665, %v3729
      %vm3762 = vcmp.ge.f32.partialorder %v3474, 20.0
      %vm3763 = vcmp.ge.f32.partialorder %v3475, 20.0
      %vm3764 = vcmp.ge.f32.partialorder %v3476, 20.0
      %vm3765 = vcmp.ge.f32.partialorder %v3477, 20.0
      %vm3766 = vcmp.ge.f32.partialorder %v3478, 20.0
      %vm3767 = vcmp.ge.f32.partialorder %v3479, 20.0
      %vm3768 = vcmp.ge.f32.partialorder %v3480, 20.0
      %vm3769 = vcmp.ge.f32.partialorder %v3481, 20.0
      %vm3770 = vcmp.ge.f32.partialorder %v3482, 20.0
      %vm3771 = vcmp.ge.f32.partialorder %v3483, 20.0
      %vm3772 = vcmp.ge.f32.partialorder %v3484, 20.0
      %vm3773 = vcmp.ge.f32.partialorder %v3485, 20.0
      %vm3774 = vcmp.ge.f32.partialorder %v3486, 20.0
      %vm3775 = vcmp.ge.f32.partialorder %v3487, 20.0
      %vm3776 = vcmp.ge.f32.partialorder %v3488, 20.0
      %vm3777 = vcmp.ge.f32.partialorder %v3489, 20.0
      %vm3778 = vcmp.ge.f32.partialorder %v3490, 20.0
      %vm3779 = vcmp.ge.f32.partialorder %v3491, 20.0
      %vm3780 = vcmp.ge.f32.partialorder %v3492, 20.0
      %vm3781 = vcmp.ge.f32.partialorder %v3493, 20.0
      %vm3782 = vcmp.ge.f32.partialorder %v3494, 20.0
      %vm3783 = vcmp.ge.f32.partialorder %v3495, 20.0
      %vm3784 = vcmp.ge.f32.partialorder %v3496, 20.0
      %vm3785 = vcmp.ge.f32.partialorder %v3497, 20.0
      %vm3786 = vcmp.ge.f32.partialorder %v3498, 20.0
      %vm3787 = vcmp.ge.f32.partialorder %v3499, 20.0
      %vm3788 = vcmp.ge.f32.partialorder %v3500, 20.0
      %vm3789 = vcmp.ge.f32.partialorder %v3501, 20.0
      %vm3790 = vcmp.ge.f32.partialorder %v3502, 20.0
      %vm3791 = vcmp.ge.f32.partialorder %v3503, 20.0
      %vm3792 = vcmp.ge.f32.partialorder %v3504, 20.0
      %vm3793 = vcmp.ge.f32.partialorder %v3505, 20.0
      %v3794 = vsel %vm3762, 1.0, %v3730
      %v3795 = vsel %vm3763, 1.0, %v3731
      %v3796 = vsel %vm3764, 1.0, %v3732
      %v3797 = vsel %vm3765, 1.0, %v3733
      %v3798 = vsel %vm3766, 1.0, %v3734
      %v3799 = vsel %vm3767, 1.0, %v3735
      %v3800 = vsel %vm3768, 1.0, %v3736
      %v3801 = vsel %vm3769, 1.0, %v3737
      %v3802 = vsel %vm3770, 1.0, %v3738
      %v3803 = vsel %vm3771, 1.0, %v3739
      %v3804 = vsel %vm3772, 1.0, %v3740
      %v3805 = vsel %vm3773, 1.0, %v3741
      %v3806 = vsel %vm3774, 1.0, %v3742
      %v3807 = vsel %vm3775, 1.0, %v3743
      %v3808 = vsel %vm3776, 1.0, %v3744
      %v3809 = vsel %vm3777, 1.0, %v3745
      %v3810 = vsel %vm3778, 1.0, %v3746
      %v3811 = vsel %vm3779, 1.0, %v3747
      %v3812 = vsel %vm3780, 1.0, %v3748
      %v3813 = vsel %vm3781, 1.0, %v3749
      %v3814 = vsel %vm3782, 1.0, %v3750
      %v3815 = vsel %vm3783, 1.0, %v3751
      %v3816 = vsel %vm3784, 1.0, %v3752
      %v3817 = vsel %vm3785, 1.0, %v3753
      %v3818 = vsel %vm3786, 1.0, %v3754
      %v3819 = vsel %vm3787, 1.0, %v3755
      %v3820 = vsel %vm3788, 1.0, %v3756
      %v3821 = vsel %vm3789, 1.0, %v3757
      %v3822 = vsel %vm3790, 1.0, %v3758
      %v3823 = vsel %vm3791, 1.0, %v3759
      %v3824 = vsel %vm3792, 1.0, %v3760
      %v3825 = vsel %vm3793, 1.0, %v3761
      %v3826 = vmul.f32 %v3474, %v3794
      %v3827 = vmul.f32 %v3475, %v3795
      %v3828 = vmul.f32 %v3476, %v3796
      %v3829 = vmul.f32 %v3477, %v3797
      %v3830 = vmul.f32 %v3478, %v3798
      %v3831 = vmul.f32 %v3479, %v3799
      %v3832 = vmul.f32 %v3480, %v3800
      %v3833 = vmul.f32 %v3481, %v3801
      %v3834 = vmul.f32 %v3482, %v3802
      %v3835 = vmul.f32 %v3483, %v3803
      %v3836 = vmul.f32 %v3484, %v3804
      %v3837 = vmul.f32 %v3485, %v3805
      %v3838 = vmul.f32 %v3486, %v3806
      %v3839 = vmul.f32 %v3487, %v3807
      %v3840 = vmul.f32 %v3488, %v3808
      %v3841 = vmul.f32 %v3489, %v3809
      %v3842 = vmul.f32 %v3490, %v3810
      %v3843 = vmul.f32 %v3491, %v3811
      %v3844 = vmul.f32 %v3492, %v3812
      %v3845 = vmul.f32 %v3493, %v3813
      %v3846 = vmul.f32 %v3494, %v3814
      %v3847 = vmul.f32 %v3495, %v3815
      %v3848 = vmul.f32 %v3496, %v3816
      %v3849 = vmul.f32 %v3497, %v3817
      %v3850 = vmul.f32 %v3498, %v3818
      %v3851 = vmul.f32 %v3499, %v3819
      %v3852 = vmul.f32 %v3500, %v3820
      %v3853 = vmul.f32 %v3501, %v3821
      %v3854 = vmul.f32 %v3502, %v3822
      %v3855 = vmul.f32 %v3503, %v3823
      %v3856 = vmul.f32 %v3504, %v3824
      %v3857 = vmul.f32 %v3505, %v3825
      %v3858 = vadd.f32 %v3826, %v225
      %v3859 = vadd.f32 %v3827, %v226
      %v3860 = vadd.f32 %v3828, %v227
      %v3861 = vadd.f32 %v3829, %v228
      %v3862 = vadd.f32 %v3830, %v229
      %v3863 = vadd.f32 %v3831, %v230
      %v3864 = vadd.f32 %v3832, %v231
      %v3865 = vadd.f32 %v3833, %v232
      %v3866 = vadd.f32 %v3834, %v233
      %v3867 = vadd.f32 %v3835, %v234
      %v3868 = vadd.f32 %v3836, %v235
      %v3869 = vadd.f32 %v3837, %v236
      %v3870 = vadd.f32 %v3838, %v237
      %v3871 = vadd.f32 %v3839, %v238
      %v3872 = vadd.f32 %v3840, %v239
      %v3873 = vadd.f32 %v3841, %v240
      %v3874 = vadd.f32 %v3842, %v241
      %v3875 = vadd.f32 %v3843, %v242
      %v3876 = vadd.f32 %v3844, %v243
      %v3877 = vadd.f32 %v3845, %v244
      %v3878 = vadd.f32 %v3846, %v245
      %v3879 = vadd.f32 %v3847, %v246
      %v3880 = vadd.f32 %v3848, %v247
      %v3881 = vadd.f32 %v3849, %v248
      %v3882 = vadd.f32 %v3850, %v249
      %v3883 = vadd.f32 %v3851, %v250
      %v3884 = vadd.f32 %v3852, %v251
      %v3885 = vadd.f32 %v3853, %v252
      %v3886 = vadd.f32 %v3854, %v253
      %v3887 = vadd.f32 %v3855, %v254
      %v3888 = vadd.f32 %v3856, %v255
      %v3889 = vadd.f32 %v3857, %v256
      %3890 = vst [vmem:[%s224] sm:$0xff] %v3858
      %3891 = vst [vmem:[%s224 + $0x8] sm:$0xff] %v3859
      %3892 = vst [vmem:[%s224 + $0x10] sm:$0xff] %v3860
      %3893 = vst [vmem:[%s224 + $0x18] sm:$0xff] %v3861
      %3894 = vst [vmem:[%s224 + $0x20] sm:$0xff] %v3862
      %3895 = vst [vmem:[%s224 + $0x28] sm:$0xff] %v3863
      %3896 = vst [vmem:[%s224 + $0x30] sm:$0xff] %v3864
      %3897 = vst [vmem:[%s224 + $0x38] sm:$0xff] %v3865
      %3898 = vst [vmem:[%s224 + $0x40] sm:$0xff] %v3866
      %3899 = vst [vmem:[%s224 + $0x48] sm:$0xff] %v3867
      %3900 = vst [vmem:[%s224 + $0x50] sm:$0xff] %v3868
      %3901 = vst [vmem:[%s224 + $0x58] sm:$0xff] %v3869
      %3902 = vst [vmem:[%s224 + $0x60] sm:$0xff] %v3870
      %3903 = vst [vmem:[%s224 + $0x68] sm:$0xff] %v3871
      %3904 = vst [vmem:[%s224 + $0x70] sm:$0xff] %v3872
      %3905 = vst [vmem:[%s224 + $0x78] sm:$0xff] %v3873
      %3906 = vst [vmem:[%s224 + $0x80] sm:$0xff] %v3874
      %3907 = vst [vmem:[%s224 + $0x88] sm:$0xff] %v3875
      %3908 = vst [vmem:[%s224 + $0x90] sm:$0xff] %v3876
      %3909 = vst [vmem:[%s224 + $0x98] sm:$0xff] %v3877
      %3910 = vst [vmem:[%s224 + $0xa0] sm:$0xff] %v3878
      %3911 = vst [vmem:[%s224 + $0xa8] sm:$0xff] %v3879
      %3912 = vst [vmem:[%s224 + $0xb0] sm:$0xff] %v3880
      %3913 = vst [vmem:[%s224 + $0xb8] sm:$0xff] %v3881
      %3914 = vst [vmem:[%s224 + $0xc0] sm:$0xff] %v3882
      %3915 = vst [vmem:[%s224 + $0xc8] sm:$0xff] %v3883
      %3916 = vst [vmem:[%s224 + $0xd0] sm:$0xff] %v3884
      %3917 = vst [vmem:[%s224 + $0xd8] sm:$0xff] %v3885
      %3918 = vst [vmem:[%s224 + $0xe0] sm:$0xff] %v3886
      %3919 = vst [vmem:[%s224 + $0xe8] sm:$0xff] %v3887
      %3920 = vst [vmem:[%s224 + $0xf0] sm:$0xff] %v3888
      %3921 = vst [vmem:[%s224 + $0xf8] sm:$0xff] %v3889
      %p3922 = scmp.lt.s32.totalorder %s16, 1
      %s3923 = scalar_select %p3922, %s16, 1
      %s3924 = smul.addr %s3923, 32
      %s3925 = smul.addr %s3924, 8
      %s3926 = scalar_lea.vmem %s5, %s3925
      // Predicated region
      $region41: #{smallblock_pallas_nhwc.1} parent=39 // pred_check
        %p3927 = pneg %p144
      $region42: #{smallblock_pallas_nhwc.1} parent=39 // pred_check_branch
        %3929 = sbr.rel (%p3927) target = $region44
      $region43: #{smallblock_pallas_nhwc.1} parent=39 // pred_region
        _
      $region44: #{smallblock_pallas_nhwc.1} parent=39 // pred_fallthru
        _
    $region40: #{smallblock_pallas_nhwc.1} parent=5 // pred_fallthru
      _
    %p3930 = scmp.le.s32.totalorder 2, %s11
    // Predicated region
    $region45: #{smallblock_pallas_nhwc.1} parent=5 // pred_check
      %p3931 = pneg %p3930
    $region46: #{smallblock_pallas_nhwc.1} parent=5 // pred_check_branch
      %3933 = sbr.rel (%p3931) target = $region48
    $region47: #{smallblock_pallas_nhwc.1} parent=5 // pred_region
      %s3934 = ssub.s32 %s11, 2
      // Predicated region
      $region49: #{smallblock_pallas_nhwc.1} parent=47 // pred_check
        %p3935 = pneg %p150
      $region50: #{smallblock_pallas_nhwc.1} parent=47 // pred_check_branch
        %3937 = sbr.rel (%p3935) target = $region52
      $region51: #{smallblock_pallas_nhwc.1} parent=47 // pred_region
        %p3938 = scmp.lt.s32.totalorder %s17, 1
        %s3939 = scalar_select %p3938, %s17, 1
        %s3940 = smul.addr %s3939, 32
        %s3941 = smul.addr %s3940, 8
        %s3942 = scalar_lea.vmem %s5, %s3941
      $region52: #{smallblock_pallas_nhwc.1} parent=47 // pred_fallthru
        _
    $region48: #{smallblock_pallas_nhwc.1} parent=5 // pred_fallthru
      _
  $region6: #{smallblock_pallas_nhwc.1} parent=0 // loop_footer
    %s15 = sadd.s32 1, %s11
  $region7: #{smallblock_pallas_nhwc.1} parent=0 // loop_footer_branch
    %10 = sbr.rel target = $region3
  $region8: #{smallblock_pallas_nhwc.1} parent=0 // loop_exit
    _

</llo_original>
